<compile_context>
chip_gen: v7x
topology: tpu7x:2x2x1
jax: 0.10.0
libtpu: 0.0.40
codegen_flags: <defaults>
</compile_context>

<pallas_src>
import functools

import jax
import jax.numpy as jnp
from jax.experimental import pallas as pl

# ------------------------- model config (mini T5) ---------------------------
VOCAB = 128
D_MODEL = 32
D_FF = 64
N_HEADS = 4
D_KV = 8
INNER = N_HEADS * D_KV          # 32
REL_BUCKETS = 32
REL_MAX_DIST = 128
EPS = 1e-6
NEG = -1e9
W_COLS = 128                    # lane width of the packed weight slab (== VOCAB)
FF_ROWS = 128                   # D_FF rows zero-padded to a full 128-deep contraction

# --------------- packed bf16 weight slab: (name, padded_rows, cols) ----------
# Every weight lives in one (704, 128) bf16 slab -> a single prologue DMA
# instead of ~20 tiny ones.  Row offsets are multiples of 32 (tile aligned);
# unused columns / rows are zero so full-128-lane matmuls stay exact.
_W_LAYOUT = (
    ("emb",    VOCAB,   D_MODEL),      # embedding table (V, D)
    ("lm",     D_MODEL, VOCAB),        # tied LM head, pre-transposed & pre-scaled
    ("e_wqkv", D_MODEL, 3 * INNER),    # encoder fused QKV, head-grouped columns
    ("e_wo",   INNER,   D_MODEL),
    ("e_wi",   D_MODEL, D_FF),
    ("e_wff",  FF_ROWS, D_MODEL),      # rows zero-padded 64 -> 128
    ("d_wqkv", D_MODEL, 3 * INNER),    # decoder self-attn fused QKV
    ("d_wo",   INNER,   D_MODEL),
    ("d_wq",   D_MODEL, INNER),        # cross-attn Q
    ("d_wkv",  D_MODEL, 2 * INNER),    # cross-attn fused KV, head-grouped
    ("d_cwo",  INNER,   D_MODEL),
    ("d_wi",   D_MODEL, D_FF),
    ("d_wff",  FF_ROWS, D_MODEL),
)


def _layout_offsets():
    offs, off = {}, 0
    for name, rows, cols in _W_LAYOUT:
        offs[name] = (off, rows, cols)
        off += rows
    return offs, off


_W_OFF, _W_ROWS = _layout_offsets()

_NORM_NAMES = ("e_ln_sa", "e_ln_ff", "e_lnf",
               "d_ln_sa", "d_ln_ca", "d_ln_ff", "d_lnf")
_NORM_IDX = {n: i for i, n in enumerate(_NORM_NAMES)}


# --------------------------- fused forward kernel ---------------------------
def _t5_forward_kernel(tok_ref, mask_ref, enc_bias_ref, dec_bias_ref,
                       w_ref, norms_ref, logits_ref, loss_ref):
    B, Te = mask_ref.shape
    Td = dec_bias_ref.shape[1]
    Ne, Nd = B * Te, B * Td

    norms = norms_ref[...]                                    # (8, D) fp32

    def w_full(name):                                         # full 128-lane block
        off, rows, _ = _W_OFF[name]
        return w_ref[off:off + rows, :]

    def w_block(name):                                        # exact (rows, cols)
        off, rows, cols = _W_OFF[name]
        return w_ref[off:off + rows, :cols]

    def mm(a, b):                                             # bf16 x bf16 -> f32 (MXU)
        return jnp.dot(a, b, preferred_element_type=jnp.float32)

    def rmsnorm_bf16(x, name):
        """T5LayerNorm (RMS) in fp32, emit bf16 for the matmul that consumes it."""
        var = jnp.mean(x * x, axis=-1, keepdims=True)
        return (x * jax.lax.rsqrt(var + EPS) * norms[_NORM_IDX[name]]
                ).astype(jnp.bfloat16)

    def softmax(s):
        m = jnp.max(s, axis=-1, keepdims=True)
        p = jnp.exp(s - m)
        return p * pl.reciprocal(jnp.sum(p, axis=-1, keepdims=True), approx=True)

    def split_heads(x2d, b, t, group):
        """(b*t, H*group*D_KV) head-grouped cols -> (H*b, t, group*D_KV)."""
        g = group * D_KV
        blocks = [x2d[:, h * g:(h + 1) * g] for h in range(N_HEADS)]
        return jnp.concatenate(blocks, axis=0).reshape(N_HEADS * b, t, g)

    def merge_heads(o_hb, b, t):
        """(H*b, t, D_KV) -> (b*t, INNER) head-major columns (matches Wo rows)."""
        cols = [o_hb[h * b:(h + 1) * b].reshape(b * t, D_KV)
                for h in range(N_HEADS)]
        return jnp.concatenate(cols, axis=-1)

    def attention(q_hb, k_hb, v_hb, bias4, wo_name, b, tq, tk):
        """All heads batched: one score einsum / softmax / context / out-proj."""
        s = jnp.einsum('bqd,bkd->bqk', q_hb, k_hb,
                       preferred_element_type=jnp.float32)    # (H*b, tq, tk); T5: no 1/sqrt(dk)
        s = (s.reshape(N_HEADS, b, tq, tk) + bias4).reshape(N_HEADS * b, tq, tk)
        p = softmax(s)
        o = jnp.einsum('bqk,bkd->bqd', p, v_hb,
                       preferred_element_type=jnp.float32)
        return mm(merge_heads(o, b, tq).astype(jnp.bfloat16), w_block(wo_name))

    # ----------- fused embedding lookup (encoder + decoder tokens) ----------
    ids = tok_ref[0:Ne + Nd, :]                               # (Ne+Nd, 1) i32
    iota = jax.lax.broadcasted_iota(jnp.int32, (Ne + Nd, VOCAB), 1)
    onehot = (iota == ids).astype(jnp.bfloat16)               # built directly as bf16
    xy = mm(onehot, w_block("emb"))                           # (Ne+Nd, D) fp32
    x, y = xy[:Ne], xy[Ne:]

    enc_pad = (1.0 - mask_ref[...]) * NEG                     # (B, Te) additive mask
    enc_bias4 = enc_bias_ref[...][:, None, :, :] + enc_pad[None, :, None, :]

    # ------------------------------- encoder --------------------------------
    qkv = mm(rmsnorm_bf16(x, "e_ln_sa"), w_full("e_wqkv"))    # (Ne, 128), cols 96: zero
    hb = split_heads(qkv, B, Te, 3)
    x = x + attention(hb[..., :D_KV], hb[..., D_KV:2 * D_KV],
                      hb[..., 2 * D_KV:3 * D_KV],
                      enc_bias4, "e_wo", B, Te, Te)
    hdn = jnp.maximum(mm(rmsnorm_bf16(x, "e_ln_ff"), w_full("e_wi")), 0.0)
    x = x + mm(hdn.astype(jnp.bfloat16), w_block("e_wff"))    # padded rows kill pad cols
    enc_out = rmsnorm_bf16(x, "e_lnf")                        # (Ne, D) bf16

    # ------------------------------- decoder --------------------------------
    qkv = mm(rmsnorm_bf16(y, "d_ln_sa"), w_full("d_wqkv"))
    hb = split_heads(qkv, B, Td, 3)
    y = y + attention(hb[..., :D_KV], hb[..., D_KV:2 * D_KV],
                      hb[..., 2 * D_KV:3 * D_KV],
                      dec_bias_ref[...][:, None, :, :],       # rel bias + causal (precombined)
                      "d_wo", B, Td, Td)

    # cross-attention (no relative bias in T5; pad mask only)
    q_all = mm(rmsnorm_bf16(y, "d_ln_ca"), w_full("d_wq"))    # (Nd, 128)
    kv = mm(enc_out, w_full("d_wkv"))                         # (Ne, 128)
    qh = split_heads(q_all, B, Td, 1)
    kvh = split_heads(kv, B, Te, 2)
    y = y + attention(qh, kvh[..., :D_KV], kvh[..., D_KV:2 * D_KV],
                      enc_pad[None, :, None, :], "d_cwo", B, Td, Te)

    hdn = jnp.maximum(mm(rmsnorm_bf16(y, "d_ln_ff"), w_full("d_wi")), 0.0)
    y = y + mm(hdn.astype(jnp.bfloat16), w_block("d_wff"))

    # LM head: tied embedding, pre-transposed & pre-scaled by d_model**-0.5
    logits = mm(rmsnorm_bf16(y, "d_lnf"), w_full("lm"))       # (Nd, V=128) lane-dense
    logits_ref[...] = logits

    # ---------------- fused cross-entropy (ignore_index = -100) -------------
    labels = tok_ref[Ne + Nd:Ne + 2 * Nd, :]                  # (Nd, 1) i32
    m = jnp.max(logits, axis=-1, keepdims=True)
    lse = m + jnp.log(jnp.sum(jnp.exp(logits - m), axis=-1, keepdims=True))
    vocab_ids = jax.lax.broadcasted_iota(jnp.int32, (Nd, VOCAB), 1)
    correct = jnp.sum(logits * (vocab_ids == labels).astype(jnp.float32),
                      axis=-1, keepdims=True)
    valid = (labels != -100).astype(jnp.float32)
    total = jnp.sum((lse - correct) * valid)
    count = jnp.maximum(jnp.sum(valid), 1.0)
    loss_ref[...] = jnp.full((1, 1), total / count, dtype=jnp.float32)


# ------------------------- T5 glue (host side, cached) ------------------------
def relative_position_bucket(rel_pos, bidirectional, num_buckets=REL_BUCKETS,
                             max_distance=REL_MAX_DIST):
    relative_buckets = jnp.zeros_like(rel_pos)
    if bidirectional:
        num_buckets //= 2
        relative_buckets = relative_buckets + (rel_pos > 0).astype(jnp.int32) * num_buckets
        rel_pos = jnp.abs(rel_pos)
    else:
        rel_pos = -jnp.minimum(rel_pos, 0)
    max_exact = num_buckets // 2
    is_small = rel_pos < max_exact
    rp_f = jnp.maximum(rel_pos.astype(jnp.float32), 1.0)
    large = max_exact + (
        jnp.log(rp_f / max_exact) / jnp.log(max_distance / max_exact)
        * (num_buckets - max_exact)
    ).astype(jnp.int32)
    large = jnp.minimum(large, num_buckets - 1)
    return relative_buckets + jnp.where(is_small, rel_pos, large)


def rel_pos_bias(q_len, k_len, table, bidirectional):
    ctx = jnp.arange(q_len)[:, None]
    mem = jnp.arange(k_len)[None, :]
    buckets = relative_position_bucket(mem - ctx, bidirectional)       # (q,k)
    return jnp.transpose(table[buckets], (2, 0, 1))                    # (H,q,k)


def shift_right(labels):
    B = labels.shape[0]
    start = jnp.zeros((B, 1), dtype=labels.dtype)      # decoder_start_token_id = 0
    dec = jnp.concatenate([start, labels[:, :-1]], axis=1)
    return jnp.where(dec == -100, 0, dec)


def pack_params(params, Te, Td):
    """One-time host-side packing: bf16 weight slab, norm slab, bias tables."""
    e, d = params["enc"], params["dec"]

    def head_group(mats):
        # list of (D, INNER) head-major matrices -> (D, H*len*D_KV) with columns
        # grouped per head: [h0: m0|m1|..., h1: m0|m1|..., ...]
        stacked = jnp.stack([m.reshape(D_MODEL, N_HEADS, D_KV) for m in mats],
                            axis=2)                                    # (D,H,n,Dk)
        return stacked.reshape(D_MODEL, N_HEADS * len(mats) * D_KV)

    weights = {
        "emb":    params["shared"],
        "lm":     params["shared"].T * (D_MODEL ** -0.5),   # tie scale folded in
        "e_wqkv": head_group([e["wq"], e["wk"], e["wv"]]),
        "e_wo":   e["wo"],
        "e_wi":   e["wi"],
        "e_wff":  e["wo_ff"],
        "d_wqkv": head_group([d["wq"], d["wk"], d["wv"]]),
        "d_wo":   d["wo"],
        "d_wq":   d["cq"],
        "d_wkv":  head_group([d["ck"], d["cv"]]),
        "d_cwo":  d["cwo"],
        "d_wi":   d["wi"],
        "d_wff":  d["wo_ff"],
    }
    W = jnp.zeros((_W_ROWS, W_COLS), jnp.float32)
    for name, _, _ in _W_LAYOUT:
        off = _W_OFF[name][0]
        w = weights[name]
        W = W.at[off:off + w.shape[0], :w.shape[1]].set(w)
    W = W.astype(jnp.bfloat16)                                         # pre-cast once

    norms = jnp.stack([e["ln_sa"], e["ln_ff"], e["ln_f"],
                       d["ln_sa"], d["ln_ca"], d["ln_ff"], d["ln_f"],
                       jnp.zeros((D_MODEL,), jnp.float32)], axis=0)    # (8, D)

    enc_bias = rel_pos_bias(Te, Te, params["enc_rel"], bidirectional=True)
    row = jnp.arange(Td)[:, None]
    col = jnp.arange(Td)[None, :]
    causal = jnp.where(col <= row, 0.0, NEG)
    dec_bias = rel_pos_bias(Td, Td, params["dec_rel"], bidirectional=False) + causal[None]

    return {"w": W, "norms": norms,
            "enc_bias": enc_bias.astype(jnp.float32),
            "dec_bias": dec_bias.astype(jnp.float32)}


def triple2question_forward(packed, input_ids, attention_mask, labels):
    """Equivalent of Triple2QuestionModel.forward -> (loss, lm_logits)."""
    B, Te = input_ids.shape
    Td = labels.shape[1]
    assert packed["enc_bias"].shape[1] == Te and packed["dec_bias"].shape[1] == Td

    dec_ids = shift_right(labels)
    # One int32 token slab: [enc_ids | dec_ids | labels] (single small DMA).
    tok = jnp.concatenate(
        [input_ids.reshape(-1), dec_ids.reshape(-1), labels.reshape(-1)]
    ).astype(jnp.int32).reshape(-1, 1)

    logits, loss = pl.pallas_call(
        _t5_forward_kernel,
        out_shape=(
            jax.ShapeDtypeStruct((B * Td, VOCAB), jnp.float32),
            jax.ShapeDtypeStruct((1, 1), jnp.float32),
        ),
        # No grid: weights + activations (~0.3 MiB) stay resident in VMEM for a
        # single invocation (default whole-array BlockSpecs).  TODO(synk): on
        # v7x add grid=(batch_blocks,) with dimension_semantics=("parallel",)
        # to use the second TensorCore once batch/seq grow large enough.
    )(tok, attention_mask.astype(jnp.float32),
      packed["enc_bias"], packed["dec_bias"], packed["w"], packed["norms"])

    return loss[0, 0], logits.reshape(B, Td, VOCAB)


# ------------------------------ parameter init -------------------------------
def init_params(key):
    keys = iter(jax.random.split(key, 64))

    def nrm(shape, scale=0.05):
        return jax.random.normal(next(keys), shape, jnp.float32) * scale

    def ln(shape):
        return 1.0 + jax.random.normal(next(keys), shape, jnp.float32) * 0.01

    return {
        "shared": nrm((VOCAB, D_MODEL), 0.1),
        "enc_rel": nrm((REL_BUCKETS, N_HEADS), 0.1),
        "dec_rel": nrm((REL_BUCKETS, N_HEADS), 0.1),
        "enc": {
            "ln_sa": ln((D_MODEL,)),
            "wq": nrm((D_MODEL, INNER)), "wk": nrm((D_MODEL, INNER)),
            "wv": nrm((D_MODEL, INNER)), "wo": nrm((INNER, D_MODEL)),
            "ln_ff": ln((D_MODEL,)),
            "wi": nrm((D_MODEL, D_FF)), "wo_ff": nrm((D_FF, D_MODEL)),
            "ln_f": ln((D_MODEL,)),
        },
        "dec": {
            "ln_sa": ln((D_MODEL,)),
            "wq": nrm((D_MODEL, INNER)), "wk": nrm((D_MODEL, INNER)),
            "wv": nrm((D_MODEL, INNER)), "wo": nrm((INNER, D_MODEL)),
            "ln_ca": ln((D_MODEL,)),
            "cq": nrm((D_MODEL, INNER)), "ck": nrm((D_MODEL, INNER)),
            "cv": nrm((D_MODEL, INNER)), "cwo": nrm((INNER, D_MODEL)),
            "ln_ff": ln((D_MODEL,)),
            "wi": nrm((D_MODEL, D_FF)), "wo_ff": nrm((D_FF, D_MODEL)),
            "ln_f": ln((D_MODEL,)),
        },
    }


# ----------------------------------- main ------------------------------------
if __name__ == "__main__":
    key = jax.random.PRNGKey(0)
    k_param, k_in, k_lab = jax.random.split(key, 3)

    B, SEQ = 2, 8
    params = init_params(k_param)
    packed = pack_params(params, Te=SEQ, Td=SEQ)      # hoisted out of the fwd path

    input_ids = jax.random.randint(k_in, (B, SEQ), 1, VOCAB, dtype=jnp.int32)
    attention_mask = jnp.ones((B, SEQ), dtype=jnp.int32).at[1, 6:].set(0)
    labels = jax.random.randint(k_lab, (B, SEQ), 1, VOCAB, dtype=jnp.int32)
    labels = labels.at[1, 6:].set(-100)               # exercise ignore_index masking

    fwd = jax.jit(triple2question_forward)
    loss, logits = fwd(packed, input_ids, attention_mask, labels)
    jax.block_until_ready((loss, logits))

    assert logits.shape == (B, SEQ, VOCAB)
    assert jnp.isfinite(loss)
    print("KERNEL_OK")
</pallas_src>

<mosaic_0001>
module attributes {stable_mosaic.version = 11 : i64} {
  func.func @_t5_forward_kernel(%arg0: memref<48x1xi32, #tpu.memory_space<vmem>>, %arg1: memref<2x8xf32, #tpu.memory_space<vmem>>, %arg2: memref<4x8x8xf32, #tpu.memory_space<vmem>>, %arg3: memref<4x8x8xf32, #tpu.memory_space<vmem>>, %arg4: memref<704x128xbf16, #tpu.memory_space<vmem>>, %arg5: memref<8x32xf32, #tpu.memory_space<vmem>>, %arg6: memref<16x128xf32, #tpu.memory_space<vmem>>, %arg7: memref<1x1xf32, #tpu.memory_space<vmem>>) attributes {dimension_semantics = [], scalar_prefetch = 0 : i64, scratch_operands = 0 : i64, tpu.core_type = #tpu.core_type<tc>} {
    %c0 = arith.constant 0 : index
    %c0_0 = arith.constant 0 : index
    %0 = vector.load %arg5[%c0, %c0_0] : memref<8x32xf32, #tpu.memory_space<vmem>>, vector<8x32xf32>
    %c0_1 = arith.constant 0 : index
    %c0_2 = arith.constant 0 : index
    %1 = vector.load %arg0[%c0_1, %c0_2] : memref<48x1xi32, #tpu.memory_space<vmem>>, vector<32x1xi32>
    %2 = tpu.iota {dimensions = array<i32: 1>} : vector<32x128xi32>
    %3 = vector.broadcast %1 : vector<32x1xi32> to vector<32x128xi32>
    %4 = arith.cmpi eq, %2, %3 : vector<32x128xi32>
    %5 = arith.extui %4 : vector<32x128xi1> to vector<32x128xi32>
    %6 = arith.sitofp %5 : vector<32x128xi32> to vector<32x128xf32>
    %7 = arith.truncf %6 : vector<32x128xf32> to vector<32x128xbf16>
    %c0_3 = arith.constant 0 : index
    %c0_4 = arith.constant 0 : index
    %8 = vector.load %arg4[%c0_3, %c0_4] : memref<704x128xbf16, #tpu.memory_space<vmem>>, vector<128x32xbf16>
    %cst = arith.constant dense<0.000000e+00> : vector<32x32xf32>
    %9 = tpu.matmul %7, %8, %cst {dimension_numbers = #tpu.dot_dimension_numbers<[1], [0], [0], [1], [0, 0, 1, 1], [], []>} : vector<32x128xbf16>, vector<128x32xbf16>, vector<32x32xf32> -> vector<32x32xf32>
    %10 = vector.extract_strided_slice %9 {offsets = [0, 0], sizes = [16, 32], strides = [1, 1]} : vector<32x32xf32> to vector<16x32xf32>
    %11 = vector.extract_strided_slice %9 {offsets = [16, 0], sizes = [16, 32], strides = [1, 1]} : vector<32x32xf32> to vector<16x32xf32>
    %c0_5 = arith.constant 0 : index
    %c0_6 = arith.constant 0 : index
    %12 = vector.load %arg1[%c0_5, %c0_6] : memref<2x8xf32, #tpu.memory_space<vmem>>, vector<2x8xf32>
    %cst_7 = arith.constant 1.000000e+00 : f32
    %13 = vector.broadcast %cst_7 : f32 to vector<2x8xf32>
    %14 = arith.subf %13, %12 : vector<2x8xf32>
    %cst_8 = arith.constant -1.000000e+09 : f32
    %15 = vector.broadcast %cst_8 : f32 to vector<2x8xf32>
    %16 = arith.mulf %14, %15 : vector<2x8xf32>
    %c0_9 = arith.constant 0 : index
    %c0_10 = arith.constant 0 : index
    %c0_11 = arith.constant 0 : index
    %17 = vector.load %arg2[%c0_9, %c0_10, %c0_11] : memref<4x8x8xf32, #tpu.memory_space<vmem>>, vector<4x8x8xf32>
    %18 = vector.shape_cast %17 : vector<4x8x8xf32> to vector<4x1x8x8xf32>
    %19 = vector.shape_cast %16 : vector<2x8xf32> to vector<1x2x1x8xf32>
    %20 = vector.broadcast %18 : vector<4x1x8x8xf32> to vector<4x2x8x8xf32>
    %21 = vector.broadcast %19 : vector<1x2x1x8xf32> to vector<4x2x8x8xf32>
    %22 = arith.addf %20, %21 : vector<4x2x8x8xf32>
    %23 = arith.mulf %10, %10 : vector<16x32xf32>
    %cst_12 = arith.constant dense<0.000000e+00> : vector<16xf32>
    %24 = vector.multi_reduction <add>, %23, %cst_12 [1] : vector<16x32xf32> to vector<16xf32>
    %25 = vector.shape_cast %24 : vector<16xf32> to vector<16x1xf32>
    %cst_13 = arith.constant 3.200000e+01 : f32
    %26 = vector.broadcast %cst_13 : f32 to vector<16x1xf32>
    %27 = arith.divf %25, %26 : vector<16x1xf32>
    %cst_14 = arith.constant 9.99999997E-7 : f32
    %28 = vector.broadcast %cst_14 : f32 to vector<16x1xf32>
    %29 = arith.addf %27, %28 : vector<16x1xf32>
    %30 = math.rsqrt %29 : vector<16x1xf32>
    %31 = vector.broadcast %30 : vector<16x1xf32> to vector<16x32xf32>
    %32 = arith.mulf %10, %31 : vector<16x32xf32>
    %33 = vector.extract_strided_slice %0 {offsets = [0, 0], sizes = [1, 32], strides = [1, 1]} : vector<8x32xf32> to vector<1x32xf32>
    %34 = vector.shape_cast %33 : vector<1x32xf32> to vector<32xf32>
    %35 = vector.shape_cast %34 : vector<32xf32> to vector<1x32xf32>
    %36 = vector.broadcast %35 : vector<1x32xf32> to vector<16x32xf32>
    %37 = arith.mulf %32, %36 : vector<16x32xf32>
    %38 = arith.truncf %37 : vector<16x32xf32> to vector<16x32xbf16>
    %c160 = arith.constant 160 : index
    %c0_15 = arith.constant 0 : index
    %39 = vector.load %arg4[%c160, %c0_15] : memref<704x128xbf16, #tpu.memory_space<vmem>>, vector<32x128xbf16>
    %cst_16 = arith.constant dense<0.000000e+00> : vector<16x128xf32>
    %40 = tpu.matmul %38, %39, %cst_16 {dimension_numbers = #tpu.dot_dimension_numbers<[1], [0], [0], [1], [0, 0, 1, 1], [], []>} : vector<16x32xbf16>, vector<32x128xbf16>, vector<16x128xf32> -> vector<16x128xf32>
    %41 = vector.extract_strided_slice %40 {offsets = [0, 0], sizes = [16, 24], strides = [1, 1]} : vector<16x128xf32> to vector<16x24xf32>
    %42 = vector.extract_strided_slice %40 {offsets = [0, 24], sizes = [16, 24], strides = [1, 1]} : vector<16x128xf32> to vector<16x24xf32>
    %43 = vector.extract_strided_slice %40 {offsets = [0, 48], sizes = [16, 24], strides = [1, 1]} : vector<16x128xf32> to vector<16x24xf32>
    %44 = vector.extract_strided_slice %40 {offsets = [0, 72], sizes = [16, 24], strides = [1, 1]} : vector<16x128xf32> to vector<16x24xf32>
    %45 = tpu.concatenate %41, %42, %43, %44 in 0 : vector<16x24xf32>, vector<16x24xf32>, vector<16x24xf32>, vector<16x24xf32> -> vector<64x24xf32>
    %46 = vector.shape_cast %45 : vector<64x24xf32> to vector<8x8x24xf32>
    %47 = vector.extract_strided_slice %46 {offsets = [0, 0, 0], sizes = [8, 8, 8], strides = [1, 1, 1]} : vector<8x8x24xf32> to vector<8x8x8xf32>
    %48 = vector.extract_strided_slice %46 {offsets = [0, 0, 8], sizes = [8, 8, 8], strides = [1, 1, 1]} : vector<8x8x24xf32> to vector<8x8x8xf32>
    %49 = vector.extract_strided_slice %46 {offsets = [0, 0, 16], sizes = [8, 8, 8], strides = [1, 1, 1]} : vector<8x8x24xf32> to vector<8x8x8xf32>
    "tpu.trace_start"() <{level = 10 : i32, message = "bqd,bkd->bqk"}> : () -> ()
    %cst_17 = arith.constant dense<0.000000e+00> : vector<8x8x8xf32>
    %50 = tpu.matmul %47, %48, %cst_17 {dimension_numbers = #tpu.dot_dimension_numbers<[2], [2], [1], [1], [0, 0, 0, 1, 1, 1], [0], [0]>} : vector<8x8x8xf32>, vector<8x8x8xf32>, vector<8x8x8xf32> -> vector<8x8x8xf32>
    "tpu.trace_stop"() : () -> ()
    %51 = vector.shape_cast %50 : vector<8x8x8xf32> to vector<4x2x8x8xf32>
    %52 = arith.addf %51, %22 : vector<4x2x8x8xf32>
    %53 = vector.shape_cast %52 : vector<4x2x8x8xf32> to vector<8x8x8xf32>
    %cst_18 = arith.constant dense<0xFF800000> : vector<8x8xf32>
    %54 = vector.multi_reduction <maximumf>, %53, %cst_18 [2] : vector<8x8x8xf32> to vector<8x8xf32>
    %55 = vector.shape_cast %54 : vector<8x8xf32> to vector<8x8x1xf32>
    %56 = vector.broadcast %55 : vector<8x8x1xf32> to vector<8x8x8xf32>
    %57 = arith.subf %53, %56 : vector<8x8x8xf32>
    %58 = math.exp %57 : vector<8x8x8xf32>
    %cst_19 = arith.constant dense<0.000000e+00> : vector<8x8xf32>
    %59 = vector.multi_reduction <add>, %58, %cst_19 [2] : vector<8x8x8xf32> to vector<8x8xf32>
    %60 = vector.shape_cast %59 : vector<8x8xf32> to vector<8x8x1xf32>
    %61 = tpu.reciprocal %60 {approx = true} : vector<8x8x1xf32> -> vector<8x8x1xf32>
    %62 = vector.broadcast %61 : vector<8x8x1xf32> to vector<8x8x8xf32>
    %63 = arith.mulf %58, %62 : vector<8x8x8xf32>
    "tpu.trace_start"() <{level = 10 : i32, message = "bqk,bkd->bqd"}> : () -> ()
    %cst_20 = arith.constant dense<0.000000e+00> : vector<8x8x8xf32>
    %64 = tpu.matmul %63, %49, %cst_20 {dimension_numbers = #tpu.dot_dimension_numbers<[2], [1], [1], [2], [0, 0, 0, 1, 1, 2], [0], [0]>} : vector<8x8x8xf32>, vector<8x8x8xf32>, vector<8x8x8xf32> -> vector<8x8x8xf32>
    "tpu.trace_stop"() : () -> ()
    %65 = vector.extract_strided_slice %64 {offsets = [0, 0, 0], sizes = [2, 8, 8], strides = [1, 1, 1]} : vector<8x8x8xf32> to vector<2x8x8xf32>
    %66 = vector.shape_cast %65 : vector<2x8x8xf32> to vector<16x8xf32>
    %67 = vector.extract_strided_slice %64 {offsets = [2, 0, 0], sizes = [2, 8, 8], strides = [1, 1, 1]} : vector<8x8x8xf32> to vector<2x8x8xf32>
    %68 = vector.shape_cast %67 : vector<2x8x8xf32> to vector<16x8xf32>
    %69 = vector.extract_strided_slice %64 {offsets = [4, 0, 0], sizes = [2, 8, 8], strides = [1, 1, 1]} : vector<8x8x8xf32> to vector<2x8x8xf32>
    %70 = vector.shape_cast %69 : vector<2x8x8xf32> to vector<16x8xf32>
    %71 = vector.extract_strided_slice %64 {offsets = [6, 0, 0], sizes = [2, 8, 8], strides = [1, 1, 1]} : vector<8x8x8xf32> to vector<2x8x8xf32>
    %72 = vector.shape_cast %71 : vector<2x8x8xf32> to vector<16x8xf32>
    %73 = tpu.concatenate %66, %68, %70, %72 in 1 : vector<16x8xf32>, vector<16x8xf32>, vector<16x8xf32>, vector<16x8xf32> -> vector<16x32xf32>
    %74 = arith.truncf %73 : vector<16x32xf32> to vector<16x32xbf16>
    %c192 = arith.constant 192 : index
    %c0_21 = arith.constant 0 : index
    %75 = vector.load %arg4[%c192, %c0_21] : memref<704x128xbf16, #tpu.memory_space<vmem>>, vector<32x32xbf16>
    %cst_22 = arith.constant dense<0.000000e+00> : vector<16x32xf32>
    %76 = tpu.matmul %74, %75, %cst_22 {dimension_numbers = #tpu.dot_dimension_numbers<[1], [0], [0], [1], [0, 0, 1, 1], [], []>} : vector<16x32xbf16>, vector<32x32xbf16>, vector<16x32xf32> -> vector<16x32xf32>
    %77 = arith.addf %10, %76 : vector<16x32xf32>
    %78 = arith.mulf %77, %77 : vector<16x32xf32>
    %cst_23 = arith.constant dense<0.000000e+00> : vector<16xf32>
    %79 = vector.multi_reduction <add>, %78, %cst_23 [1] : vector<16x32xf32> to vector<16xf32>
    %80 = vector.shape_cast %79 : vector<16xf32> to vector<16x1xf32>
    %cst_24 = arith.constant 3.200000e+01 : f32
    %81 = vector.broadcast %cst_24 : f32 to vector<16x1xf32>
    %82 = arith.divf %80, %81 : vector<16x1xf32>
    %cst_25 = arith.constant 9.99999997E-7 : f32
    %83 = vector.broadcast %cst_25 : f32 to vector<16x1xf32>
    %84 = arith.addf %82, %83 : vector<16x1xf32>
    %85 = math.rsqrt %84 : vector<16x1xf32>
    %86 = vector.broadcast %85 : vector<16x1xf32> to vector<16x32xf32>
    %87 = arith.mulf %77, %86 : vector<16x32xf32>
    %88 = vector.extract_strided_slice %0 {offsets = [1, 0], sizes = [1, 32], strides = [1, 1]} : vector<8x32xf32> to vector<1x32xf32>
    %89 = vector.shape_cast %88 : vector<1x32xf32> to vector<32xf32>
    %90 = vector.shape_cast %89 : vector<32xf32> to vector<1x32xf32>
    %91 = vector.broadcast %90 : vector<1x32xf32> to vector<16x32xf32>
    %92 = arith.mulf %87, %91 : vector<16x32xf32>
    %93 = arith.truncf %92 : vector<16x32xf32> to vector<16x32xbf16>
    %c224 = arith.constant 224 : index
    %c0_26 = arith.constant 0 : index
    %94 = vector.load %arg4[%c224, %c0_26] : memref<704x128xbf16, #tpu.memory_space<vmem>>, vector<32x128xbf16>
    %cst_27 = arith.constant dense<0.000000e+00> : vector<16x128xf32>
    %95 = tpu.matmul %93, %94, %cst_27 {dimension_numbers = #tpu.dot_dimension_numbers<[1], [0], [0], [1], [0, 0, 1, 1], [], []>} : vector<16x32xbf16>, vector<32x128xbf16>, vector<16x128xf32> -> vector<16x128xf32>
    %cst_28 = arith.constant 0.000000e+00 : f32
    %96 = vector.broadcast %cst_28 : f32 to vector<16x128xf32>
    %97 = arith.maximumf %95, %96 : vector<16x128xf32>
    %98 = arith.truncf %97 : vector<16x128xf32> to vector<16x128xbf16>
    %c256 = arith.constant 256 : index
    %c0_29 = arith.constant 0 : index
    %99 = vector.load %arg4[%c256, %c0_29] : memref<704x128xbf16, #tpu.memory_space<vmem>>, vector<128x32xbf16>
    %cst_30 = arith.constant dense<0.000000e+00> : vector<16x32xf32>
    %100 = tpu.matmul %98, %99, %cst_30 {dimension_numbers = #tpu.dot_dimension_numbers<[1], [0], [0], [1], [0, 0, 1, 1], [], []>} : vector<16x128xbf16>, vector<128x32xbf16>, vector<16x32xf32> -> vector<16x32xf32>
    %101 = arith.addf %77, %100 : vector<16x32xf32>
    %102 = arith.mulf %101, %101 : vector<16x32xf32>
    %cst_31 = arith.constant dense<0.000000e+00> : vector<16xf32>
    %103 = vector.multi_reduction <add>, %102, %cst_31 [1] : vector<16x32xf32> to vector<16xf32>
    %104 = vector.shape_cast %103 : vector<16xf32> to vector<16x1xf32>
    %cst_32 = arith.constant 3.200000e+01 : f32
    %105 = vector.broadcast %cst_32 : f32 to vector<16x1xf32>
    %106 = arith.divf %104, %105 : vector<16x1xf32>
    %cst_33 = arith.constant 9.99999997E-7 : f32
    %107 = vector.broadcast %cst_33 : f32 to vector<16x1xf32>
    %108 = arith.addf %106, %107 : vector<16x1xf32>
    %109 = math.rsqrt %108 : vector<16x1xf32>
    %110 = vector.broadcast %109 : vector<16x1xf32> to vector<16x32xf32>
    %111 = arith.mulf %101, %110 : vector<16x32xf32>
    %112 = vector.extract_strided_slice %0 {offsets = [2, 0], sizes = [1, 32], strides = [1, 1]} : vector<8x32xf32> to vector<1x32xf32>
    %113 = vector.shape_cast %112 : vector<1x32xf32> to vector<32xf32>
    %114 = vector.shape_cast %113 : vector<32xf32> to vector<1x32xf32>
    %115 = vector.broadcast %114 : vector<1x32xf32> to vector<16x32xf32>
    %116 = arith.mulf %111, %115 : vector<16x32xf32>
    %117 = arith.truncf %116 : vector<16x32xf32> to vector<16x32xbf16>
    %118 = arith.mulf %11, %11 : vector<16x32xf32>
    %cst_34 = arith.constant dense<0.000000e+00> : vector<16xf32>
    %119 = vector.multi_reduction <add>, %118, %cst_34 [1] : vector<16x32xf32> to vector<16xf32>
    %120 = vector.shape_cast %119 : vector<16xf32> to vector<16x1xf32>
    %cst_35 = arith.constant 3.200000e+01 : f32
    %121 = vector.broadcast %cst_35 : f32 to vector<16x1xf32>
    %122 = arith.divf %120, %121 : vector<16x1xf32>
    %cst_36 = arith.constant 9.99999997E-7 : f32
    %123 = vector.broadcast %cst_36 : f32 to vector<16x1xf32>
    %124 = arith.addf %122, %123 : vector<16x1xf32>
    %125 = math.rsqrt %124 : vector<16x1xf32>
    %126 = vector.broadcast %125 : vector<16x1xf32> to vector<16x32xf32>
    %127 = arith.mulf %11, %126 : vector<16x32xf32>
    %128 = vector.extract_strided_slice %0 {offsets = [3, 0], sizes = [1, 32], strides = [1, 1]} : vector<8x32xf32> to vector<1x32xf32>
    %129 = vector.shape_cast %128 : vector<1x32xf32> to vector<32xf32>
    %130 = vector.shape_cast %129 : vector<32xf32> to vector<1x32xf32>
    %131 = vector.broadcast %130 : vector<1x32xf32> to vector<16x32xf32>
    %132 = arith.mulf %127, %131 : vector<16x32xf32>
    %133 = arith.truncf %132 : vector<16x32xf32> to vector<16x32xbf16>
    %c384 = arith.constant 384 : index
    %c0_37 = arith.constant 0 : index
    %134 = vector.load %arg4[%c384, %c0_37] : memref<704x128xbf16, #tpu.memory_space<vmem>>, vector<32x128xbf16>
    %cst_38 = arith.constant dense<0.000000e+00> : vector<16x128xf32>
    %135 = tpu.matmul %133, %134, %cst_38 {dimension_numbers = #tpu.dot_dimension_numbers<[1], [0], [0], [1], [0, 0, 1, 1], [], []>} : vector<16x32xbf16>, vector<32x128xbf16>, vector<16x128xf32> -> vector<16x128xf32>
    %136 = vector.extract_strided_slice %135 {offsets = [0, 0], sizes = [16, 24], strides = [1, 1]} : vector<16x128xf32> to vector<16x24xf32>
    %137 = vector.extract_strided_slice %135 {offsets = [0, 24], sizes = [16, 24], strides = [1, 1]} : vector<16x128xf32> to vector<16x24xf32>
    %138 = vector.extract_strided_slice %135 {offsets = [0, 48], sizes = [16, 24], strides = [1, 1]} : vector<16x128xf32> to vector<16x24xf32>
    %139 = vector.extract_strided_slice %135 {offsets = [0, 72], sizes = [16, 24], strides = [1, 1]} : vector<16x128xf32> to vector<16x24xf32>
    %140 = tpu.concatenate %136, %137, %138, %139 in 0 : vector<16x24xf32>, vector<16x24xf32>, vector<16x24xf32>, vector<16x24xf32> -> vector<64x24xf32>
    %141 = vector.shape_cast %140 : vector<64x24xf32> to vector<8x8x24xf32>
    %142 = vector.extract_strided_slice %141 {offsets = [0, 0, 0], sizes = [8, 8, 8], strides = [1, 1, 1]} : vector<8x8x24xf32> to vector<8x8x8xf32>
    %143 = vector.extract_strided_slice %141 {offsets = [0, 0, 8], sizes = [8, 8, 8], strides = [1, 1, 1]} : vector<8x8x24xf32> to vector<8x8x8xf32>
    %144 = vector.extract_strided_slice %141 {offsets = [0, 0, 16], sizes = [8, 8, 8], strides = [1, 1, 1]} : vector<8x8x24xf32> to vector<8x8x8xf32>
    %c0_39 = arith.constant 0 : index
    %c0_40 = arith.constant 0 : index
    %c0_41 = arith.constant 0 : index
    %145 = vector.load %arg3[%c0_39, %c0_40, %c0_41] : memref<4x8x8xf32, #tpu.memory_space<vmem>>, vector<4x8x8xf32>
    %146 = vector.shape_cast %145 : vector<4x8x8xf32> to vector<4x1x8x8xf32>
    "tpu.trace_start"() <{level = 10 : i32, message = "bqd,bkd->bqk"}> : () -> ()
    %cst_42 = arith.constant dense<0.000000e+00> : vector<8x8x8xf32>
    %147 = tpu.matmul %142, %143, %cst_42 {dimension_numbers = #tpu.dot_dimension_numbers<[2], [2], [1], [1], [0, 0, 0, 1, 1, 1], [0], [0]>} : vector<8x8x8xf32>, vector<8x8x8xf32>, vector<8x8x8xf32> -> vector<8x8x8xf32>
    "tpu.trace_stop"() : () -> ()
    %148 = vector.shape_cast %147 : vector<8x8x8xf32> to vector<4x2x8x8xf32>
    %149 = vector.broadcast %146 : vector<4x1x8x8xf32> to vector<4x2x8x8xf32>
    %150 = arith.addf %148, %149 : vector<4x2x8x8xf32>
    %151 = vector.shape_cast %150 : vector<4x2x8x8xf32> to vector<8x8x8xf32>
    %cst_43 = arith.constant dense<0xFF800000> : vector<8x8xf32>
    %152 = vector.multi_reduction <maximumf>, %151, %cst_43 [2] : vector<8x8x8xf32> to vector<8x8xf32>
    %153 = vector.shape_cast %152 : vector<8x8xf32> to vector<8x8x1xf32>
    %154 = vector.broadcast %153 : vector<8x8x1xf32> to vector<8x8x8xf32>
    %155 = arith.subf %151, %154 : vector<8x8x8xf32>
    %156 = math.exp %155 : vector<8x8x8xf32>
    %cst_44 = arith.constant dense<0.000000e+00> : vector<8x8xf32>
    %157 = vector.multi_reduction <add>, %156, %cst_44 [2] : vector<8x8x8xf32> to vector<8x8xf32>
    %158 = vector.shape_cast %157 : vector<8x8xf32> to vector<8x8x1xf32>
    %159 = tpu.reciprocal %158 {approx = true} : vector<8x8x1xf32> -> vector<8x8x1xf32>
    %160 = vector.broadcast %159 : vector<8x8x1xf32> to vector<8x8x8xf32>
    %161 = arith.mulf %156, %160 : vector<8x8x8xf32>
    "tpu.trace_start"() <{level = 10 : i32, message = "bqk,bkd->bqd"}> : () -> ()
    %cst_45 = arith.constant dense<0.000000e+00> : vector<8x8x8xf32>
    %162 = tpu.matmul %161, %144, %cst_45 {dimension_numbers = #tpu.dot_dimension_numbers<[2], [1], [1], [2], [0, 0, 0, 1, 1, 2], [0], [0]>} : vector<8x8x8xf32>, vector<8x8x8xf32>, vector<8x8x8xf32> -> vector<8x8x8xf32>
    "tpu.trace_stop"() : () -> ()
    %163 = vector.extract_strided_slice %162 {offsets = [0, 0, 0], sizes = [2, 8, 8], strides = [1, 1, 1]} : vector<8x8x8xf32> to vector<2x8x8xf32>
    %164 = vector.shape_cast %163 : vector<2x8x8xf32> to vector<16x8xf32>
    %165 = vector.extract_strided_slice %162 {offsets = [2, 0, 0], sizes = [2, 8, 8], strides = [1, 1, 1]} : vector<8x8x8xf32> to vector<2x8x8xf32>
    %166 = vector.shape_cast %165 : vector<2x8x8xf32> to vector<16x8xf32>
    %167 = vector.extract_strided_slice %162 {offsets = [4, 0, 0], sizes = [2, 8, 8], strides = [1, 1, 1]} : vector<8x8x8xf32> to vector<2x8x8xf32>
    %168 = vector.shape_cast %167 : vector<2x8x8xf32> to vector<16x8xf32>
    %169 = vector.extract_strided_slice %162 {offsets = [6, 0, 0], sizes = [2, 8, 8], strides = [1, 1, 1]} : vector<8x8x8xf32> to vector<2x8x8xf32>
    %170 = vector.shape_cast %169 : vector<2x8x8xf32> to vector<16x8xf32>
    %171 = tpu.concatenate %164, %166, %168, %170 in 1 : vector<16x8xf32>, vector<16x8xf32>, vector<16x8xf32>, vector<16x8xf32> -> vector<16x32xf32>
    %172 = arith.truncf %171 : vector<16x32xf32> to vector<16x32xbf16>
    %c416 = arith.constant 416 : index
    %c0_46 = arith.constant 0 : index
    %173 = vector.load %arg4[%c416, %c0_46] : memref<704x128xbf16, #tpu.memory_space<vmem>>, vector<32x32xbf16>
    %cst_47 = arith.constant dense<0.000000e+00> : vector<16x32xf32>
    %174 = tpu.matmul %172, %173, %cst_47 {dimension_numbers = #tpu.dot_dimension_numbers<[1], [0], [0], [1], [0, 0, 1, 1], [], []>} : vector<16x32xbf16>, vector<32x32xbf16>, vector<16x32xf32> -> vector<16x32xf32>
    %175 = arith.addf %11, %174 : vector<16x32xf32>
    %176 = arith.mulf %175, %175 : vector<16x32xf32>
    %cst_48 = arith.constant dense<0.000000e+00> : vector<16xf32>
    %177 = vector.multi_reduction <add>, %176, %cst_48 [1] : vector<16x32xf32> to vector<16xf32>
    %178 = vector.shape_cast %177 : vector<16xf32> to vector<16x1xf32>
    %cst_49 = arith.constant 3.200000e+01 : f32
    %179 = vector.broadcast %cst_49 : f32 to vector<16x1xf32>
    %180 = arith.divf %178, %179 : vector<16x1xf32>
    %cst_50 = arith.constant 9.99999997E-7 : f32
    %181 = vector.broadcast %cst_50 : f32 to vector<16x1xf32>
    %182 = arith.addf %180, %181 : vector<16x1xf32>
    %183 = math.rsqrt %182 : vector<16x1xf32>
    %184 = vector.broadcast %183 : vector<16x1xf32> to vector<16x32xf32>
    %185 = arith.mulf %175, %184 : vector<16x32xf32>
    %186 = vector.extract_strided_slice %0 {offsets = [4, 0], sizes = [1, 32], strides = [1, 1]} : vector<8x32xf32> to vector<1x32xf32>
    %187 = vector.shape_cast %186 : vector<1x32xf32> to vector<32xf32>
    %188 = vector.shape_cast %187 : vector<32xf32> to vector<1x32xf32>
    %189 = vector.broadcast %188 : vector<1x32xf32> to vector<16x32xf32>
    %190 = arith.mulf %185, %189 : vector<16x32xf32>
    %191 = arith.truncf %190 : vector<16x32xf32> to vector<16x32xbf16>
    %c448 = arith.constant 448 : index
    %c0_51 = arith.constant 0 : index
    %192 = vector.load %arg4[%c448, %c0_51] : memref<704x128xbf16, #tpu.memory_space<vmem>>, vector<32x128xbf16>
    %cst_52 = arith.constant dense<0.000000e+00> : vector<16x128xf32>
    %193 = tpu.matmul %191, %192, %cst_52 {dimension_numbers = #tpu.dot_dimension_numbers<[1], [0], [0], [1], [0, 0, 1, 1], [], []>} : vector<16x32xbf16>, vector<32x128xbf16>, vector<16x128xf32> -> vector<16x128xf32>
    %c480 = arith.constant 480 : index
    %c0_53 = arith.constant 0 : index
    %194 = vector.load %arg4[%c480, %c0_53] : memref<704x128xbf16, #tpu.memory_space<vmem>>, vector<32x128xbf16>
    %cst_54 = arith.constant dense<0.000000e+00> : vector<16x128xf32>
    %195 = tpu.matmul %117, %194, %cst_54 {dimension_numbers = #tpu.dot_dimension_numbers<[1], [0], [0], [1], [0, 0, 1, 1], [], []>} : vector<16x32xbf16>, vector<32x128xbf16>, vector<16x128xf32> -> vector<16x128xf32>
    %196 = vector.extract_strided_slice %193 {offsets = [0, 0], sizes = [16, 8], strides = [1, 1]} : vector<16x128xf32> to vector<16x8xf32>
    %197 = vector.extract_strided_slice %193 {offsets = [0, 8], sizes = [16, 8], strides = [1, 1]} : vector<16x128xf32> to vector<16x8xf32>
    %198 = vector.extract_strided_slice %193 {offsets = [0, 16], sizes = [16, 8], strides = [1, 1]} : vector<16x128xf32> to vector<16x8xf32>
    %199 = vector.extract_strided_slice %193 {offsets = [0, 24], sizes = [16, 8], strides = [1, 1]} : vector<16x128xf32> to vector<16x8xf32>
    %200 = tpu.concatenate %196, %197, %198, %199 in 0 : vector<16x8xf32>, vector<16x8xf32>, vector<16x8xf32>, vector<16x8xf32> -> vector<64x8xf32>
    %201 = vector.shape_cast %200 : vector<64x8xf32> to vector<8x8x8xf32>
    %202 = vector.extract_strided_slice %195 {offsets = [0, 0], sizes = [16, 16], strides = [1, 1]} : vector<16x128xf32> to vector<16x16xf32>
    %203 = vector.extract_strided_slice %195 {offsets = [0, 16], sizes = [16, 16], strides = [1, 1]} : vector<16x128xf32> to vector<16x16xf32>
    %204 = vector.extract_strided_slice %195 {offsets = [0, 32], sizes = [16, 16], strides = [1, 1]} : vector<16x128xf32> to vector<16x16xf32>
    %205 = vector.extract_strided_slice %195 {offsets = [0, 48], sizes = [16, 16], strides = [1, 1]} : vector<16x128xf32> to vector<16x16xf32>
    %206 = tpu.concatenate %202, %203, %204, %205 in 0 : vector<16x16xf32>, vector<16x16xf32>, vector<16x16xf32>, vector<16x16xf32> -> vector<64x16xf32>
    %207 = vector.shape_cast %206 : vector<64x16xf32> to vector<8x8x16xf32>
    %208 = vector.extract_strided_slice %207 {offsets = [0, 0, 0], sizes = [8, 8, 8], strides = [1, 1, 1]} : vector<8x8x16xf32> to vector<8x8x8xf32>
    %209 = vector.extract_strided_slice %207 {offsets = [0, 0, 8], sizes = [8, 8, 8], strides = [1, 1, 1]} : vector<8x8x16xf32> to vector<8x8x8xf32>
    %210 = vector.shape_cast %16 : vector<2x8xf32> to vector<1x2x1x8xf32>
    "tpu.trace_start"() <{level = 10 : i32, message = "bqd,bkd->bqk"}> : () -> ()
    %cst_55 = arith.constant dense<0.000000e+00> : vector<8x8x8xf32>
    %211 = tpu.matmul %201, %208, %cst_55 {dimension_numbers = #tpu.dot_dimension_numbers<[2], [2], [1], [1], [0, 0, 0, 1, 1, 1], [0], [0]>} : vector<8x8x8xf32>, vector<8x8x8xf32>, vector<8x8x8xf32> -> vector<8x8x8xf32>
    "tpu.trace_stop"() : () -> ()
    %212 = vector.shape_cast %211 : vector<8x8x8xf32> to vector<4x2x8x8xf32>
    %213 = vector.broadcast %210 : vector<1x2x1x8xf32> to vector<4x2x8x8xf32>
    %214 = arith.addf %212, %213 : vector<4x2x8x8xf32>
    %215 = vector.shape_cast %214 : vector<4x2x8x8xf32> to vector<8x8x8xf32>
    %cst_56 = arith.constant dense<0xFF800000> : vector<8x8xf32>
    %216 = vector.multi_reduction <maximumf>, %215, %cst_56 [2] : vector<8x8x8xf32> to vector<8x8xf32>
    %217 = vector.shape_cast %216 : vector<8x8xf32> to vector<8x8x1xf32>
    %218 = vector.broadcast %217 : vector<8x8x1xf32> to vector<8x8x8xf32>
    %219 = arith.subf %215, %218 : vector<8x8x8xf32>
    %220 = math.exp %219 : vector<8x8x8xf32>
    %cst_57 = arith.constant dense<0.000000e+00> : vector<8x8xf32>
    %221 = vector.multi_reduction <add>, %220, %cst_57 [2] : vector<8x8x8xf32> to vector<8x8xf32>
    %222 = vector.shape_cast %221 : vector<8x8xf32> to vector<8x8x1xf32>
    %223 = tpu.reciprocal %222 {approx = true} : vector<8x8x1xf32> -> vector<8x8x1xf32>
    %224 = vector.broadcast %223 : vector<8x8x1xf32> to vector<8x8x8xf32>
    %225 = arith.mulf %220, %224 : vector<8x8x8xf32>
    "tpu.trace_start"() <{level = 10 : i32, message = "bqk,bkd->bqd"}> : () -> ()
    %cst_58 = arith.constant dense<0.000000e+00> : vector<8x8x8xf32>
    %226 = tpu.matmul %225, %209, %cst_58 {dimension_numbers = #tpu.dot_dimension_numbers<[2], [1], [1], [2], [0, 0, 0, 1, 1, 2], [0], [0]>} : vector<8x8x8xf32>, vector<8x8x8xf32>, vector<8x8x8xf32> -> vector<8x8x8xf32>
    "tpu.trace_stop"() : () -> ()
    %227 = vector.extract_strided_slice %226 {offsets = [0, 0, 0], sizes = [2, 8, 8], strides = [1, 1, 1]} : vector<8x8x8xf32> to vector<2x8x8xf32>
    %228 = vector.shape_cast %227 : vector<2x8x8xf32> to vector<16x8xf32>
    %229 = vector.extract_strided_slice %226 {offsets = [2, 0, 0], sizes = [2, 8, 8], strides = [1, 1, 1]} : vector<8x8x8xf32> to vector<2x8x8xf32>
    %230 = vector.shape_cast %229 : vector<2x8x8xf32> to vector<16x8xf32>
    %231 = vector.extract_strided_slice %226 {offsets = [4, 0, 0], sizes = [2, 8, 8], strides = [1, 1, 1]} : vector<8x8x8xf32> to vector<2x8x8xf32>
    %232 = vector.shape_cast %231 : vector<2x8x8xf32> to vector<16x8xf32>
    %233 = vector.extract_strided_slice %226 {offsets = [6, 0, 0], sizes = [2, 8, 8], strides = [1, 1, 1]} : vector<8x8x8xf32> to vector<2x8x8xf32>
    %234 = vector.shape_cast %233 : vector<2x8x8xf32> to vector<16x8xf32>
    %235 = tpu.concatenate %228, %230, %232, %234 in 1 : vector<16x8xf32>, vector<16x8xf32>, vector<16x8xf32>, vector<16x8xf32> -> vector<16x32xf32>
    %236 = arith.truncf %235 : vector<16x32xf32> to vector<16x32xbf16>
    %c512 = arith.constant 512 : index
    %c0_59 = arith.constant 0 : index
    %237 = vector.load %arg4[%c512, %c0_59] : memref<704x128xbf16, #tpu.memory_space<vmem>>, vector<32x32xbf16>
    %cst_60 = arith.constant dense<0.000000e+00> : vector<16x32xf32>
    %238 = tpu.matmul %236, %237, %cst_60 {dimension_numbers = #tpu.dot_dimension_numbers<[1], [0], [0], [1], [0, 0, 1, 1], [], []>} : vector<16x32xbf16>, vector<32x32xbf16>, vector<16x32xf32> -> vector<16x32xf32>
    %239 = arith.addf %175, %238 : vector<16x32xf32>
    %240 = arith.mulf %239, %239 : vector<16x32xf32>
    %cst_61 = arith.constant dense<0.000000e+00> : vector<16xf32>
    %241 = vector.multi_reduction <add>, %240, %cst_61 [1] : vector<16x32xf32> to vector<16xf32>
    %242 = vector.shape_cast %241 : vector<16xf32> to vector<16x1xf32>
    %cst_62 = arith.constant 3.200000e+01 : f32
    %243 = vector.broadcast %cst_62 : f32 to vector<16x1xf32>
    %244 = arith.divf %242, %243 : vector<16x1xf32>
    %cst_63 = arith.constant 9.99999997E-7 : f32
    %245 = vector.broadcast %cst_63 : f32 to vector<16x1xf32>
    %246 = arith.addf %244, %245 : vector<16x1xf32>
    %247 = math.rsqrt %246 : vector<16x1xf32>
    %248 = vector.broadcast %247 : vector<16x1xf32> to vector<16x32xf32>
    %249 = arith.mulf %239, %248 : vector<16x32xf32>
    %250 = vector.extract_strided_slice %0 {offsets = [5, 0], sizes = [1, 32], strides = [1, 1]} : vector<8x32xf32> to vector<1x32xf32>
    %251 = vector.shape_cast %250 : vector<1x32xf32> to vector<32xf32>
    %252 = vector.shape_cast %251 : vector<32xf32> to vector<1x32xf32>
    %253 = vector.broadcast %252 : vector<1x32xf32> to vector<16x32xf32>
    %254 = arith.mulf %249, %253 : vector<16x32xf32>
    %255 = arith.truncf %254 : vector<16x32xf32> to vector<16x32xbf16>
    %c544 = arith.constant 544 : index
    %c0_64 = arith.constant 0 : index
    %256 = vector.load %arg4[%c544, %c0_64] : memref<704x128xbf16, #tpu.memory_space<vmem>>, vector<32x128xbf16>
    %cst_65 = arith.constant dense<0.000000e+00> : vector<16x128xf32>
    %257 = tpu.matmul %255, %256, %cst_65 {dimension_numbers = #tpu.dot_dimension_numbers<[1], [0], [0], [1], [0, 0, 1, 1], [], []>} : vector<16x32xbf16>, vector<32x128xbf16>, vector<16x128xf32> -> vector<16x128xf32>
    %cst_66 = arith.constant 0.000000e+00 : f32
    %258 = vector.broadcast %cst_66 : f32 to vector<16x128xf32>
    %259 = arith.maximumf %257, %258 : vector<16x128xf32>
    %260 = arith.truncf %259 : vector<16x128xf32> to vector<16x128xbf16>
    %c576 = arith.constant 576 : index
    %c0_67 = arith.constant 0 : index
    %261 = vector.load %arg4[%c576, %c0_67] : memref<704x128xbf16, #tpu.memory_space<vmem>>, vector<128x32xbf16>
    %cst_68 = arith.constant dense<0.000000e+00> : vector<16x32xf32>
    %262 = tpu.matmul %260, %261, %cst_68 {dimension_numbers = #tpu.dot_dimension_numbers<[1], [0], [0], [1], [0, 0, 1, 1], [], []>} : vector<16x128xbf16>, vector<128x32xbf16>, vector<16x32xf32> -> vector<16x32xf32>
    %263 = arith.addf %239, %262 : vector<16x32xf32>
    %264 = arith.mulf %263, %263 : vector<16x32xf32>
    %cst_69 = arith.constant dense<0.000000e+00> : vector<16xf32>
    %265 = vector.multi_reduction <add>, %264, %cst_69 [1] : vector<16x32xf32> to vector<16xf32>
    %266 = vector.shape_cast %265 : vector<16xf32> to vector<16x1xf32>
    %cst_70 = arith.constant 3.200000e+01 : f32
    %267 = vector.broadcast %cst_70 : f32 to vector<16x1xf32>
    %268 = arith.divf %266, %267 : vector<16x1xf32>
    %cst_71 = arith.constant 9.99999997E-7 : f32
    %269 = vector.broadcast %cst_71 : f32 to vector<16x1xf32>
    %270 = arith.addf %268, %269 : vector<16x1xf32>
    %271 = math.rsqrt %270 : vector<16x1xf32>
    %272 = vector.broadcast %271 : vector<16x1xf32> to vector<16x32xf32>
    %273 = arith.mulf %263, %272 : vector<16x32xf32>
    %274 = vector.extract_strided_slice %0 {offsets = [6, 0], sizes = [1, 32], strides = [1, 1]} : vector<8x32xf32> to vector<1x32xf32>
    %275 = vector.shape_cast %274 : vector<1x32xf32> to vector<32xf32>
    %276 = vector.shape_cast %275 : vector<32xf32> to vector<1x32xf32>
    %277 = vector.broadcast %276 : vector<1x32xf32> to vector<16x32xf32>
    %278 = arith.mulf %273, %277 : vector<16x32xf32>
    %279 = arith.truncf %278 : vector<16x32xf32> to vector<16x32xbf16>
    %c128 = arith.constant 128 : index
    %c0_72 = arith.constant 0 : index
    %280 = vector.load %arg4[%c128, %c0_72] : memref<704x128xbf16, #tpu.memory_space<vmem>>, vector<32x128xbf16>
    %cst_73 = arith.constant dense<0.000000e+00> : vector<16x128xf32>
    %281 = tpu.matmul %279, %280, %cst_73 {dimension_numbers = #tpu.dot_dimension_numbers<[1], [0], [0], [1], [0, 0, 1, 1], [], []>} : vector<16x32xbf16>, vector<32x128xbf16>, vector<16x128xf32> -> vector<16x128xf32>
    %c0_74 = arith.constant 0 : index
    %c0_75 = arith.constant 0 : index
    %282 = vector.load %arg6[%c0_74, %c0_75] : memref<16x128xf32, #tpu.memory_space<vmem>>, vector<16x128xf32>
    tpu.vector_store %arg6[%c0_74, %c0_75], %281 {strides = array<i32>} : memref<16x128xf32, #tpu.memory_space<vmem>>, vector<16x128xf32>,
    %c32 = arith.constant 32 : index
    %c0_76 = arith.constant 0 : index
    %283 = vector.load %arg0[%c32, %c0_76] : memref<48x1xi32, #tpu.memory_space<vmem>>, vector<16x1xi32>
    %cst_77 = arith.constant dense<0xFF800000> : vector<16xf32>
    %284 = vector.multi_reduction <maximumf>, %281, %cst_77 [1] : vector<16x128xf32> to vector<16xf32>
    %285 = vector.shape_cast %284 : vector<16xf32> to vector<16x1xf32>
    %286 = vector.broadcast %285 : vector<16x1xf32> to vector<16x128xf32>
    %287 = arith.subf %281, %286 : vector<16x128xf32>
    %288 = math.exp %287 : vector<16x128xf32>
    %cst_78 = arith.constant dense<0.000000e+00> : vector<16xf32>
    %289 = vector.multi_reduction <add>, %288, %cst_78 [1] : vector<16x128xf32> to vector<16xf32>
    %290 = vector.shape_cast %289 : vector<16xf32> to vector<16x1xf32>
    %291 = math.log %290 : vector<16x1xf32>
    %292 = arith.addf %285, %291 : vector<16x1xf32>
    %293 = tpu.iota {dimensions = array<i32: 1>} : vector<16x128xi32>
    %294 = vector.broadcast %283 : vector<16x1xi32> to vector<16x128xi32>
    %295 = arith.cmpi eq, %293, %294 : vector<16x128xi32>
    %296 = arith.extui %295 : vector<16x128xi1> to vector<16x128xi32>
    %297 = arith.sitofp %296 : vector<16x128xi32> to vector<16x128xf32>
    %298 = arith.mulf %281, %297 : vector<16x128xf32>
    %cst_79 = arith.constant dense<0.000000e+00> : vector<16xf32>
    %299 = vector.multi_reduction <add>, %298, %cst_79 [1] : vector<16x128xf32> to vector<16xf32>
    %300 = vector.shape_cast %299 : vector<16xf32> to vector<16x1xf32>
    %c-100_i32 = arith.constant -100 : i32
    %301 = vector.broadcast %c-100_i32 : i32 to vector<16x1xi32>
    %302 = arith.cmpi ne, %283, %301 : vector<16x1xi32>
    %303 = arith.extui %302 : vector<16x1xi1> to vector<16x1xi32>
    %304 = arith.sitofp %303 : vector<16x1xi32> to vector<16x1xf32>
    %305 = arith.subf %292, %300 : vector<16x1xf32>
    %306 = arith.mulf %305, %304 : vector<16x1xf32>
    %307 = vector.shape_cast %306 : vector<16x1xf32> to vector<1x16x1xf32>
    %cst_80 = arith.constant dense<0.000000e+00> : vector<1xf32>
    %308 = vector.multi_reduction <add>, %307, %cst_80 [1, 2] : vector<1x16x1xf32> to vector<1xf32>
    %309 = vector.shape_cast %308 : vector<1xf32> to vector<1x1x1xf32>
    %310 = vector.extract %309[0, 0, 0] : f32 from vector<1x1x1xf32>
    %311 = vector.shape_cast %304 : vector<16x1xf32> to vector<1x16x1xf32>
    %cst_81 = arith.constant dense<0.000000e+00> : vector<1xf32>
    %312 = vector.multi_reduction <add>, %311, %cst_81 [1, 2] : vector<1x16x1xf32> to vector<1xf32>
    %313 = vector.shape_cast %312 : vector<1xf32> to vector<1x1x1xf32>
    %314 = vector.extract %313[0, 0, 0] : f32 from vector<1x1x1xf32>
    %cst_82 = arith.constant 1.000000e+00 : f32
    %315 = arith.maximumf %314, %cst_82 : f32
    %316 = arith.divf %310, %315 : f32
    %317 = vector.broadcast %316 : f32 to vector<1x1xf32>
    %c0_83 = arith.constant 0 : index
    %c0_84 = arith.constant 0 : index
    %318 = vector.load %arg7[%c0_83, %c0_84] : memref<1x1xf32, #tpu.memory_space<vmem>>, vector<1x1xf32>
    tpu.vector_store %arg7[%c0_83, %c0_84], %317 {strides = array<i32>} : memref<1x1xf32, #tpu.memory_space<vmem>>, vector<1x1xf32>,
    return
  }
}

</mosaic_0001>

<llo_original>
// kernel: triple2question_forward.1
$region0: #{triple2question_forward.1}
  #allocation0 [shape = 'u32[]', space=smem, size = 0x4, offset = 0x4, fixed_abs, tag = 'smem constant byte address 0x4 - core index']
  #allocation1 [shape = 'u32[144,128]{1,0:T(1,128)}', space=vmem, size = 0x12000, scoped, tag = 'internal scratch']
  %s0 = inlined_call_operand.vmem [shape: s32[48,1], index: 0, kind: input, shape index: {}]
  %s1 = inlined_call_operand.vmem [shape: f32[2,8], index: 1, kind: input, shape index: {}]
  %s2 = inlined_call_operand.vmem [shape: f32[4,8,8], index: 2, kind: input, shape index: {}]
  %s3 = inlined_call_operand.vmem [shape: f32[4,8,8], index: 3, kind: input, shape index: {}]
  %s4 = inlined_call_operand.hbm [shape: bf16[704,128], index: 4, kind: input, shape index: {}]
  %s5 = inlined_call_operand.vmem [shape: f32[8,32], index: 5, kind: input, shape index: {}]
  %s6 = inlined_call_operand.hbm [shape: f32[16,128], index: 6, kind: output, shape index: {0}]
  %s7 = inlined_call_operand.hbm [shape: f32[1,1], index: 7, kind: output, shape index: {1}]
  %8 = xla_tuple %s6, %s7
  %s9 = sld [smem:[#allocation0]]
  $region46: #{triple2question_forward.1} parent=0
    _
  %s11 = ssub.s32 1, %s9
  %s12 = scalar_select 0, %s11, %s9
  $region1: #{triple2question_forward.1} parent=0
    #allocation2 [shape = 'u8[180224]{0}', space=vmem, size = 0x2c000, scoped, tag = 'input window, operand 4, single buffered']
    #allocation3 [shape = 's32[1]{0}', space=sflag, size = 0x4, scoped, tag = 'scoped memory for triple2question_forward.1']
    #allocation4 [shape = 's32[1]{0}', space=sflag, size = 0x4, scoped, tag = 'scoped memory for triple2question_forward.1']
    #allocation5 [shape = 'u8[8192]{0}', space=vmem, size = 0x2000, scoped, tag = 'output window, operand 0, single buffered']
    #allocation6 [shape = 'u8[512]{0}', space=vmem, size = 0x400, scoped, tag = 'output window, operand 1, single buffered']
    #allocation7 [shape = 's32[1]{0}', space=sflag, size = 0x4, scoped, tag = 'scoped memory for triple2question_forward.1']
    %13 = vsyncpa [#allocation3], 0
    %14 = vsyncpa [#allocation4], 0
    %15 = vsyncpa [#allocation7], 0
    // Predicated region
    $region2: #{triple2question_forward.1} parent=1 // pred_check
      _
    $region3: #{triple2question_forward.1} parent=1 // pred_check_branch
      %17 = sbr.rel (0) target = $region5
    $region4: #{triple2question_forward.1} parent=1 // pred_region
      _
    $region5: #{triple2question_forward.1} parent=1 // pred_fallthru
      _
    // Predicated region
    $region6: #{triple2question_forward.1} parent=1 // pred_check
      _
    $region7: #{triple2question_forward.1} parent=1 // pred_check_branch
      %19 = sbr.rel (0) target = $region9
    $region8: #{triple2question_forward.1} parent=1 // pred_region
      _
    $region9: #{triple2question_forward.1} parent=1 // pred_fallthru
      _
    // Predicated region
    $region10: #{triple2question_forward.1} parent=1 // pred_check
      _
    $region11: #{triple2question_forward.1} parent=1 // pred_check_branch
      %21 = sbr.rel (0) target = $region13
    $region12: #{triple2question_forward.1} parent=1 // pred_region
      _
    $region13: #{triple2question_forward.1} parent=1 // pred_fallthru
      _
    // Predicated region
    $region14: #{triple2question_forward.1} parent=1 // pred_check
      _
    $region15: #{triple2question_forward.1} parent=1 // pred_check_branch
      %23 = sbr.rel (0) target = $region17
    $region16: #{triple2question_forward.1} parent=1 // pred_region
      _
    $region17: #{triple2question_forward.1} parent=1 // pred_fallthru
      _
    // Predicated region
    $region18: #{triple2question_forward.1} parent=1 // pred_check
      _
    $region19: #{triple2question_forward.1} parent=1 // pred_check_branch
      %25 = sbr.rel (0) target = $region21
    $region20: #{triple2question_forward.1} parent=1 // pred_region
      %s27 = ssub.s32 5632, 5632
      %28 = vsyncadd [#allocation3], %s27
      %s29 = sshll.u32 [#allocation2], 4
      %s30 = int_to_ptr.vmem [resolvable:$true] %s29
      %35 = dma.hbm_to_vmem [thread:$0]  %s4, 5632, %s30, [#allocation3], 64, 64, 4
    $region21: #{triple2question_forward.1} parent=1 // pred_fallthru
      _
    // Predicated region
    $region22: #{triple2question_forward.1} parent=1 // pred_check
      _
    $region23: #{triple2question_forward.1} parent=1 // pred_check_branch
      %37 = sbr.rel (0) target = $region25
    $region24: #{triple2question_forward.1} parent=1 // pred_region
      _
    $region25: #{triple2question_forward.1} parent=1 // pred_fallthru
      _
    // Predicated region
    $region26: #{triple2question_forward.1} parent=1 // pred_check
      _
    $region27: #{triple2question_forward.1} parent=1 // pred_check_branch
      %39 = sbr.rel (0) target = $region29
    $region28: #{triple2question_forward.1} parent=1 // pred_region
      %40 = dma.done [#allocation3], 5632
    $region29: #{triple2question_forward.1} parent=1 // pred_fallthru
      _
    %v42 = vld [vmem:[%s5] sm:$0xff]
    %v43 = vld [vmem:[%s0] sm:$0xff]
    %v44 = vld [vmem:[%s0 + $0x8] sm:$0xff]
    %v45 = vld [vmem:[%s0 + $0x10] sm:$0xff]
    %v46 = vld [vmem:[%s0 + $0x18] sm:$0xff]
    %v47 = vlaneseq
    %v48 = vand.u32 %v47, 127
    %49 = vset.pattern.permute.xlu0 0
    %50 = vperm.xlu0 %49, %v43
    %v51 = vpop.permute.xlu0 %50
    %52 = vset.pattern.permute.xlu0 0
    %53 = vperm.xlu0 %52, %v44
    %v54 = vpop.permute.xlu0 %53
    %55 = vset.pattern.permute.xlu0 0
    %56 = vperm.xlu0 %55, %v45
    %v57 = vpop.permute.xlu0 %56
    %58 = vset.pattern.permute.xlu0 0
    %59 = vperm.xlu0 %58, %v46
    %v60 = vpop.permute.xlu0 %59
    %vm61 = vcmp.eq.s32.totalorder %v48, %v51
    %vm62 = vcmp.eq.s32.totalorder %v48, %v54
    %vm63 = vcmp.eq.s32.totalorder %v48, %v57
    %vm64 = vcmp.eq.s32.totalorder %v48, %v60
    %v65 = vsel %vm61, 1, 0
    %v66 = vsel %vm62, 1, 0
    %v67 = vsel %vm63, 1, 0
    %v68 = vsel %vm64, 1, 0
    %v69 = vcvt.s32.f32 %v65
    %v70 = vcvt.s32.f32 %v66
    %v71 = vcvt.s32.f32 %v67
    %v72 = vcvt.s32.f32 %v68
    %v73 = vpack.c.bf16 %v70, %v69
    %v74 = vpack.c.bf16 %v72, %v71
    %v75 = vld [vmem:[#allocation2] sm:$0xf]
    %v76 = vld [vmem:[#allocation2 + $0x4] sm:$0xf]
    %v77 = vld [vmem:[#allocation2 + $0x8] sm:$0xf]
    %v78 = vld [vmem:[#allocation2 + $0xc] sm:$0xf]
    %v79 = vld [vmem:[#allocation2 + $0x10] sm:$0xf]
    %v80 = vld [vmem:[#allocation2 + $0x14] sm:$0xf]
    %v81 = vld [vmem:[#allocation2 + $0x18] sm:$0xf]
    %v82 = vld [vmem:[#allocation2 + $0x1c] sm:$0xf]
    %v83 = vld [vmem:[#allocation2 + $0x20] sm:$0xf]
    %v84 = vld [vmem:[#allocation2 + $0x24] sm:$0xf]
    %v85 = vld [vmem:[#allocation2 + $0x28] sm:$0xf]
    %v86 = vld [vmem:[#allocation2 + $0x2c] sm:$0xf]
    %v87 = vld [vmem:[#allocation2 + $0x30] sm:$0xf]
    %v88 = vld [vmem:[#allocation2 + $0x34] sm:$0xf]
    %v89 = vld [vmem:[#allocation2 + $0x38] sm:$0xf]
    %v90 = vld [vmem:[#allocation2 + $0x3c] sm:$0xf]
    %v107 = vunpack.c.l.b16 %v75
    %v108 = vunpack.c.l.b16 %v76
    %v109 = vunpack.c.l.b16 %v77
    %v110 = vunpack.c.l.b16 %v78
    %v111 = vunpack.c.l.b16 %v79
    %v112 = vunpack.c.l.b16 %v80
    %v113 = vunpack.c.l.b16 %v81
    %v114 = vunpack.c.l.b16 %v82
    %v115 = vunpack.c.l.b16 %v83
    %v116 = vunpack.c.l.b16 %v84
    %v117 = vunpack.c.l.b16 %v85
    %v118 = vunpack.c.l.b16 %v86
    %v119 = vunpack.c.l.b16 %v87
    %v120 = vunpack.c.l.b16 %v88
    %v121 = vunpack.c.l.b16 %v89
    %v122 = vunpack.c.l.b16 %v90
    %v123 = vpack.c.b16 %v108, %v107
    %v124 = vpack.c.b16 %v110, %v109
    %v125 = vpack.c.b16 %v112, %v111
    %v126 = vpack.c.b16 %v114, %v113
    %v127 = vpack.c.b16 %v116, %v115
    %v128 = vpack.c.b16 %v118, %v117
    %v129 = vpack.c.b16 %v120, %v119
    %v130 = vpack.c.b16 %v122, %v121
    %139 = vmatprep.subr.bf16.mxu0 0
    %140 = vmatpush1.bf16.msra.mxu0 %v123
    %141 = vmatprep.subr.bf16.mxu0 0
    %142 = vmatpush1.bf16.msra.mxu0 %v124
    %143 = vmatprep.subr.bf16.mxu0 0
    %144 = vmatpush1.bf16.msra.mxu0 %v125
    %145 = vmatprep.subr.bf16.mxu0 0
    %146 = vmatpush1.bf16.msra.mxu0 %v126
    %147 = vmatprep.subr.bf16.mxu0 0
    %148 = vmatpush1.bf16.msra.mxu0 %v127
    %149 = vmatprep.subr.bf16.mxu0 0
    %150 = vmatpush1.bf16.msra.mxu0 %v128
    %151 = vmatprep.subr.bf16.mxu0 0
    %152 = vmatpush1.bf16.msra.mxu0 %v129
    %153 = vmatprep.subr.bf16.mxu0 0
    %154 = vmatpush1.bf16.msra.mxu0 %v130
    %155 = vmatprep.subr.bf16.mxu0 0
    %156 = vmatpush1.bf16.msra.mxu0 0
    %157 = vmatprep.subr.bf16.mxu0 0
    %158 = vmatpush1.bf16.msra.mxu0 0
    %159 = vmatprep.subr.bf16.mxu0 0
    %160 = vmatpush1.bf16.msra.mxu0 0
    %161 = vmatprep.subr.bf16.mxu0 0
    %162 = vmatpush1.bf16.msra.mxu0 0
    %163 = vmatprep.subr.bf16.mxu0 0
    %164 = vmatpush1.bf16.msra.mxu0 0
    %165 = vmatprep.subr.bf16.mxu0 0
    %166 = vmatpush1.bf16.msra.mxu0 0
    %167 = vmatprep.subr.bf16.mxu0 0
    %168 = vmatpush1.bf16.msra.mxu0 0
    %169 = vmatprep.subr.bf16.mxu0 0
    %170 = vmatpush1.bf16.msra.mxu0 0
    %171 = vmatprep.mubr.bf16.mxu0 0
    %172 = vmatmul.mubr.bf16.gmra.mrb[0].mxu0 %v73
    %v173 = vpop.f32.mrb[0].mxu0
    %v174 = vadd.f32 0.0, %v173
    %v175 = vpop.f32.mrb[0].mxu0
    %v176 = vpop.f32.mrb[0].mxu0
    %v177 = vadd.f32 0.0, %v176
    %v178 = vpop.f32.mrb[0].mxu0
    %179 = vmatprep.mubr.bf16.mxu0 0
    %180 = vmatmul.mubr.bf16.gmra.mrb[0].mxu0 %v74
    %v181 = vpop.f32.mrb[0].mxu0
    %v182 = vadd.f32 0.0, %v181
    %v183 = vpop.f32.mrb[0].mxu0
    %v184 = vpop.f32.mrb[0].mxu0
    %v185 = vadd.f32 0.0, %v184
    %v186 = vpop.f32.mrb[0].mxu0
    %187 = vdwg.mxu0
    %v188 = vld [vmem:[%s1] sm:$0x3]
    %v189 = vsub.f32 1.0, %v188
    %v190 = vmul.f32 %v189, -1e+09
    %v191 = vld [vmem:[%s2] sm:$0xff]
    %v192 = vld [vmem:[%s2 + $0x8] sm:$0xff]
    %v193 = vld [vmem:[%s2 + $0x10] sm:$0xff]
    %v194 = vld [vmem:[%s2 + $0x18] sm:$0xff]
    %v197 = vunpack.c.l.s4 1966171168
    %v198 = vunpack.c.0.s8 %v197
    %v199 = vlaneseq
    %v200 = vshrl.u32 %v199, 7
    %v201 = vsub.s32 %v198, %v200
    %v202 = vrot.slane %v190, %v201
    %v203 = vcombine.high %v202, %v202
    %v205 = vunpack.c.l.s4 1966171168
    %v206 = vunpack.c.0.s8 %v205
    %v207 = vlaneseq
    %v208 = vshrl.u32 %v207, 7
    %v209 = vsub.s32 %v206, %v208
    %v210 = vrot.slane %v202, %v209
    %v212 = vunpack.c.l.s4 1966171168
    %v213 = vunpack.c.0.s8 %v212
    %v214 = vlaneseq
    %v215 = vshrl.u32 %v214, 7
    %v216 = vsub.s32 %v213, %v215
    %v217 = vrot.slane %v203, %v216
    %v218 = vlaneseq
    %v219 = vshrl.u32 %v218, 7
    %v220 = vsub.s32 0, %v219
    %v221 = vrot.slane %v210, %v220
    %v222 = vlaneseq
    %v223 = vshrl.u32 %v222, 7
    %v224 = vsub.s32 0, %v223
    %v225 = vrot.slane %v217, %v224
    %v228 = vadd.f32 %v191, %v221
    %v229 = vadd.f32 %v191, %v225
    %v230 = vadd.f32 %v192, %v221
    %v231 = vadd.f32 %v192, %v225
    %v232 = vadd.f32 %v193, %v221
    %v233 = vadd.f32 %v193, %v225
    %v234 = vadd.f32 %v194, %v221
    %v235 = vadd.f32 %v194, %v225
    %v236 = vmul.f32 %v174, %v174
    %v237 = vmul.f32 %v177, %v177
    %vm238 = vcmask 261120
    %v239 = vsel %vm238, %v236, 0.0
    %240 = vadd.xlane.f32.xlu0 %v239
    %v241 = vpop.xlane.xlu0 %240
    %v242 = vsel %vm238, %v237, 0.0
    %243 = vadd.xlane.f32.xlu0 %v242
    %v244 = vpop.xlane.xlu0 %243
    %v245 = vrcp.pop 32.0
    %v246 = vmul.f32 %v241, %v245
    %v247 = vmul.f32 %v244, %v245
    %v248 = vadd.f32 %v246, 1e-06
    %v249 = vadd.f32 %v247, 1e-06
    %v250 = vrsqrt.pop %v248
    %v251 = vrsqrt.pop %v249
    %v252 = vmul.f32 %v174, %v250
    %v253 = vmul.f32 %v177, %v251
    %v254 = vlaneseq
    %v255 = vshrl.u32 %v254, 7
    %v256 = vsub.s32 0, %v255
    %v257 = vrot.slane %v42, %v256
    %v258 = vmul.f32 %v252, %v257
    %v259 = vmul.f32 %v253, %v257
    %v260 = vpack.c.bf16 %v259, %v258
    %v261 = vld [vmem:[#allocation2 + $0x50] sm:$0xf]
    %v262 = vld [vmem:[#allocation2 + $0x54] sm:$0xf]
    %v263 = vld [vmem:[#allocation2 + $0x58] sm:$0xf]
    %v264 = vld [vmem:[#allocation2 + $0x5c] sm:$0xf]
    %v269 = vunpack.c.l.b16 %v261
    %v270 = vunpack.c.l.b16 %v262
    %v271 = vunpack.c.l.b16 %v263
    %v272 = vunpack.c.l.b16 %v264
    %v273 = vpack.c.b16 %v270, %v269
    %v274 = vpack.c.b16 %v272, %v271
    %v278 = vsel %vm238, %v260, 0
    %280 = vmatprep.subr.bf16.mxu0 0
    %281 = vmatpush1.bf16.msra.mxu0 %v273
    %282 = vmatprep.subr.bf16.mxu0 0
    %283 = vmatpush1.bf16.msra.mxu0 %v274
    %284 = vmatprep.subr.bf16.mxu0 0
    %285 = vmatpush1.bf16.msra.mxu0 0
    %286 = vmatprep.subr.bf16.mxu0 0
    %287 = vmatpush1.bf16.msra.mxu0 0
    %288 = vmatprep.subr.bf16.mxu0 0
    %289 = vmatpush1.bf16.msra.mxu0 0
    %290 = vmatprep.subr.bf16.mxu0 0
    %291 = vmatpush1.bf16.msra.mxu0 0
    %292 = vmatprep.subr.bf16.mxu0 0
    %293 = vmatpush1.bf16.msra.mxu0 0
    %294 = vmatprep.subr.bf16.mxu0 0
    %295 = vmatpush1.bf16.msra.mxu0 0
    %296 = vmatprep.subr.bf16.mxu0 0
    %297 = vmatpush1.bf16.msra.mxu0 0
    %298 = vmatprep.subr.bf16.mxu0 0
    %299 = vmatpush1.bf16.msra.mxu0 0
    %300 = vmatprep.subr.bf16.mxu0 0
    %301 = vmatpush1.bf16.msra.mxu0 0
    %302 = vmatprep.subr.bf16.mxu0 0
    %303 = vmatpush1.bf16.msra.mxu0 0
    %304 = vmatprep.subr.bf16.mxu0 0
    %305 = vmatpush1.bf16.msra.mxu0 0
    %306 = vmatprep.subr.bf16.mxu0 0
    %307 = vmatpush1.bf16.msra.mxu0 0
    %308 = vmatprep.subr.bf16.mxu0 0
    %309 = vmatpush1.bf16.msra.mxu0 0
    %310 = vmatprep.subr.bf16.mxu0 0
    %311 = vmatpush1.bf16.msra.mxu0 0
    %312 = vmatprep.mubr.bf16.mxu0 0
    %313 = vmatmul.mubr.bf16.gmra.mrb[0].mxu0 %v278
    %v314 = vpop.f32.mrb[0].mxu0
    %v315 = vadd.f32 0.0, %v314
    %v316 = vpop.f32.mrb[0].mxu0
    %v317 = vpop.f32.mrb[0].mxu0
    %v318 = vadd.f32 0.0, %v317
    %v319 = vpop.f32.mrb[0].mxu0
    %320 = vdwg.mxu0
    %323 = vrot.lane.b32.xlu0 %v315, 104
    %v324 = vpop.permute.xlu0 %323
    %325 = vrot.lane.b32.xlu0 %v318, 104
    %v326 = vpop.permute.xlu0 %325
    %327 = vrot.lane.b32.xlu0 %v315, 80
    %v328 = vpop.permute.xlu0 %327
    %329 = vrot.lane.b32.xlu0 %v318, 80
    %v330 = vpop.permute.xlu0 %329
    %331 = vrot.lane.b32.xlu0 %v315, 56
    %v332 = vpop.permute.xlu0 %331
    %333 = vrot.lane.b32.xlu0 %v318, 56
    %v334 = vpop.permute.xlu0 %333
    %335 = vrot.lane.b32.xlu0 %v315, 120
    %v336 = vpop.permute.xlu0 %335
    %vm337 = vcmask 64512
    %v338 = vsel %vm337, %v315, 0
    %v340 = vsel %vm337, %v336, 0
    %342 = vmatprep.subr.mxu0 0.0
    %343 = vmatpush1.xpose.msra.mxu0 %v340
    %344 = vmatprep.subr.mxu0 0.0
    %345 = vmatpush1.xpose.msra.mxu0 0.0
    %346 = vmatprep.subr.mxu0 0.0
    %347 = vmatpush1.xpose.msra.mxu0 0.0
    %348 = vmatprep.subr.mxu0 0.0
    %349 = vmatpush1.xpose.msra.mxu0 0.0
    %350 = vmatprep.subr.mxu0 0.0
    %351 = vmatpush1.xpose.msra.mxu0 0.0
    %352 = vmatprep.subr.mxu0 0.0
    %353 = vmatpush1.xpose.msra.mxu0 0.0
    %354 = vmatprep.subr.mxu0 0.0
    %355 = vmatpush1.xpose.msra.mxu0 0.0
    %356 = vmatprep.subr.mxu0 0.0
    %357 = vmatpush1.xpose.msra.mxu0 0.0
    %358 = vmatprep.subr.mxu0 0.0
    %359 = vmatpush1.xpose.msra.mxu0 0.0
    %360 = vmatprep.subr.mxu0 0.0
    %361 = vmatpush1.xpose.msra.mxu0 0.0
    %362 = vmatprep.subr.mxu0 0.0
    %363 = vmatpush1.xpose.msra.mxu0 0.0
    %364 = vmatprep.subr.mxu0 0.0
    %365 = vmatpush1.xpose.msra.mxu0 0.0
    %366 = vmatprep.subr.mxu0 0.0
    %367 = vmatpush1.xpose.msra.mxu0 0.0
    %368 = vmatprep.subr.mxu0 0.0
    %369 = vmatpush1.xpose.msra.mxu0 0.0
    %370 = vmatprep.subr.mxu0 0.0
    %371 = vmatpush1.xpose.msra.mxu0 0.0
    %372 = vmatprep.subr.mxu0 0.0
    %373 = vmatpush1.xpose.msra.mxu0 0.0
    %374 = vmatprep.subr.mxu0 0.0
    %375 = vmatpush1.xpose.msra.mxu0 0.0
    %376 = vmatprep.subr.mxu0 0.0
    %377 = vmatpush1.xpose.msra.mxu0 0.0
    %378 = vmatprep.subr.mxu0 0.0
    %379 = vmatpush1.xpose.msra.mxu0 0.0
    %380 = vmatprep.subr.mxu0 0.0
    %381 = vmatpush1.xpose.msra.mxu0 0.0
    %382 = vmatprep.subr.mxu0 0.0
    %383 = vmatpush1.xpose.msra.mxu0 0.0
    %384 = vmatprep.subr.mxu0 0.0
    %385 = vmatpush1.xpose.msra.mxu0 0.0
    %386 = vmatprep.subr.mxu0 0.0
    %387 = vmatpush1.xpose.msra.mxu0 0.0
    %388 = vmatprep.subr.mxu0 0.0
    %389 = vmatpush1.xpose.msra.mxu0 0.0
    %390 = vmatprep.subr.mxu0 0.0
    %391 = vmatpush1.xpose.msra.mxu0 0.0
    %392 = vmatprep.subr.mxu0 0.0
    %393 = vmatpush1.xpose.msra.mxu0 0.0
    %394 = vmatprep.subr.mxu0 0.0
    %395 = vmatpush1.xpose.msra.mxu0 0.0
    %396 = vmatprep.subr.mxu0 0.0
    %397 = vmatpush1.xpose.msra.mxu0 0.0
    %398 = vmatprep.subr.mxu0 0.0
    %399 = vmatpush1.xpose.msra.mxu0 0.0
    %400 = vmatprep.subr.mxu0 0.0
    %401 = vmatpush1.xpose.msra.mxu0 0.0
    %402 = vmatprep.subr.mxu0 0.0
    %403 = vmatpush1.xpose.msra.mxu0 0.0
    %404 = vmatprep.subr.mxu0 0.0
    %405 = vmatpush1.xpose.msra.mxu0 0.0
    %406 = vmatprep.mubr.f32.mxu0 0.0
    %407 = vmatmul.mubr.f32.gmra.mrb[0].mxu0 %v338
    %v408 = vpop.f32.mrb[0].mxu0
    %v409 = vadd.f32 0.0, %v408
    %v410 = vpop.f32.mrb[0].mxu0
    %411 = vdwg.mxu0
    %412 = vrot.lane.b32.xlu0 %v318, 120
    %v413 = vpop.permute.xlu0 %412
    %v414 = vsel %vm337, %v318, 0
    %v416 = vsel %vm337, %v413, 0
    %418 = vmatprep.subr.mxu0 0.0
    %419 = vmatpush1.xpose.msra.mxu0 %v416
    %420 = vmatprep.subr.mxu0 0.0
    %421 = vmatpush1.xpose.msra.mxu0 0.0
    %422 = vmatprep.subr.mxu0 0.0
    %423 = vmatpush1.xpose.msra.mxu0 0.0
    %424 = vmatprep.subr.mxu0 0.0
    %425 = vmatpush1.xpose.msra.mxu0 0.0
    %426 = vmatprep.subr.mxu0 0.0
    %427 = vmatpush1.xpose.msra.mxu0 0.0
    %428 = vmatprep.subr.mxu0 0.0
    %429 = vmatpush1.xpose.msra.mxu0 0.0
    %430 = vmatprep.subr.mxu0 0.0
    %431 = vmatpush1.xpose.msra.mxu0 0.0
    %432 = vmatprep.subr.mxu0 0.0
    %433 = vmatpush1.xpose.msra.mxu0 0.0
    %434 = vmatprep.subr.mxu0 0.0
    %435 = vmatpush1.xpose.msra.mxu0 0.0
    %436 = vmatprep.subr.mxu0 0.0
    %437 = vmatpush1.xpose.msra.mxu0 0.0
    %438 = vmatprep.subr.mxu0 0.0
    %439 = vmatpush1.xpose.msra.mxu0 0.0
    %440 = vmatprep.subr.mxu0 0.0
    %441 = vmatpush1.xpose.msra.mxu0 0.0
    %442 = vmatprep.subr.mxu0 0.0
    %443 = vmatpush1.xpose.msra.mxu0 0.0
    %444 = vmatprep.subr.mxu0 0.0
    %445 = vmatpush1.xpose.msra.mxu0 0.0
    %446 = vmatprep.subr.mxu0 0.0
    %447 = vmatpush1.xpose.msra.mxu0 0.0
    %448 = vmatprep.subr.mxu0 0.0
    %449 = vmatpush1.xpose.msra.mxu0 0.0
    %450 = vmatprep.subr.mxu0 0.0
    %451 = vmatpush1.xpose.msra.mxu0 0.0
    %452 = vmatprep.subr.mxu0 0.0
    %453 = vmatpush1.xpose.msra.mxu0 0.0
    %454 = vmatprep.subr.mxu0 0.0
    %455 = vmatpush1.xpose.msra.mxu0 0.0
    %456 = vmatprep.subr.mxu0 0.0
    %457 = vmatpush1.xpose.msra.mxu0 0.0
    %458 = vmatprep.subr.mxu0 0.0
    %459 = vmatpush1.xpose.msra.mxu0 0.0
    %460 = vmatprep.subr.mxu0 0.0
    %461 = vmatpush1.xpose.msra.mxu0 0.0
    %462 = vmatprep.subr.mxu0 0.0
    %463 = vmatpush1.xpose.msra.mxu0 0.0
    %464 = vmatprep.subr.mxu0 0.0
    %465 = vmatpush1.xpose.msra.mxu0 0.0
    %466 = vmatprep.subr.mxu0 0.0
    %467 = vmatpush1.xpose.msra.mxu0 0.0
    %468 = vmatprep.subr.mxu0 0.0
    %469 = vmatpush1.xpose.msra.mxu0 0.0
    %470 = vmatprep.subr.mxu0 0.0
    %471 = vmatpush1.xpose.msra.mxu0 0.0
    %472 = vmatprep.subr.mxu0 0.0
    %473 = vmatpush1.xpose.msra.mxu0 0.0
    %474 = vmatprep.subr.mxu0 0.0
    %475 = vmatpush1.xpose.msra.mxu0 0.0
    %476 = vmatprep.subr.mxu0 0.0
    %477 = vmatpush1.xpose.msra.mxu0 0.0
    %478 = vmatprep.subr.mxu0 0.0
    %479 = vmatpush1.xpose.msra.mxu0 0.0
    %480 = vmatprep.subr.mxu0 0.0
    %481 = vmatpush1.xpose.msra.mxu0 0.0
    %482 = vmatprep.mubr.f32.mxu0 0.0
    %483 = vmatmul.mubr.f32.gmra.mrb[0].mxu0 %v414
    %v484 = vpop.f32.mrb[0].mxu0
    %v485 = vadd.f32 0.0, %v484
    %v486 = vpop.f32.mrb[0].mxu0
    %487 = vdwg.mxu0
    %488 = vrot.lane.b32.xlu0 %v324, 120
    %v489 = vpop.permute.xlu0 %488
    %v490 = vsel %vm337, %v324, 0
    %v492 = vsel %vm337, %v489, 0
    %494 = vmatprep.subr.mxu0 0.0
    %495 = vmatpush1.xpose.msra.mxu0 %v492
    %496 = vmatprep.subr.mxu0 0.0
    %497 = vmatpush1.xpose.msra.mxu0 0.0
    %498 = vmatprep.subr.mxu0 0.0
    %499 = vmatpush1.xpose.msra.mxu0 0.0
    %500 = vmatprep.subr.mxu0 0.0
    %501 = vmatpush1.xpose.msra.mxu0 0.0
    %502 = vmatprep.subr.mxu0 0.0
    %503 = vmatpush1.xpose.msra.mxu0 0.0
    %504 = vmatprep.subr.mxu0 0.0
    %505 = vmatpush1.xpose.msra.mxu0 0.0
    %506 = vmatprep.subr.mxu0 0.0
    %507 = vmatpush1.xpose.msra.mxu0 0.0
    %508 = vmatprep.subr.mxu0 0.0
    %509 = vmatpush1.xpose.msra.mxu0 0.0
    %510 = vmatprep.subr.mxu0 0.0
    %511 = vmatpush1.xpose.msra.mxu0 0.0
    %512 = vmatprep.subr.mxu0 0.0
    %513 = vmatpush1.xpose.msra.mxu0 0.0
    %514 = vmatprep.subr.mxu0 0.0
    %515 = vmatpush1.xpose.msra.mxu0 0.0
    %516 = vmatprep.subr.mxu0 0.0
    %517 = vmatpush1.xpose.msra.mxu0 0.0
    %518 = vmatprep.subr.mxu0 0.0
    %519 = vmatpush1.xpose.msra.mxu0 0.0
    %520 = vmatprep.subr.mxu0 0.0
    %521 = vmatpush1.xpose.msra.mxu0 0.0
    %522 = vmatprep.subr.mxu0 0.0
    %523 = vmatpush1.xpose.msra.mxu0 0.0
    %524 = vmatprep.subr.mxu0 0.0
    %525 = vmatpush1.xpose.msra.mxu0 0.0
    %526 = vmatprep.subr.mxu0 0.0
    %527 = vmatpush1.xpose.msra.mxu0 0.0
    %528 = vmatprep.subr.mxu0 0.0
    %529 = vmatpush1.xpose.msra.mxu0 0.0
    %530 = vmatprep.subr.mxu0 0.0
    %531 = vmatpush1.xpose.msra.mxu0 0.0
    %532 = vmatprep.subr.mxu0 0.0
    %533 = vmatpush1.xpose.msra.mxu0 0.0
    %534 = vmatprep.subr.mxu0 0.0
    %535 = vmatpush1.xpose.msra.mxu0 0.0
    %536 = vmatprep.subr.mxu0 0.0
    %537 = vmatpush1.xpose.msra.mxu0 0.0
    %538 = vmatprep.subr.mxu0 0.0
    %539 = vmatpush1.xpose.msra.mxu0 0.0
    %540 = vmatprep.subr.mxu0 0.0
    %541 = vmatpush1.xpose.msra.mxu0 0.0
    %542 = vmatprep.subr.mxu0 0.0
    %543 = vmatpush1.xpose.msra.mxu0 0.0
    %544 = vmatprep.subr.mxu0 0.0
    %545 = vmatpush1.xpose.msra.mxu0 0.0
    %546 = vmatprep.subr.mxu0 0.0
    %547 = vmatpush1.xpose.msra.mxu0 0.0
    %548 = vmatprep.subr.mxu0 0.0
    %549 = vmatpush1.xpose.msra.mxu0 0.0
    %550 = vmatprep.subr.mxu0 0.0
    %551 = vmatpush1.xpose.msra.mxu0 0.0
    %552 = vmatprep.subr.mxu0 0.0
    %553 = vmatpush1.xpose.msra.mxu0 0.0
    %554 = vmatprep.subr.mxu0 0.0
    %555 = vmatpush1.xpose.msra.mxu0 0.0
    %556 = vmatprep.subr.mxu0 0.0
    %557 = vmatpush1.xpose.msra.mxu0 0.0
    %558 = vmatprep.mubr.f32.mxu0 0.0
    %559 = vmatmul.mubr.f32.gmra.mrb[0].mxu0 %v490
    %v560 = vpop.f32.mrb[0].mxu0
    %v561 = vadd.f32 0.0, %v560
    %v562 = vpop.f32.mrb[0].mxu0
    %563 = vdwg.mxu0
    %564 = vrot.lane.b32.xlu0 %v326, 120
    %v565 = vpop.permute.xlu0 %564
    %v566 = vsel %vm337, %v326, 0
    %v568 = vsel %vm337, %v565, 0
    %570 = vmatprep.subr.mxu0 0.0
    %571 = vmatpush1.xpose.msra.mxu0 %v568
    %572 = vmatprep.subr.mxu0 0.0
    %573 = vmatpush1.xpose.msra.mxu0 0.0
    %574 = vmatprep.subr.mxu0 0.0
    %575 = vmatpush1.xpose.msra.mxu0 0.0
    %576 = vmatprep.subr.mxu0 0.0
    %577 = vmatpush1.xpose.msra.mxu0 0.0
    %578 = vmatprep.subr.mxu0 0.0
    %579 = vmatpush1.xpose.msra.mxu0 0.0
    %580 = vmatprep.subr.mxu0 0.0
    %581 = vmatpush1.xpose.msra.mxu0 0.0
    %582 = vmatprep.subr.mxu0 0.0
    %583 = vmatpush1.xpose.msra.mxu0 0.0
    %584 = vmatprep.subr.mxu0 0.0
    %585 = vmatpush1.xpose.msra.mxu0 0.0
    %586 = vmatprep.subr.mxu0 0.0
    %587 = vmatpush1.xpose.msra.mxu0 0.0
    %588 = vmatprep.subr.mxu0 0.0
    %589 = vmatpush1.xpose.msra.mxu0 0.0
    %590 = vmatprep.subr.mxu0 0.0
    %591 = vmatpush1.xpose.msra.mxu0 0.0
    %592 = vmatprep.subr.mxu0 0.0
    %593 = vmatpush1.xpose.msra.mxu0 0.0
    %594 = vmatprep.subr.mxu0 0.0
    %595 = vmatpush1.xpose.msra.mxu0 0.0
    %596 = vmatprep.subr.mxu0 0.0
    %597 = vmatpush1.xpose.msra.mxu0 0.0
    %598 = vmatprep.subr.mxu0 0.0
    %599 = vmatpush1.xpose.msra.mxu0 0.0
    %600 = vmatprep.subr.mxu0 0.0
    %601 = vmatpush1.xpose.msra.mxu0 0.0
    %602 = vmatprep.subr.mxu0 0.0
    %603 = vmatpush1.xpose.msra.mxu0 0.0
    %604 = vmatprep.subr.mxu0 0.0
    %605 = vmatpush1.xpose.msra.mxu0 0.0
    %606 = vmatprep.subr.mxu0 0.0
    %607 = vmatpush1.xpose.msra.mxu0 0.0
    %608 = vmatprep.subr.mxu0 0.0
    %609 = vmatpush1.xpose.msra.mxu0 0.0
    %610 = vmatprep.subr.mxu0 0.0
    %611 = vmatpush1.xpose.msra.mxu0 0.0
    %612 = vmatprep.subr.mxu0 0.0
    %613 = vmatpush1.xpose.msra.mxu0 0.0
    %614 = vmatprep.subr.mxu0 0.0
    %615 = vmatpush1.xpose.msra.mxu0 0.0
    %616 = vmatprep.subr.mxu0 0.0
    %617 = vmatpush1.xpose.msra.mxu0 0.0
    %618 = vmatprep.subr.mxu0 0.0
    %619 = vmatpush1.xpose.msra.mxu0 0.0
    %620 = vmatprep.subr.mxu0 0.0
    %621 = vmatpush1.xpose.msra.mxu0 0.0
    %622 = vmatprep.subr.mxu0 0.0
    %623 = vmatpush1.xpose.msra.mxu0 0.0
    %624 = vmatprep.subr.mxu0 0.0
    %625 = vmatpush1.xpose.msra.mxu0 0.0
    %626 = vmatprep.subr.mxu0 0.0
    %627 = vmatpush1.xpose.msra.mxu0 0.0
    %628 = vmatprep.subr.mxu0 0.0
    %629 = vmatpush1.xpose.msra.mxu0 0.0
    %630 = vmatprep.subr.mxu0 0.0
    %631 = vmatpush1.xpose.msra.mxu0 0.0
    %632 = vmatprep.subr.mxu0 0.0
    %633 = vmatpush1.xpose.msra.mxu0 0.0
    %634 = vmatprep.mubr.f32.mxu0 0.0
    %635 = vmatmul.mubr.f32.gmra.mrb[0].mxu0 %v566
    %v636 = vpop.f32.mrb[0].mxu0
    %v637 = vadd.f32 0.0, %v636
    %v638 = vpop.f32.mrb[0].mxu0
    %639 = vdwg.mxu0
    %640 = vrot.lane.b32.xlu0 %v328, 120
    %v641 = vpop.permute.xlu0 %640
    %v642 = vsel %vm337, %v328, 0
    %v644 = vsel %vm337, %v641, 0
    %646 = vmatprep.subr.mxu0 0.0
    %647 = vmatpush1.xpose.msra.mxu0 %v644
    %648 = vmatprep.subr.mxu0 0.0
    %649 = vmatpush1.xpose.msra.mxu0 0.0
    %650 = vmatprep.subr.mxu0 0.0
    %651 = vmatpush1.xpose.msra.mxu0 0.0
    %652 = vmatprep.subr.mxu0 0.0
    %653 = vmatpush1.xpose.msra.mxu0 0.0
    %654 = vmatprep.subr.mxu0 0.0
    %655 = vmatpush1.xpose.msra.mxu0 0.0
    %656 = vmatprep.subr.mxu0 0.0
    %657 = vmatpush1.xpose.msra.mxu0 0.0
    %658 = vmatprep.subr.mxu0 0.0
    %659 = vmatpush1.xpose.msra.mxu0 0.0
    %660 = vmatprep.subr.mxu0 0.0
    %661 = vmatpush1.xpose.msra.mxu0 0.0
    %662 = vmatprep.subr.mxu0 0.0
    %663 = vmatpush1.xpose.msra.mxu0 0.0
    %664 = vmatprep.subr.mxu0 0.0
    %665 = vmatpush1.xpose.msra.mxu0 0.0
    %666 = vmatprep.subr.mxu0 0.0
    %667 = vmatpush1.xpose.msra.mxu0 0.0
    %668 = vmatprep.subr.mxu0 0.0
    %669 = vmatpush1.xpose.msra.mxu0 0.0
    %670 = vmatprep.subr.mxu0 0.0
    %671 = vmatpush1.xpose.msra.mxu0 0.0
    %672 = vmatprep.subr.mxu0 0.0
    %673 = vmatpush1.xpose.msra.mxu0 0.0
    %674 = vmatprep.subr.mxu0 0.0
    %675 = vmatpush1.xpose.msra.mxu0 0.0
    %676 = vmatprep.subr.mxu0 0.0
    %677 = vmatpush1.xpose.msra.mxu0 0.0
    %678 = vmatprep.subr.mxu0 0.0
    %679 = vmatpush1.xpose.msra.mxu0 0.0
    %680 = vmatprep.subr.mxu0 0.0
    %681 = vmatpush1.xpose.msra.mxu0 0.0
    %682 = vmatprep.subr.mxu0 0.0
    %683 = vmatpush1.xpose.msra.mxu0 0.0
    %684 = vmatprep.subr.mxu0 0.0
    %685 = vmatpush1.xpose.msra.mxu0 0.0
    %686 = vmatprep.subr.mxu0 0.0
    %687 = vmatpush1.xpose.msra.mxu0 0.0
    %688 = vmatprep.subr.mxu0 0.0
    %689 = vmatpush1.xpose.msra.mxu0 0.0
    %690 = vmatprep.subr.mxu0 0.0
    %691 = vmatpush1.xpose.msra.mxu0 0.0
    %692 = vmatprep.subr.mxu0 0.0
    %693 = vmatpush1.xpose.msra.mxu0 0.0
    %694 = vmatprep.subr.mxu0 0.0
    %695 = vmatpush1.xpose.msra.mxu0 0.0
    %696 = vmatprep.subr.mxu0 0.0
    %697 = vmatpush1.xpose.msra.mxu0 0.0
    %698 = vmatprep.subr.mxu0 0.0
    %699 = vmatpush1.xpose.msra.mxu0 0.0
    %700 = vmatprep.subr.mxu0 0.0
    %701 = vmatpush1.xpose.msra.mxu0 0.0
    %702 = vmatprep.subr.mxu0 0.0
    %703 = vmatpush1.xpose.msra.mxu0 0.0
    %704 = vmatprep.subr.mxu0 0.0
    %705 = vmatpush1.xpose.msra.mxu0 0.0
    %706 = vmatprep.subr.mxu0 0.0
    %707 = vmatpush1.xpose.msra.mxu0 0.0
    %708 = vmatprep.subr.mxu0 0.0
    %709 = vmatpush1.xpose.msra.mxu0 0.0
    %710 = vmatprep.mubr.f32.mxu0 0.0
    %711 = vmatmul.mubr.f32.gmra.mrb[0].mxu0 %v642
    %v712 = vpop.f32.mrb[0].mxu0
    %v713 = vadd.f32 0.0, %v712
    %v714 = vpop.f32.mrb[0].mxu0
    %715 = vdwg.mxu0
    %716 = vrot.lane.b32.xlu0 %v330, 120
    %v717 = vpop.permute.xlu0 %716
    %v718 = vsel %vm337, %v330, 0
    %v720 = vsel %vm337, %v717, 0
    %722 = vmatprep.subr.mxu0 0.0
    %723 = vmatpush1.xpose.msra.mxu0 %v720
    %724 = vmatprep.subr.mxu0 0.0
    %725 = vmatpush1.xpose.msra.mxu0 0.0
    %726 = vmatprep.subr.mxu0 0.0
    %727 = vmatpush1.xpose.msra.mxu0 0.0
    %728 = vmatprep.subr.mxu0 0.0
    %729 = vmatpush1.xpose.msra.mxu0 0.0
    %730 = vmatprep.subr.mxu0 0.0
    %731 = vmatpush1.xpose.msra.mxu0 0.0
    %732 = vmatprep.subr.mxu0 0.0
    %733 = vmatpush1.xpose.msra.mxu0 0.0
    %734 = vmatprep.subr.mxu0 0.0
    %735 = vmatpush1.xpose.msra.mxu0 0.0
    %736 = vmatprep.subr.mxu0 0.0
    %737 = vmatpush1.xpose.msra.mxu0 0.0
    %738 = vmatprep.subr.mxu0 0.0
    %739 = vmatpush1.xpose.msra.mxu0 0.0
    %740 = vmatprep.subr.mxu0 0.0
    %741 = vmatpush1.xpose.msra.mxu0 0.0
    %742 = vmatprep.subr.mxu0 0.0
    %743 = vmatpush1.xpose.msra.mxu0 0.0
    %744 = vmatprep.subr.mxu0 0.0
    %745 = vmatpush1.xpose.msra.mxu0 0.0
    %746 = vmatprep.subr.mxu0 0.0
    %747 = vmatpush1.xpose.msra.mxu0 0.0
    %748 = vmatprep.subr.mxu0 0.0
    %749 = vmatpush1.xpose.msra.mxu0 0.0
    %750 = vmatprep.subr.mxu0 0.0
    %751 = vmatpush1.xpose.msra.mxu0 0.0
    %752 = vmatprep.subr.mxu0 0.0
    %753 = vmatpush1.xpose.msra.mxu0 0.0
    %754 = vmatprep.subr.mxu0 0.0
    %755 = vmatpush1.xpose.msra.mxu0 0.0
    %756 = vmatprep.subr.mxu0 0.0
    %757 = vmatpush1.xpose.msra.mxu0 0.0
    %758 = vmatprep.subr.mxu0 0.0
    %759 = vmatpush1.xpose.msra.mxu0 0.0
    %760 = vmatprep.subr.mxu0 0.0
    %761 = vmatpush1.xpose.msra.mxu0 0.0
    %762 = vmatprep.subr.mxu0 0.0
    %763 = vmatpush1.xpose.msra.mxu0 0.0
    %764 = vmatprep.subr.mxu0 0.0
    %765 = vmatpush1.xpose.msra.mxu0 0.0
    %766 = vmatprep.subr.mxu0 0.0
    %767 = vmatpush1.xpose.msra.mxu0 0.0
    %768 = vmatprep.subr.mxu0 0.0
    %769 = vmatpush1.xpose.msra.mxu0 0.0
    %770 = vmatprep.subr.mxu0 0.0
    %771 = vmatpush1.xpose.msra.mxu0 0.0
    %772 = vmatprep.subr.mxu0 0.0
    %773 = vmatpush1.xpose.msra.mxu0 0.0
    %774 = vmatprep.subr.mxu0 0.0
    %775 = vmatpush1.xpose.msra.mxu0 0.0
    %776 = vmatprep.subr.mxu0 0.0
    %777 = vmatpush1.xpose.msra.mxu0 0.0
    %778 = vmatprep.subr.mxu0 0.0
    %779 = vmatpush1.xpose.msra.mxu0 0.0
    %780 = vmatprep.subr.mxu0 0.0
    %781 = vmatpush1.xpose.msra.mxu0 0.0
    %782 = vmatprep.subr.mxu0 0.0
    %783 = vmatpush1.xpose.msra.mxu0 0.0
    %784 = vmatprep.subr.mxu0 0.0
    %785 = vmatpush1.xpose.msra.mxu0 0.0
    %786 = vmatprep.mubr.f32.mxu0 0.0
    %787 = vmatmul.mubr.f32.gmra.mrb[0].mxu0 %v718
    %v788 = vpop.f32.mrb[0].mxu0
    %v789 = vadd.f32 0.0, %v788
    %v790 = vpop.f32.mrb[0].mxu0
    %791 = vdwg.mxu0
    %792 = vrot.lane.b32.xlu0 %v332, 120
    %v793 = vpop.permute.xlu0 %792
    %v794 = vsel %vm337, %v332, 0
    %v796 = vsel %vm337, %v793, 0
    %798 = vmatprep.subr.mxu0 0.0
    %799 = vmatpush1.xpose.msra.mxu0 %v796
    %800 = vmatprep.subr.mxu0 0.0
    %801 = vmatpush1.xpose.msra.mxu0 0.0
    %802 = vmatprep.subr.mxu0 0.0
    %803 = vmatpush1.xpose.msra.mxu0 0.0
    %804 = vmatprep.subr.mxu0 0.0
    %805 = vmatpush1.xpose.msra.mxu0 0.0
    %806 = vmatprep.subr.mxu0 0.0
    %807 = vmatpush1.xpose.msra.mxu0 0.0
    %808 = vmatprep.subr.mxu0 0.0
    %809 = vmatpush1.xpose.msra.mxu0 0.0
    %810 = vmatprep.subr.mxu0 0.0
    %811 = vmatpush1.xpose.msra.mxu0 0.0
    %812 = vmatprep.subr.mxu0 0.0
    %813 = vmatpush1.xpose.msra.mxu0 0.0
    %814 = vmatprep.subr.mxu0 0.0
    %815 = vmatpush1.xpose.msra.mxu0 0.0
    %816 = vmatprep.subr.mxu0 0.0
    %817 = vmatpush1.xpose.msra.mxu0 0.0
    %818 = vmatprep.subr.mxu0 0.0
    %819 = vmatpush1.xpose.msra.mxu0 0.0
    %820 = vmatprep.subr.mxu0 0.0
    %821 = vmatpush1.xpose.msra.mxu0 0.0
    %822 = vmatprep.subr.mxu0 0.0
    %823 = vmatpush1.xpose.msra.mxu0 0.0
    %824 = vmatprep.subr.mxu0 0.0
    %825 = vmatpush1.xpose.msra.mxu0 0.0
    %826 = vmatprep.subr.mxu0 0.0
    %827 = vmatpush1.xpose.msra.mxu0 0.0
    %828 = vmatprep.subr.mxu0 0.0
    %829 = vmatpush1.xpose.msra.mxu0 0.0
    %830 = vmatprep.subr.mxu0 0.0
    %831 = vmatpush1.xpose.msra.mxu0 0.0
    %832 = vmatprep.subr.mxu0 0.0
    %833 = vmatpush1.xpose.msra.mxu0 0.0
    %834 = vmatprep.subr.mxu0 0.0
    %835 = vmatpush1.xpose.msra.mxu0 0.0
    %836 = vmatprep.subr.mxu0 0.0
    %837 = vmatpush1.xpose.msra.mxu0 0.0
    %838 = vmatprep.subr.mxu0 0.0
    %839 = vmatpush1.xpose.msra.mxu0 0.0
    %840 = vmatprep.subr.mxu0 0.0
    %841 = vmatpush1.xpose.msra.mxu0 0.0
    %842 = vmatprep.subr.mxu0 0.0
    %843 = vmatpush1.xpose.msra.mxu0 0.0
    %844 = vmatprep.subr.mxu0 0.0
    %845 = vmatpush1.xpose.msra.mxu0 0.0
    %846 = vmatprep.subr.mxu0 0.0
    %847 = vmatpush1.xpose.msra.mxu0 0.0
    %848 = vmatprep.subr.mxu0 0.0
    %849 = vmatpush1.xpose.msra.mxu0 0.0
    %850 = vmatprep.subr.mxu0 0.0
    %851 = vmatpush1.xpose.msra.mxu0 0.0
    %852 = vmatprep.subr.mxu0 0.0
    %853 = vmatpush1.xpose.msra.mxu0 0.0
    %854 = vmatprep.subr.mxu0 0.0
    %855 = vmatpush1.xpose.msra.mxu0 0.0
    %856 = vmatprep.subr.mxu0 0.0
    %857 = vmatpush1.xpose.msra.mxu0 0.0
    %858 = vmatprep.subr.mxu0 0.0
    %859 = vmatpush1.xpose.msra.mxu0 0.0
    %860 = vmatprep.subr.mxu0 0.0
    %861 = vmatpush1.xpose.msra.mxu0 0.0
    %862 = vmatprep.mubr.f32.mxu0 0.0
    %863 = vmatmul.mubr.f32.gmra.mrb[0].mxu0 %v794
    %v864 = vpop.f32.mrb[0].mxu0
    %v865 = vadd.f32 0.0, %v864
    %v866 = vpop.f32.mrb[0].mxu0
    %867 = vdwg.mxu0
    %868 = vrot.lane.b32.xlu0 %v334, 120
    %v869 = vpop.permute.xlu0 %868
    %v870 = vsel %vm337, %v334, 0
    %v872 = vsel %vm337, %v869, 0
    %874 = vmatprep.subr.mxu0 0.0
    %875 = vmatpush1.xpose.msra.mxu0 %v872
    %876 = vmatprep.subr.mxu0 0.0
    %877 = vmatpush1.xpose.msra.mxu0 0.0
    %878 = vmatprep.subr.mxu0 0.0
    %879 = vmatpush1.xpose.msra.mxu0 0.0
    %880 = vmatprep.subr.mxu0 0.0
    %881 = vmatpush1.xpose.msra.mxu0 0.0
    %882 = vmatprep.subr.mxu0 0.0
    %883 = vmatpush1.xpose.msra.mxu0 0.0
    %884 = vmatprep.subr.mxu0 0.0
    %885 = vmatpush1.xpose.msra.mxu0 0.0
    %886 = vmatprep.subr.mxu0 0.0
    %887 = vmatpush1.xpose.msra.mxu0 0.0
    %888 = vmatprep.subr.mxu0 0.0
    %889 = vmatpush1.xpose.msra.mxu0 0.0
    %890 = vmatprep.subr.mxu0 0.0
    %891 = vmatpush1.xpose.msra.mxu0 0.0
    %892 = vmatprep.subr.mxu0 0.0
    %893 = vmatpush1.xpose.msra.mxu0 0.0
    %894 = vmatprep.subr.mxu0 0.0
    %895 = vmatpush1.xpose.msra.mxu0 0.0
    %896 = vmatprep.subr.mxu0 0.0
    %897 = vmatpush1.xpose.msra.mxu0 0.0
    %898 = vmatprep.subr.mxu0 0.0
    %899 = vmatpush1.xpose.msra.mxu0 0.0
    %900 = vmatprep.subr.mxu0 0.0
    %901 = vmatpush1.xpose.msra.mxu0 0.0
    %902 = vmatprep.subr.mxu0 0.0
    %903 = vmatpush1.xpose.msra.mxu0 0.0
    %904 = vmatprep.subr.mxu0 0.0
    %905 = vmatpush1.xpose.msra.mxu0 0.0
    %906 = vmatprep.subr.mxu0 0.0
    %907 = vmatpush1.xpose.msra.mxu0 0.0
    %908 = vmatprep.subr.mxu0 0.0
    %909 = vmatpush1.xpose.msra.mxu0 0.0
    %910 = vmatprep.subr.mxu0 0.0
    %911 = vmatpush1.xpose.msra.mxu0 0.0
    %912 = vmatprep.subr.mxu0 0.0
    %913 = vmatpush1.xpose.msra.mxu0 0.0
    %914 = vmatprep.subr.mxu0 0.0
    %915 = vmatpush1.xpose.msra.mxu0 0.0
    %916 = vmatprep.subr.mxu0 0.0
    %917 = vmatpush1.xpose.msra.mxu0 0.0
    %918 = vmatprep.subr.mxu0 0.0
    %919 = vmatpush1.xpose.msra.mxu0 0.0
    %920 = vmatprep.subr.mxu0 0.0
    %921 = vmatpush1.xpose.msra.mxu0 0.0
    %922 = vmatprep.subr.mxu0 0.0
    %923 = vmatpush1.xpose.msra.mxu0 0.0
    %924 = vmatprep.subr.mxu0 0.0
    %925 = vmatpush1.xpose.msra.mxu0 0.0
    %926 = vmatprep.subr.mxu0 0.0
    %927 = vmatpush1.xpose.msra.mxu0 0.0
    %928 = vmatprep.subr.mxu0 0.0
    %929 = vmatpush1.xpose.msra.mxu0 0.0
    %930 = vmatprep.subr.mxu0 0.0
    %931 = vmatpush1.xpose.msra.mxu0 0.0
    %932 = vmatprep.subr.mxu0 0.0
    %933 = vmatpush1.xpose.msra.mxu0 0.0
    %934 = vmatprep.subr.mxu0 0.0
    %935 = vmatpush1.xpose.msra.mxu0 0.0
    %936 = vmatprep.subr.mxu0 0.0
    %937 = vmatpush1.xpose.msra.mxu0 0.0
    %938 = vmatprep.mubr.f32.mxu0 0.0
    %939 = vmatmul.mubr.f32.gmra.mrb[0].mxu0 %v870
    %v940 = vpop.f32.mrb[0].mxu0
    %v941 = vadd.f32 0.0, %v940
    %v942 = vpop.f32.mrb[0].mxu0
    %943 = vdwg.mxu0
    %v944 = vadd.f32 %v409, %v228
    %v945 = vadd.f32 %v485, %v229
    %v946 = vadd.f32 %v561, %v230
    %v947 = vadd.f32 %v637, %v231
    %v948 = vadd.f32 %v713, %v232
    %v949 = vadd.f32 %v789, %v233
    %v950 = vadd.f32 %v865, %v234
    %v951 = vadd.f32 %v941, %v235
    %v952 = vsel %vm337, %v944, -inf
    %953 = vmax.xlane.f32.xlu0 %v952
    %v954 = vpop.xlane.xlu0 %953
    %v955 = vsel %vm337, %v945, -inf
    %956 = vmax.xlane.f32.xlu0 %v955
    %v957 = vpop.xlane.xlu0 %956
    %v958 = vsel %vm337, %v946, -inf
    %959 = vmax.xlane.f32.xlu0 %v958
    %v960 = vpop.xlane.xlu0 %959
    %v961 = vsel %vm337, %v947, -inf
    %962 = vmax.xlane.f32.xlu0 %v961
    %v963 = vpop.xlane.xlu0 %962
    %v964 = vsel %vm337, %v948, -inf
    %965 = vmax.xlane.f32.xlu0 %v964
    %v966 = vpop.xlane.xlu0 %965
    %v967 = vsel %vm337, %v949, -inf
    %968 = vmax.xlane.f32.xlu0 %v967
    %v969 = vpop.xlane.xlu0 %968
    %v970 = vsel %vm337, %v950, -inf
    %971 = vmax.xlane.f32.xlu0 %v970
    %v972 = vpop.xlane.xlu0 %971
    %v973 = vsel %vm337, %v951, -inf
    %974 = vmax.xlane.f32.xlu0 %v973
    %v975 = vpop.xlane.xlu0 %974
    %v976 = vsub.f32 %v944, %v954
    %v977 = vsub.f32 %v945, %v957
    %v978 = vsub.f32 %v946, %v960
    %v979 = vsub.f32 %v947, %v963
    %v980 = vsub.f32 %v948, %v966
    %v981 = vsub.f32 %v949, %v969
    %v982 = vsub.f32 %v950, %v972
    %v983 = vsub.f32 %v951, %v975
    %v984 = vmul.f32 %v976, 1.442695
    %v985 = vpow.pop %v984
    %v986 = vmul.f32 %v977, 1.442695
    %v987 = vpow.pop %v986
    %v988 = vmul.f32 %v978, 1.442695
    %v989 = vpow.pop %v988
    %v990 = vmul.f32 %v979, 1.442695
    %v991 = vpow.pop %v990
    %v992 = vmul.f32 %v980, 1.442695
    %v993 = vpow.pop %v992
    %v994 = vmul.f32 %v981, 1.442695
    %v995 = vpow.pop %v994
    %v996 = vmul.f32 %v982, 1.442695
    %v997 = vpow.pop %v996
    %v998 = vmul.f32 %v983, 1.442695
    %v999 = vpow.pop %v998
    %v1000 = vsel %vm337, %v985, 0.0
    %1001 = vadd.xlane.f32.xlu0 %v1000
    %v1002 = vpop.xlane.xlu0 %1001
    %v1003 = vsel %vm337, %v987, 0.0
    %1004 = vadd.xlane.f32.xlu0 %v1003
    %v1005 = vpop.xlane.xlu0 %1004
    %v1006 = vsel %vm337, %v989, 0.0
    %1007 = vadd.xlane.f32.xlu0 %v1006
    %v1008 = vpop.xlane.xlu0 %1007
    %v1009 = vsel %vm337, %v991, 0.0
    %1010 = vadd.xlane.f32.xlu0 %v1009
    %v1011 = vpop.xlane.xlu0 %1010
    %v1012 = vsel %vm337, %v993, 0.0
    %1013 = vadd.xlane.f32.xlu0 %v1012
    %v1014 = vpop.xlane.xlu0 %1013
    %v1015 = vsel %vm337, %v995, 0.0
    %1016 = vadd.xlane.f32.xlu0 %v1015
    %v1017 = vpop.xlane.xlu0 %1016
    %v1018 = vsel %vm337, %v997, 0.0
    %1019 = vadd.xlane.f32.xlu0 %v1018
    %v1020 = vpop.xlane.xlu0 %1019
    %v1021 = vsel %vm337, %v999, 0.0
    %1022 = vadd.xlane.f32.xlu0 %v1021
    %v1023 = vpop.xlane.xlu0 %1022
    %v1024 = vrcp.pop %v1002
    %v1025 = vrcp.pop %v1005
    %v1026 = vrcp.pop %v1008
    %v1027 = vrcp.pop %v1011
    %v1028 = vrcp.pop %v1014
    %v1029 = vrcp.pop %v1017
    %v1030 = vrcp.pop %v1020
    %v1031 = vrcp.pop %v1023
    %v1032 = vmul.f32 %v985, %v1024
    %v1033 = vmul.f32 %v987, %v1025
    %v1034 = vmul.f32 %v989, %v1026
    %v1035 = vmul.f32 %v991, %v1027
    %v1036 = vmul.f32 %v993, %v1028
    %v1037 = vmul.f32 %v995, %v1029
    %v1038 = vmul.f32 %v997, %v1030
    %v1039 = vmul.f32 %v999, %v1031
    %1040 = vrot.lane.b32.xlu0 %v315, 112
    %v1041 = vpop.permute.xlu0 %1040
    %v1044 = vsel %vm337, %v1032, 0
    %1046 = vmatprep.subr.mxu0 0.0
    %1047 = vmatpush1.msra.mxu0 %v1041
    %1048 = vmatprep.subr.mxu0 0.0
    %1049 = vmatpush1.msra.mxu0 0.0
    %1050 = vmatprep.subr.mxu0 0.0
    %1051 = vmatpush1.msra.mxu0 0.0
    %1052 = vmatprep.subr.mxu0 0.0
    %1053 = vmatpush1.msra.mxu0 0.0
    %1054 = vmatprep.subr.mxu0 0.0
    %1055 = vmatpush1.msra.mxu0 0.0
    %1056 = vmatprep.subr.mxu0 0.0
    %1057 = vmatpush1.msra.mxu0 0.0
    %1058 = vmatprep.subr.mxu0 0.0
    %1059 = vmatpush1.msra.mxu0 0.0
    %1060 = vmatprep.subr.mxu0 0.0
    %1061 = vmatpush1.msra.mxu0 0.0
    %1062 = vmatprep.subr.mxu0 0.0
    %1063 = vmatpush1.msra.mxu0 0.0
    %1064 = vmatprep.subr.mxu0 0.0
    %1065 = vmatpush1.msra.mxu0 0.0
    %1066 = vmatprep.subr.mxu0 0.0
    %1067 = vmatpush1.msra.mxu0 0.0
    %1068 = vmatprep.subr.mxu0 0.0
    %1069 = vmatpush1.msra.mxu0 0.0
    %1070 = vmatprep.subr.mxu0 0.0
    %1071 = vmatpush1.msra.mxu0 0.0
    %1072 = vmatprep.subr.mxu0 0.0
    %1073 = vmatpush1.msra.mxu0 0.0
    %1074 = vmatprep.subr.mxu0 0.0
    %1075 = vmatpush1.msra.mxu0 0.0
    %1076 = vmatprep.subr.mxu0 0.0
    %1077 = vmatpush1.msra.mxu0 0.0
    %1078 = vmatprep.subr.mxu0 0.0
    %1079 = vmatpush1.msra.mxu0 0.0
    %1080 = vmatprep.subr.mxu0 0.0
    %1081 = vmatpush1.msra.mxu0 0.0
    %1082 = vmatprep.subr.mxu0 0.0
    %1083 = vmatpush1.msra.mxu0 0.0
    %1084 = vmatprep.subr.mxu0 0.0
    %1085 = vmatpush1.msra.mxu0 0.0
    %1086 = vmatprep.subr.mxu0 0.0
    %1087 = vmatpush1.msra.mxu0 0.0
    %1088 = vmatprep.subr.mxu0 0.0
    %1089 = vmatpush1.msra.mxu0 0.0
    %1090 = vmatprep.subr.mxu0 0.0
    %1091 = vmatpush1.msra.mxu0 0.0
    %1092 = vmatprep.subr.mxu0 0.0
    %1093 = vmatpush1.msra.mxu0 0.0
    %1094 = vmatprep.subr.mxu0 0.0
    %1095 = vmatpush1.msra.mxu0 0.0
    %1096 = vmatprep.subr.mxu0 0.0
    %1097 = vmatpush1.msra.mxu0 0.0
    %1098 = vmatprep.subr.mxu0 0.0
    %1099 = vmatpush1.msra.mxu0 0.0
    %1100 = vmatprep.subr.mxu0 0.0
    %1101 = vmatpush1.msra.mxu0 0.0
    %1102 = vmatprep.subr.mxu0 0.0
    %1103 = vmatpush1.msra.mxu0 0.0
    %1104 = vmatprep.subr.mxu0 0.0
    %1105 = vmatpush1.msra.mxu0 0.0
    %1106 = vmatprep.subr.mxu0 0.0
    %1107 = vmatpush1.msra.mxu0 0.0
    %1108 = vmatprep.subr.mxu0 0.0
    %1109 = vmatpush1.msra.mxu0 0.0
    %1110 = vmatprep.mubr.f32.mxu0 0.0
    %1111 = vmatmul.mubr.f32.gmra.mrb[0].mxu0 %v1044
    %v1112 = vpop.f32.mrb[0].mxu0
    %v1113 = vadd.f32 0.0, %v1112
    %v1114 = vpop.f32.mrb[0].mxu0
    %1115 = vdwg.mxu0
    %1116 = vrot.lane.b32.xlu0 %v318, 112
    %v1117 = vpop.permute.xlu0 %1116
    %v1120 = vsel %vm337, %v1033, 0
    %1122 = vmatprep.subr.mxu0 0.0
    %1123 = vmatpush1.msra.mxu0 %v1117
    %1124 = vmatprep.subr.mxu0 0.0
    %1125 = vmatpush1.msra.mxu0 0.0
    %1126 = vmatprep.subr.mxu0 0.0
    %1127 = vmatpush1.msra.mxu0 0.0
    %1128 = vmatprep.subr.mxu0 0.0
    %1129 = vmatpush1.msra.mxu0 0.0
    %1130 = vmatprep.subr.mxu0 0.0
    %1131 = vmatpush1.msra.mxu0 0.0
    %1132 = vmatprep.subr.mxu0 0.0
    %1133 = vmatpush1.msra.mxu0 0.0
    %1134 = vmatprep.subr.mxu0 0.0
    %1135 = vmatpush1.msra.mxu0 0.0
    %1136 = vmatprep.subr.mxu0 0.0
    %1137 = vmatpush1.msra.mxu0 0.0
    %1138 = vmatprep.subr.mxu0 0.0
    %1139 = vmatpush1.msra.mxu0 0.0
    %1140 = vmatprep.subr.mxu0 0.0
    %1141 = vmatpush1.msra.mxu0 0.0
    %1142 = vmatprep.subr.mxu0 0.0
    %1143 = vmatpush1.msra.mxu0 0.0
    %1144 = vmatprep.subr.mxu0 0.0
    %1145 = vmatpush1.msra.mxu0 0.0
    %1146 = vmatprep.subr.mxu0 0.0
    %1147 = vmatpush1.msra.mxu0 0.0
    %1148 = vmatprep.subr.mxu0 0.0
    %1149 = vmatpush1.msra.mxu0 0.0
    %1150 = vmatprep.subr.mxu0 0.0
    %1151 = vmatpush1.msra.mxu0 0.0
    %1152 = vmatprep.subr.mxu0 0.0
    %1153 = vmatpush1.msra.mxu0 0.0
    %1154 = vmatprep.subr.mxu0 0.0
    %1155 = vmatpush1.msra.mxu0 0.0
    %1156 = vmatprep.subr.mxu0 0.0
    %1157 = vmatpush1.msra.mxu0 0.0
    %1158 = vmatprep.subr.mxu0 0.0
    %1159 = vmatpush1.msra.mxu0 0.0
    %1160 = vmatprep.subr.mxu0 0.0
    %1161 = vmatpush1.msra.mxu0 0.0
    %1162 = vmatprep.subr.mxu0 0.0
    %1163 = vmatpush1.msra.mxu0 0.0
    %1164 = vmatprep.subr.mxu0 0.0
    %1165 = vmatpush1.msra.mxu0 0.0
    %1166 = vmatprep.subr.mxu0 0.0
    %1167 = vmatpush1.msra.mxu0 0.0
    %1168 = vmatprep.subr.mxu0 0.0
    %1169 = vmatpush1.msra.mxu0 0.0
    %1170 = vmatprep.subr.mxu0 0.0
    %1171 = vmatpush1.msra.mxu0 0.0
    %1172 = vmatprep.subr.mxu0 0.0
    %1173 = vmatpush1.msra.mxu0 0.0
    %1174 = vmatprep.subr.mxu0 0.0
    %1175 = vmatpush1.msra.mxu0 0.0
    %1176 = vmatprep.subr.mxu0 0.0
    %1177 = vmatpush1.msra.mxu0 0.0
    %1178 = vmatprep.subr.mxu0 0.0
    %1179 = vmatpush1.msra.mxu0 0.0
    %1180 = vmatprep.subr.mxu0 0.0
    %1181 = vmatpush1.msra.mxu0 0.0
    %1182 = vmatprep.subr.mxu0 0.0
    %1183 = vmatpush1.msra.mxu0 0.0
    %1184 = vmatprep.subr.mxu0 0.0
    %1185 = vmatpush1.msra.mxu0 0.0
    %1186 = vmatprep.mubr.f32.mxu0 0.0
    %1187 = vmatmul.mubr.f32.gmra.mrb[0].mxu0 %v1120
    %v1188 = vpop.f32.mrb[0].mxu0
    %v1189 = vadd.f32 0.0, %v1188
    %v1190 = vpop.f32.mrb[0].mxu0
    %1191 = vdwg.mxu0
    %1192 = vrot.lane.b32.xlu0 %v324, 112
    %v1193 = vpop.permute.xlu0 %1192
    %v1196 = vsel %vm337, %v1034, 0
    %1198 = vmatprep.subr.mxu0 0.0
    %1199 = vmatpush1.msra.mxu0 %v1193
    %1200 = vmatprep.subr.mxu0 0.0
    %1201 = vmatpush1.msra.mxu0 0.0
    %1202 = vmatprep.subr.mxu0 0.0
    %1203 = vmatpush1.msra.mxu0 0.0
    %1204 = vmatprep.subr.mxu0 0.0
    %1205 = vmatpush1.msra.mxu0 0.0
    %1206 = vmatprep.subr.mxu0 0.0
    %1207 = vmatpush1.msra.mxu0 0.0
    %1208 = vmatprep.subr.mxu0 0.0
    %1209 = vmatpush1.msra.mxu0 0.0
    %1210 = vmatprep.subr.mxu0 0.0
    %1211 = vmatpush1.msra.mxu0 0.0
    %1212 = vmatprep.subr.mxu0 0.0
    %1213 = vmatpush1.msra.mxu0 0.0
    %1214 = vmatprep.subr.mxu0 0.0
    %1215 = vmatpush1.msra.mxu0 0.0
    %1216 = vmatprep.subr.mxu0 0.0
    %1217 = vmatpush1.msra.mxu0 0.0
    %1218 = vmatprep.subr.mxu0 0.0
    %1219 = vmatpush1.msra.mxu0 0.0
    %1220 = vmatprep.subr.mxu0 0.0
    %1221 = vmatpush1.msra.mxu0 0.0
    %1222 = vmatprep.subr.mxu0 0.0
    %1223 = vmatpush1.msra.mxu0 0.0
    %1224 = vmatprep.subr.mxu0 0.0
    %1225 = vmatpush1.msra.mxu0 0.0
    %1226 = vmatprep.subr.mxu0 0.0
    %1227 = vmatpush1.msra.mxu0 0.0
    %1228 = vmatprep.subr.mxu0 0.0
    %1229 = vmatpush1.msra.mxu0 0.0
    %1230 = vmatprep.subr.mxu0 0.0
    %1231 = vmatpush1.msra.mxu0 0.0
    %1232 = vmatprep.subr.mxu0 0.0
    %1233 = vmatpush1.msra.mxu0 0.0
    %1234 = vmatprep.subr.mxu0 0.0
    %1235 = vmatpush1.msra.mxu0 0.0
    %1236 = vmatprep.subr.mxu0 0.0
    %1237 = vmatpush1.msra.mxu0 0.0
    %1238 = vmatprep.subr.mxu0 0.0
    %1239 = vmatpush1.msra.mxu0 0.0
    %1240 = vmatprep.subr.mxu0 0.0
    %1241 = vmatpush1.msra.mxu0 0.0
    %1242 = vmatprep.subr.mxu0 0.0
    %1243 = vmatpush1.msra.mxu0 0.0
    %1244 = vmatprep.subr.mxu0 0.0
    %1245 = vmatpush1.msra.mxu0 0.0
    %1246 = vmatprep.subr.mxu0 0.0
    %1247 = vmatpush1.msra.mxu0 0.0
    %1248 = vmatprep.subr.mxu0 0.0
    %1249 = vmatpush1.msra.mxu0 0.0
    %1250 = vmatprep.subr.mxu0 0.0
    %1251 = vmatpush1.msra.mxu0 0.0
    %1252 = vmatprep.subr.mxu0 0.0
    %1253 = vmatpush1.msra.mxu0 0.0
    %1254 = vmatprep.subr.mxu0 0.0
    %1255 = vmatpush1.msra.mxu0 0.0
    %1256 = vmatprep.subr.mxu0 0.0
    %1257 = vmatpush1.msra.mxu0 0.0
    %1258 = vmatprep.subr.mxu0 0.0
    %1259 = vmatpush1.msra.mxu0 0.0
    %1260 = vmatprep.subr.mxu0 0.0
    %1261 = vmatpush1.msra.mxu0 0.0
    %1262 = vmatprep.mubr.f32.mxu0 0.0
    %1263 = vmatmul.mubr.f32.gmra.mrb[0].mxu0 %v1196
    %v1264 = vpop.f32.mrb[0].mxu0
    %v1265 = vadd.f32 0.0, %v1264
    %v1266 = vpop.f32.mrb[0].mxu0
    %1267 = vdwg.mxu0
    %1268 = vrot.lane.b32.xlu0 %v326, 112
    %v1269 = vpop.permute.xlu0 %1268
    %v1272 = vsel %vm337, %v1035, 0
    %1274 = vmatprep.subr.mxu0 0.0
    %1275 = vmatpush1.msra.mxu0 %v1269
    %1276 = vmatprep.subr.mxu0 0.0
    %1277 = vmatpush1.msra.mxu0 0.0
    %1278 = vmatprep.subr.mxu0 0.0
    %1279 = vmatpush1.msra.mxu0 0.0
    %1280 = vmatprep.subr.mxu0 0.0
    %1281 = vmatpush1.msra.mxu0 0.0
    %1282 = vmatprep.subr.mxu0 0.0
    %1283 = vmatpush1.msra.mxu0 0.0
    %1284 = vmatprep.subr.mxu0 0.0
    %1285 = vmatpush1.msra.mxu0 0.0
    %1286 = vmatprep.subr.mxu0 0.0
    %1287 = vmatpush1.msra.mxu0 0.0
    %1288 = vmatprep.subr.mxu0 0.0
    %1289 = vmatpush1.msra.mxu0 0.0
    %1290 = vmatprep.subr.mxu0 0.0
    %1291 = vmatpush1.msra.mxu0 0.0
    %1292 = vmatprep.subr.mxu0 0.0
    %1293 = vmatpush1.msra.mxu0 0.0
    %1294 = vmatprep.subr.mxu0 0.0
    %1295 = vmatpush1.msra.mxu0 0.0
    %1296 = vmatprep.subr.mxu0 0.0
    %1297 = vmatpush1.msra.mxu0 0.0
    %1298 = vmatprep.subr.mxu0 0.0
    %1299 = vmatpush1.msra.mxu0 0.0
    %1300 = vmatprep.subr.mxu0 0.0
    %1301 = vmatpush1.msra.mxu0 0.0
    %1302 = vmatprep.subr.mxu0 0.0
    %1303 = vmatpush1.msra.mxu0 0.0
    %1304 = vmatprep.subr.mxu0 0.0
    %1305 = vmatpush1.msra.mxu0 0.0
    %1306 = vmatprep.subr.mxu0 0.0
    %1307 = vmatpush1.msra.mxu0 0.0
    %1308 = vmatprep.subr.mxu0 0.0
    %1309 = vmatpush1.msra.mxu0 0.0
    %1310 = vmatprep.subr.mxu0 0.0
    %1311 = vmatpush1.msra.mxu0 0.0
    %1312 = vmatprep.subr.mxu0 0.0
    %1313 = vmatpush1.msra.mxu0 0.0
    %1314 = vmatprep.subr.mxu0 0.0
    %1315 = vmatpush1.msra.mxu0 0.0
    %1316 = vmatprep.subr.mxu0 0.0
    %1317 = vmatpush1.msra.mxu0 0.0
    %1318 = vmatprep.subr.mxu0 0.0
    %1319 = vmatpush1.msra.mxu0 0.0
    %1320 = vmatprep.subr.mxu0 0.0
    %1321 = vmatpush1.msra.mxu0 0.0
    %1322 = vmatprep.subr.mxu0 0.0
    %1323 = vmatpush1.msra.mxu0 0.0
    %1324 = vmatprep.subr.mxu0 0.0
    %1325 = vmatpush1.msra.mxu0 0.0
    %1326 = vmatprep.subr.mxu0 0.0
    %1327 = vmatpush1.msra.mxu0 0.0
    %1328 = vmatprep.subr.mxu0 0.0
    %1329 = vmatpush1.msra.mxu0 0.0
    %1330 = vmatprep.subr.mxu0 0.0
    %1331 = vmatpush1.msra.mxu0 0.0
    %1332 = vmatprep.subr.mxu0 0.0
    %1333 = vmatpush1.msra.mxu0 0.0
    %1334 = vmatprep.subr.mxu0 0.0
    %1335 = vmatpush1.msra.mxu0 0.0
    %1336 = vmatprep.subr.mxu0 0.0
    %1337 = vmatpush1.msra.mxu0 0.0
    %1338 = vmatprep.mubr.f32.mxu0 0.0
    %1339 = vmatmul.mubr.f32.gmra.mrb[0].mxu0 %v1272
    %v1340 = vpop.f32.mrb[0].mxu0
    %v1341 = vadd.f32 0.0, %v1340
    %v1342 = vpop.f32.mrb[0].mxu0
    %1343 = vdwg.mxu0
    %1344 = vrot.lane.b32.xlu0 %v328, 112
    %v1345 = vpop.permute.xlu0 %1344
    %v1348 = vsel %vm337, %v1036, 0
    %1350 = vmatprep.subr.mxu0 0.0
    %1351 = vmatpush1.msra.mxu0 %v1345
    %1352 = vmatprep.subr.mxu0 0.0
    %1353 = vmatpush1.msra.mxu0 0.0
    %1354 = vmatprep.subr.mxu0 0.0
    %1355 = vmatpush1.msra.mxu0 0.0
    %1356 = vmatprep.subr.mxu0 0.0
    %1357 = vmatpush1.msra.mxu0 0.0
    %1358 = vmatprep.subr.mxu0 0.0
    %1359 = vmatpush1.msra.mxu0 0.0
    %1360 = vmatprep.subr.mxu0 0.0
    %1361 = vmatpush1.msra.mxu0 0.0
    %1362 = vmatprep.subr.mxu0 0.0
    %1363 = vmatpush1.msra.mxu0 0.0
    %1364 = vmatprep.subr.mxu0 0.0
    %1365 = vmatpush1.msra.mxu0 0.0
    %1366 = vmatprep.subr.mxu0 0.0
    %1367 = vmatpush1.msra.mxu0 0.0
    %1368 = vmatprep.subr.mxu0 0.0
    %1369 = vmatpush1.msra.mxu0 0.0
    %1370 = vmatprep.subr.mxu0 0.0
    %1371 = vmatpush1.msra.mxu0 0.0
    %1372 = vmatprep.subr.mxu0 0.0
    %1373 = vmatpush1.msra.mxu0 0.0
    %1374 = vmatprep.subr.mxu0 0.0
    %1375 = vmatpush1.msra.mxu0 0.0
    %1376 = vmatprep.subr.mxu0 0.0
    %1377 = vmatpush1.msra.mxu0 0.0
    %1378 = vmatprep.subr.mxu0 0.0
    %1379 = vmatpush1.msra.mxu0 0.0
    %1380 = vmatprep.subr.mxu0 0.0
    %1381 = vmatpush1.msra.mxu0 0.0
    %1382 = vmatprep.subr.mxu0 0.0
    %1383 = vmatpush1.msra.mxu0 0.0
    %1384 = vmatprep.subr.mxu0 0.0
    %1385 = vmatpush1.msra.mxu0 0.0
    %1386 = vmatprep.subr.mxu0 0.0
    %1387 = vmatpush1.msra.mxu0 0.0
    %1388 = vmatprep.subr.mxu0 0.0
    %1389 = vmatpush1.msra.mxu0 0.0
    %1390 = vmatprep.subr.mxu0 0.0
    %1391 = vmatpush1.msra.mxu0 0.0
    %1392 = vmatprep.subr.mxu0 0.0
    %1393 = vmatpush1.msra.mxu0 0.0
    %1394 = vmatprep.subr.mxu0 0.0
    %1395 = vmatpush1.msra.mxu0 0.0
    %1396 = vmatprep.subr.mxu0 0.0
    %1397 = vmatpush1.msra.mxu0 0.0
    %1398 = vmatprep.subr.mxu0 0.0
    %1399 = vmatpush1.msra.mxu0 0.0
    %1400 = vmatprep.subr.mxu0 0.0
    %1401 = vmatpush1.msra.mxu0 0.0
    %1402 = vmatprep.subr.mxu0 0.0
    %1403 = vmatpush1.msra.mxu0 0.0
    %1404 = vmatprep.subr.mxu0 0.0
    %1405 = vmatpush1.msra.mxu0 0.0
    %1406 = vmatprep.subr.mxu0 0.0
    %1407 = vmatpush1.msra.mxu0 0.0
    %1408 = vmatprep.subr.mxu0 0.0
    %1409 = vmatpush1.msra.mxu0 0.0
    %1410 = vmatprep.subr.mxu0 0.0
    %1411 = vmatpush1.msra.mxu0 0.0
    %1412 = vmatprep.subr.mxu0 0.0
    %1413 = vmatpush1.msra.mxu0 0.0
    %1414 = vmatprep.mubr.f32.mxu0 0.0
    %1415 = vmatmul.mubr.f32.gmra.mrb[0].mxu0 %v1348
    %v1416 = vpop.f32.mrb[0].mxu0
    %v1417 = vadd.f32 0.0, %v1416
    %v1418 = vpop.f32.mrb[0].mxu0
    %1419 = vdwg.mxu0
    %1420 = vrot.lane.b32.xlu0 %v330, 112
    %v1421 = vpop.permute.xlu0 %1420
    %v1424 = vsel %vm337, %v1037, 0
    %1426 = vmatprep.subr.mxu0 0.0
    %1427 = vmatpush1.msra.mxu0 %v1421
    %1428 = vmatprep.subr.mxu0 0.0
    %1429 = vmatpush1.msra.mxu0 0.0
    %1430 = vmatprep.subr.mxu0 0.0
    %1431 = vmatpush1.msra.mxu0 0.0
    %1432 = vmatprep.subr.mxu0 0.0
    %1433 = vmatpush1.msra.mxu0 0.0
    %1434 = vmatprep.subr.mxu0 0.0
    %1435 = vmatpush1.msra.mxu0 0.0
    %1436 = vmatprep.subr.mxu0 0.0
    %1437 = vmatpush1.msra.mxu0 0.0
    %1438 = vmatprep.subr.mxu0 0.0
    %1439 = vmatpush1.msra.mxu0 0.0
    %1440 = vmatprep.subr.mxu0 0.0
    %1441 = vmatpush1.msra.mxu0 0.0
    %1442 = vmatprep.subr.mxu0 0.0
    %1443 = vmatpush1.msra.mxu0 0.0
    %1444 = vmatprep.subr.mxu0 0.0
    %1445 = vmatpush1.msra.mxu0 0.0
    %1446 = vmatprep.subr.mxu0 0.0
    %1447 = vmatpush1.msra.mxu0 0.0
    %1448 = vmatprep.subr.mxu0 0.0
    %1449 = vmatpush1.msra.mxu0 0.0
    %1450 = vmatprep.subr.mxu0 0.0
    %1451 = vmatpush1.msra.mxu0 0.0
    %1452 = vmatprep.subr.mxu0 0.0
    %1453 = vmatpush1.msra.mxu0 0.0
    %1454 = vmatprep.subr.mxu0 0.0
    %1455 = vmatpush1.msra.mxu0 0.0
    %1456 = vmatprep.subr.mxu0 0.0
    %1457 = vmatpush1.msra.mxu0 0.0
    %1458 = vmatprep.subr.mxu0 0.0
    %1459 = vmatpush1.msra.mxu0 0.0
    %1460 = vmatprep.subr.mxu0 0.0
    %1461 = vmatpush1.msra.mxu0 0.0
    %1462 = vmatprep.subr.mxu0 0.0
    %1463 = vmatpush1.msra.mxu0 0.0
    %1464 = vmatprep.subr.mxu0 0.0
    %1465 = vmatpush1.msra.mxu0 0.0
    %1466 = vmatprep.subr.mxu0 0.0
    %1467 = vmatpush1.msra.mxu0 0.0
    %1468 = vmatprep.subr.mxu0 0.0
    %1469 = vmatpush1.msra.mxu0 0.0
    %1470 = vmatprep.subr.mxu0 0.0
    %1471 = vmatpush1.msra.mxu0 0.0
    %1472 = vmatprep.subr.mxu0 0.0
    %1473 = vmatpush1.msra.mxu0 0.0
    %1474 = vmatprep.subr.mxu0 0.0
    %1475 = vmatpush1.msra.mxu0 0.0
    %1476 = vmatprep.subr.mxu0 0.0
    %1477 = vmatpush1.msra.mxu0 0.0
    %1478 = vmatprep.subr.mxu0 0.0
    %1479 = vmatpush1.msra.mxu0 0.0
    %1480 = vmatprep.subr.mxu0 0.0
    %1481 = vmatpush1.msra.mxu0 0.0
    %1482 = vmatprep.subr.mxu0 0.0
    %1483 = vmatpush1.msra.mxu0 0.0
    %1484 = vmatprep.subr.mxu0 0.0
    %1485 = vmatpush1.msra.mxu0 0.0
    %1486 = vmatprep.subr.mxu0 0.0
    %1487 = vmatpush1.msra.mxu0 0.0
    %1488 = vmatprep.subr.mxu0 0.0
    %1489 = vmatpush1.msra.mxu0 0.0
    %1490 = vmatprep.mubr.f32.mxu0 0.0
    %1491 = vmatmul.mubr.f32.gmra.mrb[0].mxu0 %v1424
    %v1492 = vpop.f32.mrb[0].mxu0
    %v1493 = vadd.f32 0.0, %v1492
    %v1494 = vpop.f32.mrb[0].mxu0
    %1495 = vdwg.mxu0
    %1496 = vrot.lane.b32.xlu0 %v332, 112
    %v1497 = vpop.permute.xlu0 %1496
    %v1500 = vsel %vm337, %v1038, 0
    %1502 = vmatprep.subr.mxu0 0.0
    %1503 = vmatpush1.msra.mxu0 %v1497
    %1504 = vmatprep.subr.mxu0 0.0
    %1505 = vmatpush1.msra.mxu0 0.0
    %1506 = vmatprep.subr.mxu0 0.0
    %1507 = vmatpush1.msra.mxu0 0.0
    %1508 = vmatprep.subr.mxu0 0.0
    %1509 = vmatpush1.msra.mxu0 0.0
    %1510 = vmatprep.subr.mxu0 0.0
    %1511 = vmatpush1.msra.mxu0 0.0
    %1512 = vmatprep.subr.mxu0 0.0
    %1513 = vmatpush1.msra.mxu0 0.0
    %1514 = vmatprep.subr.mxu0 0.0
    %1515 = vmatpush1.msra.mxu0 0.0
    %1516 = vmatprep.subr.mxu0 0.0
    %1517 = vmatpush1.msra.mxu0 0.0
    %1518 = vmatprep.subr.mxu0 0.0
    %1519 = vmatpush1.msra.mxu0 0.0
    %1520 = vmatprep.subr.mxu0 0.0
    %1521 = vmatpush1.msra.mxu0 0.0
    %1522 = vmatprep.subr.mxu0 0.0
    %1523 = vmatpush1.msra.mxu0 0.0
    %1524 = vmatprep.subr.mxu0 0.0
    %1525 = vmatpush1.msra.mxu0 0.0
    %1526 = vmatprep.subr.mxu0 0.0
    %1527 = vmatpush1.msra.mxu0 0.0
    %1528 = vmatprep.subr.mxu0 0.0
    %1529 = vmatpush1.msra.mxu0 0.0
    %1530 = vmatprep.subr.mxu0 0.0
    %1531 = vmatpush1.msra.mxu0 0.0
    %1532 = vmatprep.subr.mxu0 0.0
    %1533 = vmatpush1.msra.mxu0 0.0
    %1534 = vmatprep.subr.mxu0 0.0
    %1535 = vmatpush1.msra.mxu0 0.0
    %1536 = vmatprep.subr.mxu0 0.0
    %1537 = vmatpush1.msra.mxu0 0.0
    %1538 = vmatprep.subr.mxu0 0.0
    %1539 = vmatpush1.msra.mxu0 0.0
    %1540 = vmatprep.subr.mxu0 0.0
    %1541 = vmatpush1.msra.mxu0 0.0
    %1542 = vmatprep.subr.mxu0 0.0
    %1543 = vmatpush1.msra.mxu0 0.0
    %1544 = vmatprep.subr.mxu0 0.0
    %1545 = vmatpush1.msra.mxu0 0.0
    %1546 = vmatprep.subr.mxu0 0.0
    %1547 = vmatpush1.msra.mxu0 0.0
    %1548 = vmatprep.subr.mxu0 0.0
    %1549 = vmatpush1.msra.mxu0 0.0
    %1550 = vmatprep.subr.mxu0 0.0
    %1551 = vmatpush1.msra.mxu0 0.0
    %1552 = vmatprep.subr.mxu0 0.0
    %1553 = vmatpush1.msra.mxu0 0.0
    %1554 = vmatprep.subr.mxu0 0.0
    %1555 = vmatpush1.msra.mxu0 0.0
    %1556 = vmatprep.subr.mxu0 0.0
    %1557 = vmatpush1.msra.mxu0 0.0
    %1558 = vmatprep.subr.mxu0 0.0
    %1559 = vmatpush1.msra.mxu0 0.0
    %1560 = vmatprep.subr.mxu0 0.0
    %1561 = vmatpush1.msra.mxu0 0.0
    %1562 = vmatprep.subr.mxu0 0.0
    %1563 = vmatpush1.msra.mxu0 0.0
    %1564 = vmatprep.subr.mxu0 0.0
    %1565 = vmatpush1.msra.mxu0 0.0
    %1566 = vmatprep.mubr.f32.mxu0 0.0
    %1567 = vmatmul.mubr.f32.gmra.mrb[0].mxu0 %v1500
    %v1568 = vpop.f32.mrb[0].mxu0
    %v1569 = vadd.f32 0.0, %v1568
    %v1570 = vpop.f32.mrb[0].mxu0
    %1571 = vdwg.mxu0
    %1572 = vrot.lane.b32.xlu0 %v334, 112
    %v1573 = vpop.permute.xlu0 %1572
    %v1576 = vsel %vm337, %v1039, 0
    %1578 = vmatprep.subr.mxu0 0.0
    %1579 = vmatpush1.msra.mxu0 %v1573
    %1580 = vmatprep.subr.mxu0 0.0
    %1581 = vmatpush1.msra.mxu0 0.0
    %1582 = vmatprep.subr.mxu0 0.0
    %1583 = vmatpush1.msra.mxu0 0.0
    %1584 = vmatprep.subr.mxu0 0.0
    %1585 = vmatpush1.msra.mxu0 0.0
    %1586 = vmatprep.subr.mxu0 0.0
    %1587 = vmatpush1.msra.mxu0 0.0
    %1588 = vmatprep.subr.mxu0 0.0
    %1589 = vmatpush1.msra.mxu0 0.0
    %1590 = vmatprep.subr.mxu0 0.0
    %1591 = vmatpush1.msra.mxu0 0.0
    %1592 = vmatprep.subr.mxu0 0.0
    %1593 = vmatpush1.msra.mxu0 0.0
    %1594 = vmatprep.subr.mxu0 0.0
    %1595 = vmatpush1.msra.mxu0 0.0
    %1596 = vmatprep.subr.mxu0 0.0
    %1597 = vmatpush1.msra.mxu0 0.0
    %1598 = vmatprep.subr.mxu0 0.0
    %1599 = vmatpush1.msra.mxu0 0.0
    %1600 = vmatprep.subr.mxu0 0.0
    %1601 = vmatpush1.msra.mxu0 0.0
    %1602 = vmatprep.subr.mxu0 0.0
    %1603 = vmatpush1.msra.mxu0 0.0
    %1604 = vmatprep.subr.mxu0 0.0
    %1605 = vmatpush1.msra.mxu0 0.0
    %1606 = vmatprep.subr.mxu0 0.0
    %1607 = vmatpush1.msra.mxu0 0.0
    %1608 = vmatprep.subr.mxu0 0.0
    %1609 = vmatpush1.msra.mxu0 0.0
    %1610 = vmatprep.subr.mxu0 0.0
    %1611 = vmatpush1.msra.mxu0 0.0
    %1612 = vmatprep.subr.mxu0 0.0
    %1613 = vmatpush1.msra.mxu0 0.0
    %1614 = vmatprep.subr.mxu0 0.0
    %1615 = vmatpush1.msra.mxu0 0.0
    %1616 = vmatprep.subr.mxu0 0.0
    %1617 = vmatpush1.msra.mxu0 0.0
    %1618 = vmatprep.subr.mxu0 0.0
    %1619 = vmatpush1.msra.mxu0 0.0
    %1620 = vmatprep.subr.mxu0 0.0
    %1621 = vmatpush1.msra.mxu0 0.0
    %1622 = vmatprep.subr.mxu0 0.0
    %1623 = vmatpush1.msra.mxu0 0.0
    %1624 = vmatprep.subr.mxu0 0.0
    %1625 = vmatpush1.msra.mxu0 0.0
    %1626 = vmatprep.subr.mxu0 0.0
    %1627 = vmatpush1.msra.mxu0 0.0
    %1628 = vmatprep.subr.mxu0 0.0
    %1629 = vmatpush1.msra.mxu0 0.0
    %1630 = vmatprep.subr.mxu0 0.0
    %1631 = vmatpush1.msra.mxu0 0.0
    %1632 = vmatprep.subr.mxu0 0.0
    %1633 = vmatpush1.msra.mxu0 0.0
    %1634 = vmatprep.subr.mxu0 0.0
    %1635 = vmatpush1.msra.mxu0 0.0
    %1636 = vmatprep.subr.mxu0 0.0
    %1637 = vmatpush1.msra.mxu0 0.0
    %1638 = vmatprep.subr.mxu0 0.0
    %1639 = vmatpush1.msra.mxu0 0.0
    %1640 = vmatprep.subr.mxu0 0.0
    %1641 = vmatpush1.msra.mxu0 0.0
    %1642 = vmatprep.mubr.f32.mxu0 0.0
    %1643 = vmatmul.mubr.f32.gmra.mrb[0].mxu0 %v1576
    %v1644 = vpop.f32.mrb[0].mxu0
    %v1645 = vadd.f32 0.0, %v1644
    %v1646 = vpop.f32.mrb[0].mxu0
    %1647 = vdwg.mxu0
    %1650 = vrot.lane.b32.xlu0 %v1265, 8
    %v1651 = vpop.permute.xlu0 %1650
    %1652 = vrot.lane.b32.xlu0 %v1341, 8
    %v1653 = vpop.permute.xlu0 %1652
    %1658 = vrot.lane.b32.xlu0 %v1417, 16
    %v1659 = vpop.permute.xlu0 %1658
    %1660 = vrot.lane.b32.xlu0 %v1493, 16
    %v1661 = vpop.permute.xlu0 %1660
    %1666 = vrot.lane.b32.xlu0 %v1569, 24
    %v1667 = vpop.permute.xlu0 %1666
    %1668 = vrot.lane.b32.xlu0 %v1645, 24
    %v1669 = vpop.permute.xlu0 %1668
    %v1672 = vsel %vm337, %v1113, %v1651
    %v1673 = vsel %vm337, %v1189, %v1653
    %vm1674 = vcmask 130048
    %v1675 = vsel %vm1674, %v1672, %v1659
    %v1676 = vsel %vm1674, %v1673, %v1661
    %vm1677 = vcmask 195584
    %v1678 = vsel %vm1677, %v1675, %v1667
    %v1679 = vsel %vm1677, %v1676, %v1669
    %v1680 = vpack.c.bf16 %v1679, %v1678
    %v1681 = vld [vmem:[#allocation2 + $0x60] sm:$0xf]
    %v1682 = vld [vmem:[#allocation2 + $0x64] sm:$0xf]
    %v1683 = vld [vmem:[#allocation2 + $0x68] sm:$0xf]
    %v1684 = vld [vmem:[#allocation2 + $0x6c] sm:$0xf]
    %v1689 = vunpack.c.l.b16 %v1681
    %v1690 = vunpack.c.l.b16 %v1682
    %v1691 = vunpack.c.l.b16 %v1683
    %v1692 = vunpack.c.l.b16 %v1684
    %v1693 = vpack.c.b16 %v1690, %v1689
    %v1694 = vpack.c.b16 %v1692, %v1691
    %v1698 = vsel %vm238, %v1680, 0
    %1700 = vmatprep.subr.bf16.mxu0 0
    %1701 = vmatpush1.bf16.msra.mxu0 %v1693
    %1702 = vmatprep.subr.bf16.mxu0 0
    %1703 = vmatpush1.bf16.msra.mxu0 %v1694
    %1704 = vmatprep.subr.bf16.mxu0 0
    %1705 = vmatpush1.bf16.msra.mxu0 0
    %1706 = vmatprep.subr.bf16.mxu0 0
    %1707 = vmatpush1.bf16.msra.mxu0 0
    %1708 = vmatprep.subr.bf16.mxu0 0
    %1709 = vmatpush1.bf16.msra.mxu0 0
    %1710 = vmatprep.subr.bf16.mxu0 0
    %1711 = vmatpush1.bf16.msra.mxu0 0
    %1712 = vmatprep.subr.bf16.mxu0 0
    %1713 = vmatpush1.bf16.msra.mxu0 0
    %1714 = vmatprep.subr.bf16.mxu0 0
    %1715 = vmatpush1.bf16.msra.mxu0 0
    %1716 = vmatprep.subr.bf16.mxu0 0
    %1717 = vmatpush1.bf16.msra.mxu0 0
    %1718 = vmatprep.subr.bf16.mxu0 0
    %1719 = vmatpush1.bf16.msra.mxu0 0
    %1720 = vmatprep.subr.bf16.mxu0 0
    %1721 = vmatpush1.bf16.msra.mxu0 0
    %1722 = vmatprep.subr.bf16.mxu0 0
    %1723 = vmatpush1.bf16.msra.mxu0 0
    %1724 = vmatprep.subr.bf16.mxu0 0
    %1725 = vmatpush1.bf16.msra.mxu0 0
    %1726 = vmatprep.subr.bf16.mxu0 0
    %1727 = vmatpush1.bf16.msra.mxu0 0
    %1728 = vmatprep.subr.bf16.mxu0 0
    %1729 = vmatpush1.bf16.msra.mxu0 0
    %1730 = vmatprep.subr.bf16.mxu0 0
    %1731 = vmatpush1.bf16.msra.mxu0 0
    %1732 = vmatprep.mubr.bf16.mxu0 0
    %1733 = vmatmul.mubr.bf16.gmra.mrb[0].mxu0 %v1698
    %v1734 = vpop.f32.mrb[0].mxu0
    %v1735 = vadd.f32 0.0, %v1734
    %v1736 = vpop.f32.mrb[0].mxu0
    %v1737 = vpop.f32.mrb[0].mxu0
    %v1738 = vadd.f32 0.0, %v1737
    %v1739 = vpop.f32.mrb[0].mxu0
    %1740 = vdwg.mxu0
    %v1741 = vadd.f32 %v174, %v1735
    %v1742 = vadd.f32 %v177, %v1738
    %v1743 = vmul.f32 %v1741, %v1741
    %v1744 = vmul.f32 %v1742, %v1742
    %v1745 = vsel %vm238, %v1743, 0.0
    %1746 = vadd.xlane.f32.xlu0 %v1745
    %v1747 = vpop.xlane.xlu0 %1746
    %v1748 = vsel %vm238, %v1744, 0.0
    %1749 = vadd.xlane.f32.xlu0 %v1748
    %v1750 = vpop.xlane.xlu0 %1749
    %v1751 = vmul.f32 %v1747, %v245
    %v1752 = vmul.f32 %v1750, %v245
    %v1753 = vadd.f32 %v1751, 1e-06
    %v1754 = vadd.f32 %v1752, 1e-06
    %v1755 = vrsqrt.pop %v1753
    %v1756 = vrsqrt.pop %v1754
    %v1757 = vmul.f32 %v1741, %v1755
    %v1758 = vmul.f32 %v1742, %v1756
    %v1759 = vlaneseq
    %v1760 = vshrl.u32 %v1759, 7
    %v1761 = vsub.s32 1, %v1760
    %v1762 = vrot.slane %v42, %v1761
    %v1763 = vmul.f32 %v1757, %v1762
    %v1764 = vmul.f32 %v1758, %v1762
    %v1765 = vpack.c.bf16 %v1764, %v1763
    %v1766 = vld [vmem:[#allocation2 + $0x70] sm:$0xf]
    %v1767 = vld [vmem:[#allocation2 + $0x74] sm:$0xf]
    %v1768 = vld [vmem:[#allocation2 + $0x78] sm:$0xf]
    %v1769 = vld [vmem:[#allocation2 + $0x7c] sm:$0xf]
    %v1774 = vunpack.c.l.b16 %v1766
    %v1775 = vunpack.c.l.b16 %v1767
    %v1776 = vunpack.c.l.b16 %v1768
    %v1777 = vunpack.c.l.b16 %v1769
    %v1778 = vpack.c.b16 %v1775, %v1774
    %v1779 = vpack.c.b16 %v1777, %v1776
    %v1783 = vsel %vm238, %v1765, 0
    %1785 = vmatprep.subr.bf16.mxu0 0
    %1786 = vmatpush1.bf16.msra.mxu0 %v1778
    %1787 = vmatprep.subr.bf16.mxu0 0
    %1788 = vmatpush1.bf16.msra.mxu0 %v1779
    %1789 = vmatprep.subr.bf16.mxu0 0
    %1790 = vmatpush1.bf16.msra.mxu0 0
    %1791 = vmatprep.subr.bf16.mxu0 0
    %1792 = vmatpush1.bf16.msra.mxu0 0
    %1793 = vmatprep.subr.bf16.mxu0 0
    %1794 = vmatpush1.bf16.msra.mxu0 0
    %1795 = vmatprep.subr.bf16.mxu0 0
    %1796 = vmatpush1.bf16.msra.mxu0 0
    %1797 = vmatprep.subr.bf16.mxu0 0
    %1798 = vmatpush1.bf16.msra.mxu0 0
    %1799 = vmatprep.subr.bf16.mxu0 0
    %1800 = vmatpush1.bf16.msra.mxu0 0
    %1801 = vmatprep.subr.bf16.mxu0 0
    %1802 = vmatpush1.bf16.msra.mxu0 0
    %1803 = vmatprep.subr.bf16.mxu0 0
    %1804 = vmatpush1.bf16.msra.mxu0 0
    %1805 = vmatprep.subr.bf16.mxu0 0
    %1806 = vmatpush1.bf16.msra.mxu0 0
    %1807 = vmatprep.subr.bf16.mxu0 0
    %1808 = vmatpush1.bf16.msra.mxu0 0
    %1809 = vmatprep.subr.bf16.mxu0 0
    %1810 = vmatpush1.bf16.msra.mxu0 0
    %1811 = vmatprep.subr.bf16.mxu0 0
    %1812 = vmatpush1.bf16.msra.mxu0 0
    %1813 = vmatprep.subr.bf16.mxu0 0
    %1814 = vmatpush1.bf16.msra.mxu0 0
    %1815 = vmatprep.subr.bf16.mxu0 0
    %1816 = vmatpush1.bf16.msra.mxu0 0
    %1817 = vmatprep.mubr.bf16.mxu0 0
    %1818 = vmatmul.mubr.bf16.gmra.mrb[0].mxu0 %v1783
    %v1819 = vpop.f32.mrb[0].mxu0
    %v1820 = vadd.f32 0.0, %v1819
    %v1821 = vpop.f32.mrb[0].mxu0
    %v1822 = vpop.f32.mrb[0].mxu0
    %v1823 = vadd.f32 0.0, %v1822
    %v1824 = vpop.f32.mrb[0].mxu0
    %1825 = vdwg.mxu0
    %v1826 = vmax.f32 %v1820, 0.0
    %v1827 = vmax.f32 %v1823, 0.0
    %v1828 = vpack.c.bf16 %v1827, %v1826
    %v1829 = vld [vmem:[#allocation2 + $0x80] sm:$0xf]
    %v1830 = vld [vmem:[#allocation2 + $0x84] sm:$0xf]
    %v1831 = vld [vmem:[#allocation2 + $0x88] sm:$0xf]
    %v1832 = vld [vmem:[#allocation2 + $0x8c] sm:$0xf]
    %v1833 = vld [vmem:[#allocation2 + $0x90] sm:$0xf]
    %v1834 = vld [vmem:[#allocation2 + $0x94] sm:$0xf]
    %v1835 = vld [vmem:[#allocation2 + $0x98] sm:$0xf]
    %v1836 = vld [vmem:[#allocation2 + $0x9c] sm:$0xf]
    %v1837 = vld [vmem:[#allocation2 + $0xa0] sm:$0xf]
    %v1838 = vld [vmem:[#allocation2 + $0xa4] sm:$0xf]
    %v1839 = vld [vmem:[#allocation2 + $0xa8] sm:$0xf]
    %v1840 = vld [vmem:[#allocation2 + $0xac] sm:$0xf]
    %v1841 = vld [vmem:[#allocation2 + $0xb0] sm:$0xf]
    %v1842 = vld [vmem:[#allocation2 + $0xb4] sm:$0xf]
    %v1843 = vld [vmem:[#allocation2 + $0xb8] sm:$0xf]
    %v1844 = vld [vmem:[#allocation2 + $0xbc] sm:$0xf]
    %v1861 = vunpack.c.l.b16 %v1829
    %v1862 = vunpack.c.l.b16 %v1830
    %v1863 = vunpack.c.l.b16 %v1831
    %v1864 = vunpack.c.l.b16 %v1832
    %v1865 = vunpack.c.l.b16 %v1833
    %v1866 = vunpack.c.l.b16 %v1834
    %v1867 = vunpack.c.l.b16 %v1835
    %v1868 = vunpack.c.l.b16 %v1836
    %v1869 = vunpack.c.l.b16 %v1837
    %v1870 = vunpack.c.l.b16 %v1838
    %v1871 = vunpack.c.l.b16 %v1839
    %v1872 = vunpack.c.l.b16 %v1840
    %v1873 = vunpack.c.l.b16 %v1841
    %v1874 = vunpack.c.l.b16 %v1842
    %v1875 = vunpack.c.l.b16 %v1843
    %v1876 = vunpack.c.l.b16 %v1844
    %v1877 = vpack.c.b16 %v1862, %v1861
    %v1878 = vpack.c.b16 %v1864, %v1863
    %v1879 = vpack.c.b16 %v1866, %v1865
    %v1880 = vpack.c.b16 %v1868, %v1867
    %v1881 = vpack.c.b16 %v1870, %v1869
    %v1882 = vpack.c.b16 %v1872, %v1871
    %v1883 = vpack.c.b16 %v1874, %v1873
    %v1884 = vpack.c.b16 %v1876, %v1875
    %1893 = vmatprep.subr.bf16.mxu0 0
    %1894 = vmatpush1.bf16.msra.mxu0 %v1877
    %1895 = vmatprep.subr.bf16.mxu0 0
    %1896 = vmatpush1.bf16.msra.mxu0 %v1878
    %1897 = vmatprep.subr.bf16.mxu0 0
    %1898 = vmatpush1.bf16.msra.mxu0 %v1879
    %1899 = vmatprep.subr.bf16.mxu0 0
    %1900 = vmatpush1.bf16.msra.mxu0 %v1880
    %1901 = vmatprep.subr.bf16.mxu0 0
    %1902 = vmatpush1.bf16.msra.mxu0 %v1881
    %1903 = vmatprep.subr.bf16.mxu0 0
    %1904 = vmatpush1.bf16.msra.mxu0 %v1882
    %1905 = vmatprep.subr.bf16.mxu0 0
    %1906 = vmatpush1.bf16.msra.mxu0 %v1883
    %1907 = vmatprep.subr.bf16.mxu0 0
    %1908 = vmatpush1.bf16.msra.mxu0 %v1884
    %1909 = vmatprep.subr.bf16.mxu0 0
    %1910 = vmatpush1.bf16.msra.mxu0 0
    %1911 = vmatprep.subr.bf16.mxu0 0
    %1912 = vmatpush1.bf16.msra.mxu0 0
    %1913 = vmatprep.subr.bf16.mxu0 0
    %1914 = vmatpush1.bf16.msra.mxu0 0
    %1915 = vmatprep.subr.bf16.mxu0 0
    %1916 = vmatpush1.bf16.msra.mxu0 0
    %1917 = vmatprep.subr.bf16.mxu0 0
    %1918 = vmatpush1.bf16.msra.mxu0 0
    %1919 = vmatprep.subr.bf16.mxu0 0
    %1920 = vmatpush1.bf16.msra.mxu0 0
    %1921 = vmatprep.subr.bf16.mxu0 0
    %1922 = vmatpush1.bf16.msra.mxu0 0
    %1923 = vmatprep.subr.bf16.mxu0 0
    %1924 = vmatpush1.bf16.msra.mxu0 0
    %1925 = vmatprep.mubr.bf16.mxu0 0
    %1926 = vmatmul.mubr.bf16.gmra.mrb[0].mxu0 %v1828
    %v1927 = vpop.f32.mrb[0].mxu0
    %v1928 = vadd.f32 0.0, %v1927
    %v1929 = vpop.f32.mrb[0].mxu0
    %v1930 = vpop.f32.mrb[0].mxu0
    %v1931 = vadd.f32 0.0, %v1930
    %v1932 = vpop.f32.mrb[0].mxu0
    %1933 = vdwg.mxu0
    %v1934 = vadd.f32 %v1741, %v1928
    %v1935 = vadd.f32 %v1742, %v1931
    %v1936 = vmul.f32 %v1934, %v1934
    %v1937 = vmul.f32 %v1935, %v1935
    %v1938 = vsel %vm238, %v1936, 0.0
    %1939 = vadd.xlane.f32.xlu0 %v1938
    %v1940 = vpop.xlane.xlu0 %1939
    %v1941 = vsel %vm238, %v1937, 0.0
    %1942 = vadd.xlane.f32.xlu0 %v1941
    %v1943 = vpop.xlane.xlu0 %1942
    %v1944 = vmul.f32 %v1940, %v245
    %v1945 = vmul.f32 %v1943, %v245
    %v1946 = vadd.f32 %v1944, 1e-06
    %v1947 = vadd.f32 %v1945, 1e-06
    %v1948 = vrsqrt.pop %v1946
    %v1949 = vrsqrt.pop %v1947
    %v1950 = vmul.f32 %v1934, %v1948
    %v1951 = vmul.f32 %v1935, %v1949
    %v1952 = vlaneseq
    %v1953 = vshrl.u32 %v1952, 7
    %v1954 = vsub.s32 2, %v1953
    %v1955 = vrot.slane %v42, %v1954
    %v1956 = vmul.f32 %v1950, %v1955
    %v1957 = vmul.f32 %v1951, %v1955
    %v1958 = vpack.c.bf16 %v1957, %v1956
    %v1959 = vmul.f32 %v182, %v182
    %v1960 = vmul.f32 %v185, %v185
    %v1961 = vsel %vm238, %v1959, 0.0
    %1962 = vadd.xlane.f32.xlu0 %v1961
    %v1963 = vpop.xlane.xlu0 %1962
    %v1964 = vsel %vm238, %v1960, 0.0
    %1965 = vadd.xlane.f32.xlu0 %v1964
    %v1966 = vpop.xlane.xlu0 %1965
    %v1967 = vmul.f32 %v1963, %v245
    %v1968 = vmul.f32 %v1966, %v245
    %v1969 = vadd.f32 %v1967, 1e-06
    %v1970 = vadd.f32 %v1968, 1e-06
    %v1971 = vrsqrt.pop %v1969
    %v1972 = vrsqrt.pop %v1970
    %v1973 = vmul.f32 %v182, %v1971
    %v1974 = vmul.f32 %v185, %v1972
    %v1975 = vlaneseq
    %v1976 = vshrl.u32 %v1975, 7
    %v1977 = vsub.s32 3, %v1976
    %v1978 = vrot.slane %v42, %v1977
    %v1979 = vmul.f32 %v1973, %v1978
    %v1980 = vmul.f32 %v1974, %v1978
    %v1981 = vpack.c.bf16 %v1980, %v1979
    %v1982 = vld [vmem:[#allocation2 + $0xc0] sm:$0xf]
    %v1983 = vld [vmem:[#allocation2 + $0xc4] sm:$0xf]
    %v1984 = vld [vmem:[#allocation2 + $0xc8] sm:$0xf]
    %v1985 = vld [vmem:[#allocation2 + $0xcc] sm:$0xf]
    %v1990 = vunpack.c.l.b16 %v1982
    %v1991 = vunpack.c.l.b16 %v1983
    %v1992 = vunpack.c.l.b16 %v1984
    %v1993 = vunpack.c.l.b16 %v1985
    %v1994 = vpack.c.b16 %v1991, %v1990
    %v1995 = vpack.c.b16 %v1993, %v1992
    %v1999 = vsel %vm238, %v1981, 0
    %2001 = vmatprep.subr.bf16.mxu0 0
    %2002 = vmatpush1.bf16.msra.mxu0 %v1994
    %2003 = vmatprep.subr.bf16.mxu0 0
    %2004 = vmatpush1.bf16.msra.mxu0 %v1995
    %2005 = vmatprep.subr.bf16.mxu0 0
    %2006 = vmatpush1.bf16.msra.mxu0 0
    %2007 = vmatprep.subr.bf16.mxu0 0
    %2008 = vmatpush1.bf16.msra.mxu0 0
    %2009 = vmatprep.subr.bf16.mxu0 0
    %2010 = vmatpush1.bf16.msra.mxu0 0
    %2011 = vmatprep.subr.bf16.mxu0 0
    %2012 = vmatpush1.bf16.msra.mxu0 0
    %2013 = vmatprep.subr.bf16.mxu0 0
    %2014 = vmatpush1.bf16.msra.mxu0 0
    %2015 = vmatprep.subr.bf16.mxu0 0
    %2016 = vmatpush1.bf16.msra.mxu0 0
    %2017 = vmatprep.subr.bf16.mxu0 0
    %2018 = vmatpush1.bf16.msra.mxu0 0
    %2019 = vmatprep.subr.bf16.mxu0 0
    %2020 = vmatpush1.bf16.msra.mxu0 0
    %2021 = vmatprep.subr.bf16.mxu0 0
    %2022 = vmatpush1.bf16.msra.mxu0 0
    %2023 = vmatprep.subr.bf16.mxu0 0
    %2024 = vmatpush1.bf16.msra.mxu0 0
    %2025 = vmatprep.subr.bf16.mxu0 0
    %2026 = vmatpush1.bf16.msra.mxu0 0
    %2027 = vmatprep.subr.bf16.mxu0 0
    %2028 = vmatpush1.bf16.msra.mxu0 0
    %2029 = vmatprep.subr.bf16.mxu0 0
    %2030 = vmatpush1.bf16.msra.mxu0 0
    %2031 = vmatprep.subr.bf16.mxu0 0
    %2032 = vmatpush1.bf16.msra.mxu0 0
    %2033 = vmatprep.mubr.bf16.mxu0 0
    %2034 = vmatmul.mubr.bf16.gmra.mrb[0].mxu0 %v1999
    %v2035 = vpop.f32.mrb[0].mxu0
    %v2036 = vadd.f32 0.0, %v2035
    %v2037 = vpop.f32.mrb[0].mxu0
    %v2038 = vpop.f32.mrb[0].mxu0
    %v2039 = vadd.f32 0.0, %v2038
    %v2040 = vpop.f32.mrb[0].mxu0
    %2041 = vdwg.mxu0
    %2044 = vrot.lane.b32.xlu0 %v2036, 104
    %v2045 = vpop.permute.xlu0 %2044
    %2046 = vrot.lane.b32.xlu0 %v2039, 104
    %v2047 = vpop.permute.xlu0 %2046
    %2048 = vrot.lane.b32.xlu0 %v2036, 80
    %v2049 = vpop.permute.xlu0 %2048
    %2050 = vrot.lane.b32.xlu0 %v2039, 80
    %v2051 = vpop.permute.xlu0 %2050
    %2052 = vrot.lane.b32.xlu0 %v2036, 56
    %v2053 = vpop.permute.xlu0 %2052
    %2054 = vrot.lane.b32.xlu0 %v2039, 56
    %v2055 = vpop.permute.xlu0 %2054
    %v2056 = vld [vmem:[%s3] sm:$0xff]
    %v2057 = vld [vmem:[%s3 + $0x8] sm:$0xff]
    %v2058 = vld [vmem:[%s3 + $0x10] sm:$0xff]
    %v2059 = vld [vmem:[%s3 + $0x18] sm:$0xff]
    %2060 = vrot.lane.b32.xlu0 %v2036, 120
    %v2061 = vpop.permute.xlu0 %2060
    %v2062 = vsel %vm337, %v2036, 0
    %v2064 = vsel %vm337, %v2061, 0
    %2066 = vmatprep.subr.mxu0 0.0
    %2067 = vmatpush1.xpose.msra.mxu0 %v2064
    %2068 = vmatprep.subr.mxu0 0.0
    %2069 = vmatpush1.xpose.msra.mxu0 0.0
    %2070 = vmatprep.subr.mxu0 0.0
    %2071 = vmatpush1.xpose.msra.mxu0 0.0
    %2072 = vmatprep.subr.mxu0 0.0
    %2073 = vmatpush1.xpose.msra.mxu0 0.0
    %2074 = vmatprep.subr.mxu0 0.0
    %2075 = vmatpush1.xpose.msra.mxu0 0.0
    %2076 = vmatprep.subr.mxu0 0.0
    %2077 = vmatpush1.xpose.msra.mxu0 0.0
    %2078 = vmatprep.subr.mxu0 0.0
    %2079 = vmatpush1.xpose.msra.mxu0 0.0
    %2080 = vmatprep.subr.mxu0 0.0
    %2081 = vmatpush1.xpose.msra.mxu0 0.0
    %2082 = vmatprep.subr.mxu0 0.0
    %2083 = vmatpush1.xpose.msra.mxu0 0.0
    %2084 = vmatprep.subr.mxu0 0.0
    %2085 = vmatpush1.xpose.msra.mxu0 0.0
    %2086 = vmatprep.subr.mxu0 0.0
    %2087 = vmatpush1.xpose.msra.mxu0 0.0
    %2088 = vmatprep.subr.mxu0 0.0
    %2089 = vmatpush1.xpose.msra.mxu0 0.0
    %2090 = vmatprep.subr.mxu0 0.0
    %2091 = vmatpush1.xpose.msra.mxu0 0.0
    %2092 = vmatprep.subr.mxu0 0.0
    %2093 = vmatpush1.xpose.msra.mxu0 0.0
    %2094 = vmatprep.subr.mxu0 0.0
    %2095 = vmatpush1.xpose.msra.mxu0 0.0
    %2096 = vmatprep.subr.mxu0 0.0
    %2097 = vmatpush1.xpose.msra.mxu0 0.0
    %2098 = vmatprep.subr.mxu0 0.0
    %2099 = vmatpush1.xpose.msra.mxu0 0.0
    %2100 = vmatprep.subr.mxu0 0.0
    %2101 = vmatpush1.xpose.msra.mxu0 0.0
    %2102 = vmatprep.subr.mxu0 0.0
    %2103 = vmatpush1.xpose.msra.mxu0 0.0
    %2104 = vmatprep.subr.mxu0 0.0
    %2105 = vmatpush1.xpose.msra.mxu0 0.0
    %2106 = vmatprep.subr.mxu0 0.0
    %2107 = vmatpush1.xpose.msra.mxu0 0.0
    %2108 = vmatprep.subr.mxu0 0.0
    %2109 = vmatpush1.xpose.msra.mxu0 0.0
    %2110 = vmatprep.subr.mxu0 0.0
    %2111 = vmatpush1.xpose.msra.mxu0 0.0
    %2112 = vmatprep.subr.mxu0 0.0
    %2113 = vmatpush1.xpose.msra.mxu0 0.0
    %2114 = vmatprep.subr.mxu0 0.0
    %2115 = vmatpush1.xpose.msra.mxu0 0.0
    %2116 = vmatprep.subr.mxu0 0.0
    %2117 = vmatpush1.xpose.msra.mxu0 0.0
    %2118 = vmatprep.subr.mxu0 0.0
    %2119 = vmatpush1.xpose.msra.mxu0 0.0
    %2120 = vmatprep.subr.mxu0 0.0
    %2121 = vmatpush1.xpose.msra.mxu0 0.0
    %2122 = vmatprep.subr.mxu0 0.0
    %2123 = vmatpush1.xpose.msra.mxu0 0.0
    %2124 = vmatprep.subr.mxu0 0.0
    %2125 = vmatpush1.xpose.msra.mxu0 0.0
    %2126 = vmatprep.subr.mxu0 0.0
    %2127 = vmatpush1.xpose.msra.mxu0 0.0
    %2128 = vmatprep.subr.mxu0 0.0
    %2129 = vmatpush1.xpose.msra.mxu0 0.0
    %2130 = vmatprep.mubr.f32.mxu0 0.0
    %2131 = vmatmul.mubr.f32.gmra.mrb[0].mxu0 %v2062
    %v2132 = vpop.f32.mrb[0].mxu0
    %v2133 = vadd.f32 0.0, %v2132
    %v2134 = vpop.f32.mrb[0].mxu0
    %2135 = vdwg.mxu0
    %2136 = vrot.lane.b32.xlu0 %v2039, 120
    %v2137 = vpop.permute.xlu0 %2136
    %v2138 = vsel %vm337, %v2039, 0
    %v2140 = vsel %vm337, %v2137, 0
    %2142 = vmatprep.subr.mxu0 0.0
    %2143 = vmatpush1.xpose.msra.mxu0 %v2140
    %2144 = vmatprep.subr.mxu0 0.0
    %2145 = vmatpush1.xpose.msra.mxu0 0.0
    %2146 = vmatprep.subr.mxu0 0.0
    %2147 = vmatpush1.xpose.msra.mxu0 0.0
    %2148 = vmatprep.subr.mxu0 0.0
    %2149 = vmatpush1.xpose.msra.mxu0 0.0
    %2150 = vmatprep.subr.mxu0 0.0
    %2151 = vmatpush1.xpose.msra.mxu0 0.0
    %2152 = vmatprep.subr.mxu0 0.0
    %2153 = vmatpush1.xpose.msra.mxu0 0.0
    %2154 = vmatprep.subr.mxu0 0.0
    %2155 = vmatpush1.xpose.msra.mxu0 0.0
    %2156 = vmatprep.subr.mxu0 0.0
    %2157 = vmatpush1.xpose.msra.mxu0 0.0
    %2158 = vmatprep.subr.mxu0 0.0
    %2159 = vmatpush1.xpose.msra.mxu0 0.0
    %2160 = vmatprep.subr.mxu0 0.0
    %2161 = vmatpush1.xpose.msra.mxu0 0.0
    %2162 = vmatprep.subr.mxu0 0.0
    %2163 = vmatpush1.xpose.msra.mxu0 0.0
    %2164 = vmatprep.subr.mxu0 0.0
    %2165 = vmatpush1.xpose.msra.mxu0 0.0
    %2166 = vmatprep.subr.mxu0 0.0
    %2167 = vmatpush1.xpose.msra.mxu0 0.0
    %2168 = vmatprep.subr.mxu0 0.0
    %2169 = vmatpush1.xpose.msra.mxu0 0.0
    %2170 = vmatprep.subr.mxu0 0.0
    %2171 = vmatpush1.xpose.msra.mxu0 0.0
    %2172 = vmatprep.subr.mxu0 0.0
    %2173 = vmatpush1.xpose.msra.mxu0 0.0
    %2174 = vmatprep.subr.mxu0 0.0
    %2175 = vmatpush1.xpose.msra.mxu0 0.0
    %2176 = vmatprep.subr.mxu0 0.0
    %2177 = vmatpush1.xpose.msra.mxu0 0.0
    %2178 = vmatprep.subr.mxu0 0.0
    %2179 = vmatpush1.xpose.msra.mxu0 0.0
    %2180 = vmatprep.subr.mxu0 0.0
    %2181 = vmatpush1.xpose.msra.mxu0 0.0
    %2182 = vmatprep.subr.mxu0 0.0
    %2183 = vmatpush1.xpose.msra.mxu0 0.0
    %2184 = vmatprep.subr.mxu0 0.0
    %2185 = vmatpush1.xpose.msra.mxu0 0.0
    %2186 = vmatprep.subr.mxu0 0.0
    %2187 = vmatpush1.xpose.msra.mxu0 0.0
    %2188 = vmatprep.subr.mxu0 0.0
    %2189 = vmatpush1.xpose.msra.mxu0 0.0
    %2190 = vmatprep.subr.mxu0 0.0
    %2191 = vmatpush1.xpose.msra.mxu0 0.0
    %2192 = vmatprep.subr.mxu0 0.0
    %2193 = vmatpush1.xpose.msra.mxu0 0.0
    %2194 = vmatprep.subr.mxu0 0.0
    %2195 = vmatpush1.xpose.msra.mxu0 0.0
    %2196 = vmatprep.subr.mxu0 0.0
    %2197 = vmatpush1.xpose.msra.mxu0 0.0
    %2198 = vmatprep.subr.mxu0 0.0
    %2199 = vmatpush1.xpose.msra.mxu0 0.0
    %2200 = vmatprep.subr.mxu0 0.0
    %2201 = vmatpush1.xpose.msra.mxu0 0.0
    %2202 = vmatprep.subr.mxu0 0.0
    %2203 = vmatpush1.xpose.msra.mxu0 0.0
    %2204 = vmatprep.subr.mxu0 0.0
    %2205 = vmatpush1.xpose.msra.mxu0 0.0
    %2206 = vmatprep.mubr.f32.mxu0 0.0
    %2207 = vmatmul.mubr.f32.gmra.mrb[0].mxu0 %v2138
    %v2208 = vpop.f32.mrb[0].mxu0
    %v2209 = vadd.f32 0.0, %v2208
    %v2210 = vpop.f32.mrb[0].mxu0
    %2211 = vdwg.mxu0
    %2212 = vrot.lane.b32.xlu0 %v2045, 120
    %v2213 = vpop.permute.xlu0 %2212
    %v2214 = vsel %vm337, %v2045, 0
    %v2216 = vsel %vm337, %v2213, 0
    %2218 = vmatprep.subr.mxu0 0.0
    %2219 = vmatpush1.xpose.msra.mxu0 %v2216
    %2220 = vmatprep.subr.mxu0 0.0
    %2221 = vmatpush1.xpose.msra.mxu0 0.0
    %2222 = vmatprep.subr.mxu0 0.0
    %2223 = vmatpush1.xpose.msra.mxu0 0.0
    %2224 = vmatprep.subr.mxu0 0.0
    %2225 = vmatpush1.xpose.msra.mxu0 0.0
    %2226 = vmatprep.subr.mxu0 0.0
    %2227 = vmatpush1.xpose.msra.mxu0 0.0
    %2228 = vmatprep.subr.mxu0 0.0
    %2229 = vmatpush1.xpose.msra.mxu0 0.0
    %2230 = vmatprep.subr.mxu0 0.0
    %2231 = vmatpush1.xpose.msra.mxu0 0.0
    %2232 = vmatprep.subr.mxu0 0.0
    %2233 = vmatpush1.xpose.msra.mxu0 0.0
    %2234 = vmatprep.subr.mxu0 0.0
    %2235 = vmatpush1.xpose.msra.mxu0 0.0
    %2236 = vmatprep.subr.mxu0 0.0
    %2237 = vmatpush1.xpose.msra.mxu0 0.0
    %2238 = vmatprep.subr.mxu0 0.0
    %2239 = vmatpush1.xpose.msra.mxu0 0.0
    %2240 = vmatprep.subr.mxu0 0.0
    %2241 = vmatpush1.xpose.msra.mxu0 0.0
    %2242 = vmatprep.subr.mxu0 0.0
    %2243 = vmatpush1.xpose.msra.mxu0 0.0
    %2244 = vmatprep.subr.mxu0 0.0
    %2245 = vmatpush1.xpose.msra.mxu0 0.0
    %2246 = vmatprep.subr.mxu0 0.0
    %2247 = vmatpush1.xpose.msra.mxu0 0.0
    %2248 = vmatprep.subr.mxu0 0.0
    %2249 = vmatpush1.xpose.msra.mxu0 0.0
    %2250 = vmatprep.subr.mxu0 0.0
    %2251 = vmatpush1.xpose.msra.mxu0 0.0
    %2252 = vmatprep.subr.mxu0 0.0
    %2253 = vmatpush1.xpose.msra.mxu0 0.0
    %2254 = vmatprep.subr.mxu0 0.0
    %2255 = vmatpush1.xpose.msra.mxu0 0.0
    %2256 = vmatprep.subr.mxu0 0.0
    %2257 = vmatpush1.xpose.msra.mxu0 0.0
    %2258 = vmatprep.subr.mxu0 0.0
    %2259 = vmatpush1.xpose.msra.mxu0 0.0
    %2260 = vmatprep.subr.mxu0 0.0
    %2261 = vmatpush1.xpose.msra.mxu0 0.0
    %2262 = vmatprep.subr.mxu0 0.0
    %2263 = vmatpush1.xpose.msra.mxu0 0.0
    %2264 = vmatprep.subr.mxu0 0.0
    %2265 = vmatpush1.xpose.msra.mxu0 0.0
    %2266 = vmatprep.subr.mxu0 0.0
    %2267 = vmatpush1.xpose.msra.mxu0 0.0
    %2268 = vmatprep.subr.mxu0 0.0
    %2269 = vmatpush1.xpose.msra.mxu0 0.0
    %2270 = vmatprep.subr.mxu0 0.0
    %2271 = vmatpush1.xpose.msra.mxu0 0.0
    %2272 = vmatprep.subr.mxu0 0.0
    %2273 = vmatpush1.xpose.msra.mxu0 0.0
    %2274 = vmatprep.subr.mxu0 0.0
    %2275 = vmatpush1.xpose.msra.mxu0 0.0
    %2276 = vmatprep.subr.mxu0 0.0
    %2277 = vmatpush1.xpose.msra.mxu0 0.0
    %2278 = vmatprep.subr.mxu0 0.0
    %2279 = vmatpush1.xpose.msra.mxu0 0.0
    %2280 = vmatprep.subr.mxu0 0.0
    %2281 = vmatpush1.xpose.msra.mxu0 0.0
    %2282 = vmatprep.mubr.f32.mxu0 0.0
    %2283 = vmatmul.mubr.f32.gmra.mrb[0].mxu0 %v2214
    %v2284 = vpop.f32.mrb[0].mxu0
    %v2285 = vadd.f32 0.0, %v2284
    %v2286 = vpop.f32.mrb[0].mxu0
    %2287 = vdwg.mxu0
    %2288 = vrot.lane.b32.xlu0 %v2047, 120
    %v2289 = vpop.permute.xlu0 %2288
    %v2290 = vsel %vm337, %v2047, 0
    %v2292 = vsel %vm337, %v2289, 0
    %2294 = vmatprep.subr.mxu0 0.0
    %2295 = vmatpush1.xpose.msra.mxu0 %v2292
    %2296 = vmatprep.subr.mxu0 0.0
    %2297 = vmatpush1.xpose.msra.mxu0 0.0
    %2298 = vmatprep.subr.mxu0 0.0
    %2299 = vmatpush1.xpose.msra.mxu0 0.0
    %2300 = vmatprep.subr.mxu0 0.0
    %2301 = vmatpush1.xpose.msra.mxu0 0.0
    %2302 = vmatprep.subr.mxu0 0.0
    %2303 = vmatpush1.xpose.msra.mxu0 0.0
    %2304 = vmatprep.subr.mxu0 0.0
    %2305 = vmatpush1.xpose.msra.mxu0 0.0
    %2306 = vmatprep.subr.mxu0 0.0
    %2307 = vmatpush1.xpose.msra.mxu0 0.0
    %2308 = vmatprep.subr.mxu0 0.0
    %2309 = vmatpush1.xpose.msra.mxu0 0.0
    %2310 = vmatprep.subr.mxu0 0.0
    %2311 = vmatpush1.xpose.msra.mxu0 0.0
    %2312 = vmatprep.subr.mxu0 0.0
    %2313 = vmatpush1.xpose.msra.mxu0 0.0
    %2314 = vmatprep.subr.mxu0 0.0
    %2315 = vmatpush1.xpose.msra.mxu0 0.0
    %2316 = vmatprep.subr.mxu0 0.0
    %2317 = vmatpush1.xpose.msra.mxu0 0.0
    %2318 = vmatprep.subr.mxu0 0.0
    %2319 = vmatpush1.xpose.msra.mxu0 0.0
    %2320 = vmatprep.subr.mxu0 0.0
    %2321 = vmatpush1.xpose.msra.mxu0 0.0
    %2322 = vmatprep.subr.mxu0 0.0
    %2323 = vmatpush1.xpose.msra.mxu0 0.0
    %2324 = vmatprep.subr.mxu0 0.0
    %2325 = vmatpush1.xpose.msra.mxu0 0.0
    %2326 = vmatprep.subr.mxu0 0.0
    %2327 = vmatpush1.xpose.msra.mxu0 0.0
    %2328 = vmatprep.subr.mxu0 0.0
    %2329 = vmatpush1.xpose.msra.mxu0 0.0
    %2330 = vmatprep.subr.mxu0 0.0
    %2331 = vmatpush1.xpose.msra.mxu0 0.0
    %2332 = vmatprep.subr.mxu0 0.0
    %2333 = vmatpush1.xpose.msra.mxu0 0.0
    %2334 = vmatprep.subr.mxu0 0.0
    %2335 = vmatpush1.xpose.msra.mxu0 0.0
    %2336 = vmatprep.subr.mxu0 0.0
    %2337 = vmatpush1.xpose.msra.mxu0 0.0
    %2338 = vmatprep.subr.mxu0 0.0
    %2339 = vmatpush1.xpose.msra.mxu0 0.0
    %2340 = vmatprep.subr.mxu0 0.0
    %2341 = vmatpush1.xpose.msra.mxu0 0.0
    %2342 = vmatprep.subr.mxu0 0.0
    %2343 = vmatpush1.xpose.msra.mxu0 0.0
    %2344 = vmatprep.subr.mxu0 0.0
    %2345 = vmatpush1.xpose.msra.mxu0 0.0
    %2346 = vmatprep.subr.mxu0 0.0
    %2347 = vmatpush1.xpose.msra.mxu0 0.0
    %2348 = vmatprep.subr.mxu0 0.0
    %2349 = vmatpush1.xpose.msra.mxu0 0.0
    %2350 = vmatprep.subr.mxu0 0.0
    %2351 = vmatpush1.xpose.msra.mxu0 0.0
    %2352 = vmatprep.subr.mxu0 0.0
    %2353 = vmatpush1.xpose.msra.mxu0 0.0
    %2354 = vmatprep.subr.mxu0 0.0
    %2355 = vmatpush1.xpose.msra.mxu0 0.0
    %2356 = vmatprep.subr.mxu0 0.0
    %2357 = vmatpush1.xpose.msra.mxu0 0.0
    %2358 = vmatprep.mubr.f32.mxu0 0.0
    %2359 = vmatmul.mubr.f32.gmra.mrb[0].mxu0 %v2290
    %v2360 = vpop.f32.mrb[0].mxu0
    %v2361 = vadd.f32 0.0, %v2360
    %v2362 = vpop.f32.mrb[0].mxu0
    %2363 = vdwg.mxu0
    %2364 = vrot.lane.b32.xlu0 %v2049, 120
    %v2365 = vpop.permute.xlu0 %2364
    %v2366 = vsel %vm337, %v2049, 0
    %v2368 = vsel %vm337, %v2365, 0
    %2370 = vmatprep.subr.mxu0 0.0
    %2371 = vmatpush1.xpose.msra.mxu0 %v2368
    %2372 = vmatprep.subr.mxu0 0.0
    %2373 = vmatpush1.xpose.msra.mxu0 0.0
    %2374 = vmatprep.subr.mxu0 0.0
    %2375 = vmatpush1.xpose.msra.mxu0 0.0
    %2376 = vmatprep.subr.mxu0 0.0
    %2377 = vmatpush1.xpose.msra.mxu0 0.0
    %2378 = vmatprep.subr.mxu0 0.0
    %2379 = vmatpush1.xpose.msra.mxu0 0.0
    %2380 = vmatprep.subr.mxu0 0.0
    %2381 = vmatpush1.xpose.msra.mxu0 0.0
    %2382 = vmatprep.subr.mxu0 0.0
    %2383 = vmatpush1.xpose.msra.mxu0 0.0
    %2384 = vmatprep.subr.mxu0 0.0
    %2385 = vmatpush1.xpose.msra.mxu0 0.0
    %2386 = vmatprep.subr.mxu0 0.0
    %2387 = vmatpush1.xpose.msra.mxu0 0.0
    %2388 = vmatprep.subr.mxu0 0.0
    %2389 = vmatpush1.xpose.msra.mxu0 0.0
    %2390 = vmatprep.subr.mxu0 0.0
    %2391 = vmatpush1.xpose.msra.mxu0 0.0
    %2392 = vmatprep.subr.mxu0 0.0
    %2393 = vmatpush1.xpose.msra.mxu0 0.0
    %2394 = vmatprep.subr.mxu0 0.0
    %2395 = vmatpush1.xpose.msra.mxu0 0.0
    %2396 = vmatprep.subr.mxu0 0.0
    %2397 = vmatpush1.xpose.msra.mxu0 0.0
    %2398 = vmatprep.subr.mxu0 0.0
    %2399 = vmatpush1.xpose.msra.mxu0 0.0
    %2400 = vmatprep.subr.mxu0 0.0
    %2401 = vmatpush1.xpose.msra.mxu0 0.0
    %2402 = vmatprep.subr.mxu0 0.0
    %2403 = vmatpush1.xpose.msra.mxu0 0.0
    %2404 = vmatprep.subr.mxu0 0.0
    %2405 = vmatpush1.xpose.msra.mxu0 0.0
    %2406 = vmatprep.subr.mxu0 0.0
    %2407 = vmatpush1.xpose.msra.mxu0 0.0
    %2408 = vmatprep.subr.mxu0 0.0
    %2409 = vmatpush1.xpose.msra.mxu0 0.0
    %2410 = vmatprep.subr.mxu0 0.0
    %2411 = vmatpush1.xpose.msra.mxu0 0.0
    %2412 = vmatprep.subr.mxu0 0.0
    %2413 = vmatpush1.xpose.msra.mxu0 0.0
    %2414 = vmatprep.subr.mxu0 0.0
    %2415 = vmatpush1.xpose.msra.mxu0 0.0
    %2416 = vmatprep.subr.mxu0 0.0
    %2417 = vmatpush1.xpose.msra.mxu0 0.0
    %2418 = vmatprep.subr.mxu0 0.0
    %2419 = vmatpush1.xpose.msra.mxu0 0.0
    %2420 = vmatprep.subr.mxu0 0.0
    %2421 = vmatpush1.xpose.msra.mxu0 0.0
    %2422 = vmatprep.subr.mxu0 0.0
    %2423 = vmatpush1.xpose.msra.mxu0 0.0
    %2424 = vmatprep.subr.mxu0 0.0
    %2425 = vmatpush1.xpose.msra.mxu0 0.0
    %2426 = vmatprep.subr.mxu0 0.0
    %2427 = vmatpush1.xpose.msra.mxu0 0.0
    %2428 = vmatprep.subr.mxu0 0.0
    %2429 = vmatpush1.xpose.msra.mxu0 0.0
    %2430 = vmatprep.subr.mxu0 0.0
    %2431 = vmatpush1.xpose.msra.mxu0 0.0
    %2432 = vmatprep.subr.mxu0 0.0
    %2433 = vmatpush1.xpose.msra.mxu0 0.0
    %2434 = vmatprep.mubr.f32.mxu0 0.0
    %2435 = vmatmul.mubr.f32.gmra.mrb[0].mxu0 %v2366
    %v2436 = vpop.f32.mrb[0].mxu0
    %v2437 = vadd.f32 0.0, %v2436
    %v2438 = vpop.f32.mrb[0].mxu0
    %2439 = vdwg.mxu0
    %2440 = vrot.lane.b32.xlu0 %v2051, 120
    %v2441 = vpop.permute.xlu0 %2440
    %v2442 = vsel %vm337, %v2051, 0
    %v2444 = vsel %vm337, %v2441, 0
    %2446 = vmatprep.subr.mxu0 0.0
    %2447 = vmatpush1.xpose.msra.mxu0 %v2444
    %2448 = vmatprep.subr.mxu0 0.0
    %2449 = vmatpush1.xpose.msra.mxu0 0.0
    %2450 = vmatprep.subr.mxu0 0.0
    %2451 = vmatpush1.xpose.msra.mxu0 0.0
    %2452 = vmatprep.subr.mxu0 0.0
    %2453 = vmatpush1.xpose.msra.mxu0 0.0
    %2454 = vmatprep.subr.mxu0 0.0
    %2455 = vmatpush1.xpose.msra.mxu0 0.0
    %2456 = vmatprep.subr.mxu0 0.0
    %2457 = vmatpush1.xpose.msra.mxu0 0.0
    %2458 = vmatprep.subr.mxu0 0.0
    %2459 = vmatpush1.xpose.msra.mxu0 0.0
    %2460 = vmatprep.subr.mxu0 0.0
    %2461 = vmatpush1.xpose.msra.mxu0 0.0
    %2462 = vmatprep.subr.mxu0 0.0
    %2463 = vmatpush1.xpose.msra.mxu0 0.0
    %2464 = vmatprep.subr.mxu0 0.0
    %2465 = vmatpush1.xpose.msra.mxu0 0.0
    %2466 = vmatprep.subr.mxu0 0.0
    %2467 = vmatpush1.xpose.msra.mxu0 0.0
    %2468 = vmatprep.subr.mxu0 0.0
    %2469 = vmatpush1.xpose.msra.mxu0 0.0
    %2470 = vmatprep.subr.mxu0 0.0
    %2471 = vmatpush1.xpose.msra.mxu0 0.0
    %2472 = vmatprep.subr.mxu0 0.0
    %2473 = vmatpush1.xpose.msra.mxu0 0.0
    %2474 = vmatprep.subr.mxu0 0.0
    %2475 = vmatpush1.xpose.msra.mxu0 0.0
    %2476 = vmatprep.subr.mxu0 0.0
    %2477 = vmatpush1.xpose.msra.mxu0 0.0
    %2478 = vmatprep.subr.mxu0 0.0
    %2479 = vmatpush1.xpose.msra.mxu0 0.0
    %2480 = vmatprep.subr.mxu0 0.0
    %2481 = vmatpush1.xpose.msra.mxu0 0.0
    %2482 = vmatprep.subr.mxu0 0.0
    %2483 = vmatpush1.xpose.msra.mxu0 0.0
    %2484 = vmatprep.subr.mxu0 0.0
    %2485 = vmatpush1.xpose.msra.mxu0 0.0
    %2486 = vmatprep.subr.mxu0 0.0
    %2487 = vmatpush1.xpose.msra.mxu0 0.0
    %2488 = vmatprep.subr.mxu0 0.0
    %2489 = vmatpush1.xpose.msra.mxu0 0.0
    %2490 = vmatprep.subr.mxu0 0.0
    %2491 = vmatpush1.xpose.msra.mxu0 0.0
    %2492 = vmatprep.subr.mxu0 0.0
    %2493 = vmatpush1.xpose.msra.mxu0 0.0
    %2494 = vmatprep.subr.mxu0 0.0
    %2495 = vmatpush1.xpose.msra.mxu0 0.0
    %2496 = vmatprep.subr.mxu0 0.0
    %2497 = vmatpush1.xpose.msra.mxu0 0.0
    %2498 = vmatprep.subr.mxu0 0.0
    %2499 = vmatpush1.xpose.msra.mxu0 0.0
    %2500 = vmatprep.subr.mxu0 0.0
    %2501 = vmatpush1.xpose.msra.mxu0 0.0
    %2502 = vmatprep.subr.mxu0 0.0
    %2503 = vmatpush1.xpose.msra.mxu0 0.0
    %2504 = vmatprep.subr.mxu0 0.0
    %2505 = vmatpush1.xpose.msra.mxu0 0.0
    %2506 = vmatprep.subr.mxu0 0.0
    %2507 = vmatpush1.xpose.msra.mxu0 0.0
    %2508 = vmatprep.subr.mxu0 0.0
    %2509 = vmatpush1.xpose.msra.mxu0 0.0
    %2510 = vmatprep.mubr.f32.mxu0 0.0
    %2511 = vmatmul.mubr.f32.gmra.mrb[0].mxu0 %v2442
    %v2512 = vpop.f32.mrb[0].mxu0
    %v2513 = vadd.f32 0.0, %v2512
    %v2514 = vpop.f32.mrb[0].mxu0
    %2515 = vdwg.mxu0
    %2516 = vrot.lane.b32.xlu0 %v2053, 120
    %v2517 = vpop.permute.xlu0 %2516
    %v2518 = vsel %vm337, %v2053, 0
    %v2520 = vsel %vm337, %v2517, 0
    %2522 = vmatprep.subr.mxu0 0.0
    %2523 = vmatpush1.xpose.msra.mxu0 %v2520
    %2524 = vmatprep.subr.mxu0 0.0
    %2525 = vmatpush1.xpose.msra.mxu0 0.0
    %2526 = vmatprep.subr.mxu0 0.0
    %2527 = vmatpush1.xpose.msra.mxu0 0.0
    %2528 = vmatprep.subr.mxu0 0.0
    %2529 = vmatpush1.xpose.msra.mxu0 0.0
    %2530 = vmatprep.subr.mxu0 0.0
    %2531 = vmatpush1.xpose.msra.mxu0 0.0
    %2532 = vmatprep.subr.mxu0 0.0
    %2533 = vmatpush1.xpose.msra.mxu0 0.0
    %2534 = vmatprep.subr.mxu0 0.0
    %2535 = vmatpush1.xpose.msra.mxu0 0.0
    %2536 = vmatprep.subr.mxu0 0.0
    %2537 = vmatpush1.xpose.msra.mxu0 0.0
    %2538 = vmatprep.subr.mxu0 0.0
    %2539 = vmatpush1.xpose.msra.mxu0 0.0
    %2540 = vmatprep.subr.mxu0 0.0
    %2541 = vmatpush1.xpose.msra.mxu0 0.0
    %2542 = vmatprep.subr.mxu0 0.0
    %2543 = vmatpush1.xpose.msra.mxu0 0.0
    %2544 = vmatprep.subr.mxu0 0.0
    %2545 = vmatpush1.xpose.msra.mxu0 0.0
    %2546 = vmatprep.subr.mxu0 0.0
    %2547 = vmatpush1.xpose.msra.mxu0 0.0
    %2548 = vmatprep.subr.mxu0 0.0
    %2549 = vmatpush1.xpose.msra.mxu0 0.0
    %2550 = vmatprep.subr.mxu0 0.0
    %2551 = vmatpush1.xpose.msra.mxu0 0.0
    %2552 = vmatprep.subr.mxu0 0.0
    %2553 = vmatpush1.xpose.msra.mxu0 0.0
    %2554 = vmatprep.subr.mxu0 0.0
    %2555 = vmatpush1.xpose.msra.mxu0 0.0
    %2556 = vmatprep.subr.mxu0 0.0
    %2557 = vmatpush1.xpose.msra.mxu0 0.0
    %2558 = vmatprep.subr.mxu0 0.0
    %2559 = vmatpush1.xpose.msra.mxu0 0.0
    %2560 = vmatprep.subr.mxu0 0.0
    %2561 = vmatpush1.xpose.msra.mxu0 0.0
    %2562 = vmatprep.subr.mxu0 0.0
    %2563 = vmatpush1.xpose.msra.mxu0 0.0
    %2564 = vmatprep.subr.mxu0 0.0
    %2565 = vmatpush1.xpose.msra.mxu0 0.0
    %2566 = vmatprep.subr.mxu0 0.0
    %2567 = vmatpush1.xpose.msra.mxu0 0.0
    %2568 = vmatprep.subr.mxu0 0.0
    %2569 = vmatpush1.xpose.msra.mxu0 0.0
    %2570 = vmatprep.subr.mxu0 0.0
    %2571 = vmatpush1.xpose.msra.mxu0 0.0
    %2572 = vmatprep.subr.mxu0 0.0
    %2573 = vmatpush1.xpose.msra.mxu0 0.0
    %2574 = vmatprep.subr.mxu0 0.0
    %2575 = vmatpush1.xpose.msra.mxu0 0.0
    %2576 = vmatprep.subr.mxu0 0.0
    %2577 = vmatpush1.xpose.msra.mxu0 0.0
    %2578 = vmatprep.subr.mxu0 0.0
    %2579 = vmatpush1.xpose.msra.mxu0 0.0
    %2580 = vmatprep.subr.mxu0 0.0
    %2581 = vmatpush1.xpose.msra.mxu0 0.0
    %2582 = vmatprep.subr.mxu0 0.0
    %2583 = vmatpush1.xpose.msra.mxu0 0.0
    %2584 = vmatprep.subr.mxu0 0.0
    %2585 = vmatpush1.xpose.msra.mxu0 0.0
    %2586 = vmatprep.mubr.f32.mxu0 0.0
    %2587 = vmatmul.mubr.f32.gmra.mrb[0].mxu0 %v2518
    %v2588 = vpop.f32.mrb[0].mxu0
    %v2589 = vadd.f32 0.0, %v2588
    %v2590 = vpop.f32.mrb[0].mxu0
    %2591 = vdwg.mxu0
    %2592 = vrot.lane.b32.xlu0 %v2055, 120
    %v2593 = vpop.permute.xlu0 %2592
    %v2594 = vsel %vm337, %v2055, 0
    %v2596 = vsel %vm337, %v2593, 0
    %2598 = vmatprep.subr.mxu0 0.0
    %2599 = vmatpush1.xpose.msra.mxu0 %v2596
    %2600 = vmatprep.subr.mxu0 0.0
    %2601 = vmatpush1.xpose.msra.mxu0 0.0
    %2602 = vmatprep.subr.mxu0 0.0
    %2603 = vmatpush1.xpose.msra.mxu0 0.0
    %2604 = vmatprep.subr.mxu0 0.0
    %2605 = vmatpush1.xpose.msra.mxu0 0.0
    %2606 = vmatprep.subr.mxu0 0.0
    %2607 = vmatpush1.xpose.msra.mxu0 0.0
    %2608 = vmatprep.subr.mxu0 0.0
    %2609 = vmatpush1.xpose.msra.mxu0 0.0
    %2610 = vmatprep.subr.mxu0 0.0
    %2611 = vmatpush1.xpose.msra.mxu0 0.0
    %2612 = vmatprep.subr.mxu0 0.0
    %2613 = vmatpush1.xpose.msra.mxu0 0.0
    %2614 = vmatprep.subr.mxu0 0.0
    %2615 = vmatpush1.xpose.msra.mxu0 0.0
    %2616 = vmatprep.subr.mxu0 0.0
    %2617 = vmatpush1.xpose.msra.mxu0 0.0
    %2618 = vmatprep.subr.mxu0 0.0
    %2619 = vmatpush1.xpose.msra.mxu0 0.0
    %2620 = vmatprep.subr.mxu0 0.0
    %2621 = vmatpush1.xpose.msra.mxu0 0.0
    %2622 = vmatprep.subr.mxu0 0.0
    %2623 = vmatpush1.xpose.msra.mxu0 0.0
    %2624 = vmatprep.subr.mxu0 0.0
    %2625 = vmatpush1.xpose.msra.mxu0 0.0
    %2626 = vmatprep.subr.mxu0 0.0
    %2627 = vmatpush1.xpose.msra.mxu0 0.0
    %2628 = vmatprep.subr.mxu0 0.0
    %2629 = vmatpush1.xpose.msra.mxu0 0.0
    %2630 = vmatprep.subr.mxu0 0.0
    %2631 = vmatpush1.xpose.msra.mxu0 0.0
    %2632 = vmatprep.subr.mxu0 0.0
    %2633 = vmatpush1.xpose.msra.mxu0 0.0
    %2634 = vmatprep.subr.mxu0 0.0
    %2635 = vmatpush1.xpose.msra.mxu0 0.0
    %2636 = vmatprep.subr.mxu0 0.0
    %2637 = vmatpush1.xpose.msra.mxu0 0.0
    %2638 = vmatprep.subr.mxu0 0.0
    %2639 = vmatpush1.xpose.msra.mxu0 0.0
    %2640 = vmatprep.subr.mxu0 0.0
    %2641 = vmatpush1.xpose.msra.mxu0 0.0
    %2642 = vmatprep.subr.mxu0 0.0
    %2643 = vmatpush1.xpose.msra.mxu0 0.0
    %2644 = vmatprep.subr.mxu0 0.0
    %2645 = vmatpush1.xpose.msra.mxu0 0.0
    %2646 = vmatprep.subr.mxu0 0.0
    %2647 = vmatpush1.xpose.msra.mxu0 0.0
    %2648 = vmatprep.subr.mxu0 0.0
    %2649 = vmatpush1.xpose.msra.mxu0 0.0
    %2650 = vmatprep.subr.mxu0 0.0
    %2651 = vmatpush1.xpose.msra.mxu0 0.0
    %2652 = vmatprep.subr.mxu0 0.0
    %2653 = vmatpush1.xpose.msra.mxu0 0.0
    %2654 = vmatprep.subr.mxu0 0.0
    %2655 = vmatpush1.xpose.msra.mxu0 0.0
    %2656 = vmatprep.subr.mxu0 0.0
    %2657 = vmatpush1.xpose.msra.mxu0 0.0
    %2658 = vmatprep.subr.mxu0 0.0
    %2659 = vmatpush1.xpose.msra.mxu0 0.0
    %2660 = vmatprep.subr.mxu0 0.0
    %2661 = vmatpush1.xpose.msra.mxu0 0.0
    %2662 = vmatprep.mubr.f32.mxu0 0.0
    %2663 = vmatmul.mubr.f32.gmra.mrb[0].mxu0 %v2594
    %v2664 = vpop.f32.mrb[0].mxu0
    %v2665 = vadd.f32 0.0, %v2664
    %v2666 = vpop.f32.mrb[0].mxu0
    %2667 = vdwg.mxu0
    %v2668 = vadd.f32 %v2133, %v2056
    %v2669 = vadd.f32 %v2209, %v2056
    %v2670 = vadd.f32 %v2285, %v2057
    %v2671 = vadd.f32 %v2361, %v2057
    %v2672 = vadd.f32 %v2437, %v2058
    %v2673 = vadd.f32 %v2513, %v2058
    %v2674 = vadd.f32 %v2589, %v2059
    %v2675 = vadd.f32 %v2665, %v2059
    %v2676 = vsel %vm337, %v2668, -inf
    %2677 = vmax.xlane.f32.xlu0 %v2676
    %v2678 = vpop.xlane.xlu0 %2677
    %v2679 = vsel %vm337, %v2669, -inf
    %2680 = vmax.xlane.f32.xlu0 %v2679
    %v2681 = vpop.xlane.xlu0 %2680
    %v2682 = vsel %vm337, %v2670, -inf
    %2683 = vmax.xlane.f32.xlu0 %v2682
    %v2684 = vpop.xlane.xlu0 %2683
    %v2685 = vsel %vm337, %v2671, -inf
    %2686 = vmax.xlane.f32.xlu0 %v2685
    %v2687 = vpop.xlane.xlu0 %2686
    %v2688 = vsel %vm337, %v2672, -inf
    %2689 = vmax.xlane.f32.xlu0 %v2688
    %v2690 = vpop.xlane.xlu0 %2689
    %v2691 = vsel %vm337, %v2673, -inf
    %2692 = vmax.xlane.f32.xlu0 %v2691
    %v2693 = vpop.xlane.xlu0 %2692
    %v2694 = vsel %vm337, %v2674, -inf
    %2695 = vmax.xlane.f32.xlu0 %v2694
    %v2696 = vpop.xlane.xlu0 %2695
    %v2697 = vsel %vm337, %v2675, -inf
    %2698 = vmax.xlane.f32.xlu0 %v2697
    %v2699 = vpop.xlane.xlu0 %2698
    %v2700 = vsub.f32 %v2668, %v2678
    %v2701 = vsub.f32 %v2669, %v2681
    %v2702 = vsub.f32 %v2670, %v2684
    %v2703 = vsub.f32 %v2671, %v2687
    %v2704 = vsub.f32 %v2672, %v2690
    %v2705 = vsub.f32 %v2673, %v2693
    %v2706 = vsub.f32 %v2674, %v2696
    %v2707 = vsub.f32 %v2675, %v2699
    %v2708 = vmul.f32 %v2700, 1.442695
    %v2709 = vpow.pop %v2708
    %v2710 = vmul.f32 %v2701, 1.442695
    %v2711 = vpow.pop %v2710
    %v2712 = vmul.f32 %v2702, 1.442695
    %v2713 = vpow.pop %v2712
    %v2714 = vmul.f32 %v2703, 1.442695
    %v2715 = vpow.pop %v2714
    %v2716 = vmul.f32 %v2704, 1.442695
    %v2717 = vpow.pop %v2716
    %v2718 = vmul.f32 %v2705, 1.442695
    %v2719 = vpow.pop %v2718
    %v2720 = vmul.f32 %v2706, 1.442695
    %v2721 = vpow.pop %v2720
    %v2722 = vmul.f32 %v2707, 1.442695
    %v2723 = vpow.pop %v2722
    %v2724 = vsel %vm337, %v2709, 0.0
    %2725 = vadd.xlane.f32.xlu0 %v2724
    %v2726 = vpop.xlane.xlu0 %2725
    %v2727 = vsel %vm337, %v2711, 0.0
    %2728 = vadd.xlane.f32.xlu0 %v2727
    %v2729 = vpop.xlane.xlu0 %2728
    %v2730 = vsel %vm337, %v2713, 0.0
    %2731 = vadd.xlane.f32.xlu0 %v2730
    %v2732 = vpop.xlane.xlu0 %2731
    %v2733 = vsel %vm337, %v2715, 0.0
    %2734 = vadd.xlane.f32.xlu0 %v2733
    %v2735 = vpop.xlane.xlu0 %2734
    %v2736 = vsel %vm337, %v2717, 0.0
    %2737 = vadd.xlane.f32.xlu0 %v2736
    %v2738 = vpop.xlane.xlu0 %2737
    %v2739 = vsel %vm337, %v2719, 0.0
    %2740 = vadd.xlane.f32.xlu0 %v2739
    %v2741 = vpop.xlane.xlu0 %2740
    %v2742 = vsel %vm337, %v2721, 0.0
    %2743 = vadd.xlane.f32.xlu0 %v2742
    %v2744 = vpop.xlane.xlu0 %2743
    %v2745 = vsel %vm337, %v2723, 0.0
    %2746 = vadd.xlane.f32.xlu0 %v2745
    %v2747 = vpop.xlane.xlu0 %2746
    %v2748 = vrcp.pop %v2726
    %v2749 = vrcp.pop %v2729
    %v2750 = vrcp.pop %v2732
    %v2751 = vrcp.pop %v2735
    %v2752 = vrcp.pop %v2738
    %v2753 = vrcp.pop %v2741
    %v2754 = vrcp.pop %v2744
    %v2755 = vrcp.pop %v2747
    %v2756 = vmul.f32 %v2709, %v2748
    %v2757 = vmul.f32 %v2711, %v2749
    %v2758 = vmul.f32 %v2713, %v2750
    %v2759 = vmul.f32 %v2715, %v2751
    %v2760 = vmul.f32 %v2717, %v2752
    %v2761 = vmul.f32 %v2719, %v2753
    %v2762 = vmul.f32 %v2721, %v2754
    %v2763 = vmul.f32 %v2723, %v2755
    %2764 = vrot.lane.b32.xlu0 %v2036, 112
    %v2765 = vpop.permute.xlu0 %2764
    %v2768 = vsel %vm337, %v2756, 0
    %2770 = vmatprep.subr.mxu0 0.0
    %2771 = vmatpush1.msra.mxu0 %v2765
    %2772 = vmatprep.subr.mxu0 0.0
    %2773 = vmatpush1.msra.mxu0 0.0
    %2774 = vmatprep.subr.mxu0 0.0
    %2775 = vmatpush1.msra.mxu0 0.0
    %2776 = vmatprep.subr.mxu0 0.0
    %2777 = vmatpush1.msra.mxu0 0.0
    %2778 = vmatprep.subr.mxu0 0.0
    %2779 = vmatpush1.msra.mxu0 0.0
    %2780 = vmatprep.subr.mxu0 0.0
    %2781 = vmatpush1.msra.mxu0 0.0
    %2782 = vmatprep.subr.mxu0 0.0
    %2783 = vmatpush1.msra.mxu0 0.0
    %2784 = vmatprep.subr.mxu0 0.0
    %2785 = vmatpush1.msra.mxu0 0.0
    %2786 = vmatprep.subr.mxu0 0.0
    %2787 = vmatpush1.msra.mxu0 0.0
    %2788 = vmatprep.subr.mxu0 0.0
    %2789 = vmatpush1.msra.mxu0 0.0
    %2790 = vmatprep.subr.mxu0 0.0
    %2791 = vmatpush1.msra.mxu0 0.0
    %2792 = vmatprep.subr.mxu0 0.0
    %2793 = vmatpush1.msra.mxu0 0.0
    %2794 = vmatprep.subr.mxu0 0.0
    %2795 = vmatpush1.msra.mxu0 0.0
    %2796 = vmatprep.subr.mxu0 0.0
    %2797 = vmatpush1.msra.mxu0 0.0
    %2798 = vmatprep.subr.mxu0 0.0
    %2799 = vmatpush1.msra.mxu0 0.0
    %2800 = vmatprep.subr.mxu0 0.0
    %2801 = vmatpush1.msra.mxu0 0.0
    %2802 = vmatprep.subr.mxu0 0.0
    %2803 = vmatpush1.msra.mxu0 0.0
    %2804 = vmatprep.subr.mxu0 0.0
    %2805 = vmatpush1.msra.mxu0 0.0
    %2806 = vmatprep.subr.mxu0 0.0
    %2807 = vmatpush1.msra.mxu0 0.0
    %2808 = vmatprep.subr.mxu0 0.0
    %2809 = vmatpush1.msra.mxu0 0.0
    %2810 = vmatprep.subr.mxu0 0.0
    %2811 = vmatpush1.msra.mxu0 0.0
    %2812 = vmatprep.subr.mxu0 0.0
    %2813 = vmatpush1.msra.mxu0 0.0
    %2814 = vmatprep.subr.mxu0 0.0
    %2815 = vmatpush1.msra.mxu0 0.0
    %2816 = vmatprep.subr.mxu0 0.0
    %2817 = vmatpush1.msra.mxu0 0.0
    %2818 = vmatprep.subr.mxu0 0.0
    %2819 = vmatpush1.msra.mxu0 0.0
    %2820 = vmatprep.subr.mxu0 0.0
    %2821 = vmatpush1.msra.mxu0 0.0
    %2822 = vmatprep.subr.mxu0 0.0
    %2823 = vmatpush1.msra.mxu0 0.0
    %2824 = vmatprep.subr.mxu0 0.0
    %2825 = vmatpush1.msra.mxu0 0.0
    %2826 = vmatprep.subr.mxu0 0.0
    %2827 = vmatpush1.msra.mxu0 0.0
    %2828 = vmatprep.subr.mxu0 0.0
    %2829 = vmatpush1.msra.mxu0 0.0
    %2830 = vmatprep.subr.mxu0 0.0
    %2831 = vmatpush1.msra.mxu0 0.0
    %2832 = vmatprep.subr.mxu0 0.0
    %2833 = vmatpush1.msra.mxu0 0.0
    %2834 = vmatprep.mubr.f32.mxu0 0.0
    %2835 = vmatmul.mubr.f32.gmra.mrb[0].mxu0 %v2768
    %v2836 = vpop.f32.mrb[0].mxu0
    %v2837 = vadd.f32 0.0, %v2836
    %v2838 = vpop.f32.mrb[0].mxu0
    %2839 = vdwg.mxu0
    %2840 = vrot.lane.b32.xlu0 %v2039, 112
    %v2841 = vpop.permute.xlu0 %2840
    %v2844 = vsel %vm337, %v2757, 0
    %2846 = vmatprep.subr.mxu0 0.0
    %2847 = vmatpush1.msra.mxu0 %v2841
    %2848 = vmatprep.subr.mxu0 0.0
    %2849 = vmatpush1.msra.mxu0 0.0
    %2850 = vmatprep.subr.mxu0 0.0
    %2851 = vmatpush1.msra.mxu0 0.0
    %2852 = vmatprep.subr.mxu0 0.0
    %2853 = vmatpush1.msra.mxu0 0.0
    %2854 = vmatprep.subr.mxu0 0.0
    %2855 = vmatpush1.msra.mxu0 0.0
    %2856 = vmatprep.subr.mxu0 0.0
    %2857 = vmatpush1.msra.mxu0 0.0
    %2858 = vmatprep.subr.mxu0 0.0
    %2859 = vmatpush1.msra.mxu0 0.0
    %2860 = vmatprep.subr.mxu0 0.0
    %2861 = vmatpush1.msra.mxu0 0.0
    %2862 = vmatprep.subr.mxu0 0.0
    %2863 = vmatpush1.msra.mxu0 0.0
    %2864 = vmatprep.subr.mxu0 0.0
    %2865 = vmatpush1.msra.mxu0 0.0
    %2866 = vmatprep.subr.mxu0 0.0
    %2867 = vmatpush1.msra.mxu0 0.0
    %2868 = vmatprep.subr.mxu0 0.0
    %2869 = vmatpush1.msra.mxu0 0.0
    %2870 = vmatprep.subr.mxu0 0.0
    %2871 = vmatpush1.msra.mxu0 0.0
    %2872 = vmatprep.subr.mxu0 0.0
    %2873 = vmatpush1.msra.mxu0 0.0
    %2874 = vmatprep.subr.mxu0 0.0
    %2875 = vmatpush1.msra.mxu0 0.0
    %2876 = vmatprep.subr.mxu0 0.0
    %2877 = vmatpush1.msra.mxu0 0.0
    %2878 = vmatprep.subr.mxu0 0.0
    %2879 = vmatpush1.msra.mxu0 0.0
    %2880 = vmatprep.subr.mxu0 0.0
    %2881 = vmatpush1.msra.mxu0 0.0
    %2882 = vmatprep.subr.mxu0 0.0
    %2883 = vmatpush1.msra.mxu0 0.0
    %2884 = vmatprep.subr.mxu0 0.0
    %2885 = vmatpush1.msra.mxu0 0.0
    %2886 = vmatprep.subr.mxu0 0.0
    %2887 = vmatpush1.msra.mxu0 0.0
    %2888 = vmatprep.subr.mxu0 0.0
    %2889 = vmatpush1.msra.mxu0 0.0
    %2890 = vmatprep.subr.mxu0 0.0
    %2891 = vmatpush1.msra.mxu0 0.0
    %2892 = vmatprep.subr.mxu0 0.0
    %2893 = vmatpush1.msra.mxu0 0.0
    %2894 = vmatprep.subr.mxu0 0.0
    %2895 = vmatpush1.msra.mxu0 0.0
    %2896 = vmatprep.subr.mxu0 0.0
    %2897 = vmatpush1.msra.mxu0 0.0
    %2898 = vmatprep.subr.mxu0 0.0
    %2899 = vmatpush1.msra.mxu0 0.0
    %2900 = vmatprep.subr.mxu0 0.0
    %2901 = vmatpush1.msra.mxu0 0.0
    %2902 = vmatprep.subr.mxu0 0.0
    %2903 = vmatpush1.msra.mxu0 0.0
    %2904 = vmatprep.subr.mxu0 0.0
    %2905 = vmatpush1.msra.mxu0 0.0
    %2906 = vmatprep.subr.mxu0 0.0
    %2907 = vmatpush1.msra.mxu0 0.0
    %2908 = vmatprep.subr.mxu0 0.0
    %2909 = vmatpush1.msra.mxu0 0.0
    %2910 = vmatprep.mubr.f32.mxu0 0.0
    %2911 = vmatmul.mubr.f32.gmra.mrb[0].mxu0 %v2844
    %v2912 = vpop.f32.mrb[0].mxu0
    %v2913 = vadd.f32 0.0, %v2912
    %v2914 = vpop.f32.mrb[0].mxu0
    %2915 = vdwg.mxu0
    %2916 = vrot.lane.b32.xlu0 %v2045, 112
    %v2917 = vpop.permute.xlu0 %2916
    %v2920 = vsel %vm337, %v2758, 0
    %2922 = vmatprep.subr.mxu0 0.0
    %2923 = vmatpush1.msra.mxu0 %v2917
    %2924 = vmatprep.subr.mxu0 0.0
    %2925 = vmatpush1.msra.mxu0 0.0
    %2926 = vmatprep.subr.mxu0 0.0
    %2927 = vmatpush1.msra.mxu0 0.0
    %2928 = vmatprep.subr.mxu0 0.0
    %2929 = vmatpush1.msra.mxu0 0.0
    %2930 = vmatprep.subr.mxu0 0.0
    %2931 = vmatpush1.msra.mxu0 0.0
    %2932 = vmatprep.subr.mxu0 0.0
    %2933 = vmatpush1.msra.mxu0 0.0
    %2934 = vmatprep.subr.mxu0 0.0
    %2935 = vmatpush1.msra.mxu0 0.0
    %2936 = vmatprep.subr.mxu0 0.0
    %2937 = vmatpush1.msra.mxu0 0.0
    %2938 = vmatprep.subr.mxu0 0.0
    %2939 = vmatpush1.msra.mxu0 0.0
    %2940 = vmatprep.subr.mxu0 0.0
    %2941 = vmatpush1.msra.mxu0 0.0
    %2942 = vmatprep.subr.mxu0 0.0
    %2943 = vmatpush1.msra.mxu0 0.0
    %2944 = vmatprep.subr.mxu0 0.0
    %2945 = vmatpush1.msra.mxu0 0.0
    %2946 = vmatprep.subr.mxu0 0.0
    %2947 = vmatpush1.msra.mxu0 0.0
    %2948 = vmatprep.subr.mxu0 0.0
    %2949 = vmatpush1.msra.mxu0 0.0
    %2950 = vmatprep.subr.mxu0 0.0
    %2951 = vmatpush1.msra.mxu0 0.0
    %2952 = vmatprep.subr.mxu0 0.0
    %2953 = vmatpush1.msra.mxu0 0.0
    %2954 = vmatprep.subr.mxu0 0.0
    %2955 = vmatpush1.msra.mxu0 0.0
    %2956 = vmatprep.subr.mxu0 0.0
    %2957 = vmatpush1.msra.mxu0 0.0
    %2958 = vmatprep.subr.mxu0 0.0
    %2959 = vmatpush1.msra.mxu0 0.0
    %2960 = vmatprep.subr.mxu0 0.0
    %2961 = vmatpush1.msra.mxu0 0.0
    %2962 = vmatprep.subr.mxu0 0.0
    %2963 = vmatpush1.msra.mxu0 0.0
    %2964 = vmatprep.subr.mxu0 0.0
    %2965 = vmatpush1.msra.mxu0 0.0
    %2966 = vmatprep.subr.mxu0 0.0
    %2967 = vmatpush1.msra.mxu0 0.0
    %2968 = vmatprep.subr.mxu0 0.0
    %2969 = vmatpush1.msra.mxu0 0.0
    %2970 = vmatprep.subr.mxu0 0.0
    %2971 = vmatpush1.msra.mxu0 0.0
    %2972 = vmatprep.subr.mxu0 0.0
    %2973 = vmatpush1.msra.mxu0 0.0
    %2974 = vmatprep.subr.mxu0 0.0
    %2975 = vmatpush1.msra.mxu0 0.0
    %2976 = vmatprep.subr.mxu0 0.0
    %2977 = vmatpush1.msra.mxu0 0.0
    %2978 = vmatprep.subr.mxu0 0.0
    %2979 = vmatpush1.msra.mxu0 0.0
    %2980 = vmatprep.subr.mxu0 0.0
    %2981 = vmatpush1.msra.mxu0 0.0
    %2982 = vmatprep.subr.mxu0 0.0
    %2983 = vmatpush1.msra.mxu0 0.0
    %2984 = vmatprep.subr.mxu0 0.0
    %2985 = vmatpush1.msra.mxu0 0.0
    %2986 = vmatprep.mubr.f32.mxu0 0.0
    %2987 = vmatmul.mubr.f32.gmra.mrb[0].mxu0 %v2920
    %v2988 = vpop.f32.mrb[0].mxu0
    %v2989 = vadd.f32 0.0, %v2988
    %v2990 = vpop.f32.mrb[0].mxu0
    %2991 = vdwg.mxu0
    %2992 = vrot.lane.b32.xlu0 %v2047, 112
    %v2993 = vpop.permute.xlu0 %2992
    %v2996 = vsel %vm337, %v2759, 0
    %2998 = vmatprep.subr.mxu0 0.0
    %2999 = vmatpush1.msra.mxu0 %v2993
    %3000 = vmatprep.subr.mxu0 0.0
    %3001 = vmatpush1.msra.mxu0 0.0
    %3002 = vmatprep.subr.mxu0 0.0
    %3003 = vmatpush1.msra.mxu0 0.0
    %3004 = vmatprep.subr.mxu0 0.0
    %3005 = vmatpush1.msra.mxu0 0.0
    %3006 = vmatprep.subr.mxu0 0.0
    %3007 = vmatpush1.msra.mxu0 0.0
    %3008 = vmatprep.subr.mxu0 0.0
    %3009 = vmatpush1.msra.mxu0 0.0
    %3010 = vmatprep.subr.mxu0 0.0
    %3011 = vmatpush1.msra.mxu0 0.0
    %3012 = vmatprep.subr.mxu0 0.0
    %3013 = vmatpush1.msra.mxu0 0.0
    %3014 = vmatprep.subr.mxu0 0.0
    %3015 = vmatpush1.msra.mxu0 0.0
    %3016 = vmatprep.subr.mxu0 0.0
    %3017 = vmatpush1.msra.mxu0 0.0
    %3018 = vmatprep.subr.mxu0 0.0
    %3019 = vmatpush1.msra.mxu0 0.0
    %3020 = vmatprep.subr.mxu0 0.0
    %3021 = vmatpush1.msra.mxu0 0.0
    %3022 = vmatprep.subr.mxu0 0.0
    %3023 = vmatpush1.msra.mxu0 0.0
    %3024 = vmatprep.subr.mxu0 0.0
    %3025 = vmatpush1.msra.mxu0 0.0
    %3026 = vmatprep.subr.mxu0 0.0
    %3027 = vmatpush1.msra.mxu0 0.0
    %3028 = vmatprep.subr.mxu0 0.0
    %3029 = vmatpush1.msra.mxu0 0.0
    %3030 = vmatprep.subr.mxu0 0.0
    %3031 = vmatpush1.msra.mxu0 0.0
    %3032 = vmatprep.subr.mxu0 0.0
    %3033 = vmatpush1.msra.mxu0 0.0
    %3034 = vmatprep.subr.mxu0 0.0
    %3035 = vmatpush1.msra.mxu0 0.0
    %3036 = vmatprep.subr.mxu0 0.0
    %3037 = vmatpush1.msra.mxu0 0.0
    %3038 = vmatprep.subr.mxu0 0.0
    %3039 = vmatpush1.msra.mxu0 0.0
    %3040 = vmatprep.subr.mxu0 0.0
    %3041 = vmatpush1.msra.mxu0 0.0
    %3042 = vmatprep.subr.mxu0 0.0
    %3043 = vmatpush1.msra.mxu0 0.0
    %3044 = vmatprep.subr.mxu0 0.0
    %3045 = vmatpush1.msra.mxu0 0.0
    %3046 = vmatprep.subr.mxu0 0.0
    %3047 = vmatpush1.msra.mxu0 0.0
    %3048 = vmatprep.subr.mxu0 0.0
    %3049 = vmatpush1.msra.mxu0 0.0
    %3050 = vmatprep.subr.mxu0 0.0
    %3051 = vmatpush1.msra.mxu0 0.0
    %3052 = vmatprep.subr.mxu0 0.0
    %3053 = vmatpush1.msra.mxu0 0.0
    %3054 = vmatprep.subr.mxu0 0.0
    %3055 = vmatpush1.msra.mxu0 0.0
    %3056 = vmatprep.subr.mxu0 0.0
    %3057 = vmatpush1.msra.mxu0 0.0
    %3058 = vmatprep.subr.mxu0 0.0
    %3059 = vmatpush1.msra.mxu0 0.0
    %3060 = vmatprep.subr.mxu0 0.0
    %3061 = vmatpush1.msra.mxu0 0.0
    %3062 = vmatprep.mubr.f32.mxu0 0.0
    %3063 = vmatmul.mubr.f32.gmra.mrb[0].mxu0 %v2996
    %v3064 = vpop.f32.mrb[0].mxu0
    %v3065 = vadd.f32 0.0, %v3064
    %v3066 = vpop.f32.mrb[0].mxu0
    %3067 = vdwg.mxu0
    %3068 = vrot.lane.b32.xlu0 %v2049, 112
    %v3069 = vpop.permute.xlu0 %3068
    %v3072 = vsel %vm337, %v2760, 0
    %3074 = vmatprep.subr.mxu0 0.0
    %3075 = vmatpush1.msra.mxu0 %v3069
    %3076 = vmatprep.subr.mxu0 0.0
    %3077 = vmatpush1.msra.mxu0 0.0
    %3078 = vmatprep.subr.mxu0 0.0
    %3079 = vmatpush1.msra.mxu0 0.0
    %3080 = vmatprep.subr.mxu0 0.0
    %3081 = vmatpush1.msra.mxu0 0.0
    %3082 = vmatprep.subr.mxu0 0.0
    %3083 = vmatpush1.msra.mxu0 0.0
    %3084 = vmatprep.subr.mxu0 0.0
    %3085 = vmatpush1.msra.mxu0 0.0
    %3086 = vmatprep.subr.mxu0 0.0
    %3087 = vmatpush1.msra.mxu0 0.0
    %3088 = vmatprep.subr.mxu0 0.0
    %3089 = vmatpush1.msra.mxu0 0.0
    %3090 = vmatprep.subr.mxu0 0.0
    %3091 = vmatpush1.msra.mxu0 0.0
    %3092 = vmatprep.subr.mxu0 0.0
    %3093 = vmatpush1.msra.mxu0 0.0
    %3094 = vmatprep.subr.mxu0 0.0
    %3095 = vmatpush1.msra.mxu0 0.0
    %3096 = vmatprep.subr.mxu0 0.0
    %3097 = vmatpush1.msra.mxu0 0.0
    %3098 = vmatprep.subr.mxu0 0.0
    %3099 = vmatpush1.msra.mxu0 0.0
    %3100 = vmatprep.subr.mxu0 0.0
    %3101 = vmatpush1.msra.mxu0 0.0
    %3102 = vmatprep.subr.mxu0 0.0
    %3103 = vmatpush1.msra.mxu0 0.0
    %3104 = vmatprep.subr.mxu0 0.0
    %3105 = vmatpush1.msra.mxu0 0.0
    %3106 = vmatprep.subr.mxu0 0.0
    %3107 = vmatpush1.msra.mxu0 0.0
    %3108 = vmatprep.subr.mxu0 0.0
    %3109 = vmatpush1.msra.mxu0 0.0
    %3110 = vmatprep.subr.mxu0 0.0
    %3111 = vmatpush1.msra.mxu0 0.0
    %3112 = vmatprep.subr.mxu0 0.0
    %3113 = vmatpush1.msra.mxu0 0.0
    %3114 = vmatprep.subr.mxu0 0.0
    %3115 = vmatpush1.msra.mxu0 0.0
    %3116 = vmatprep.subr.mxu0 0.0
    %3117 = vmatpush1.msra.mxu0 0.0
    %3118 = vmatprep.subr.mxu0 0.0
    %3119 = vmatpush1.msra.mxu0 0.0
    %3120 = vmatprep.subr.mxu0 0.0
    %3121 = vmatpush1.msra.mxu0 0.0
    %3122 = vmatprep.subr.mxu0 0.0
    %3123 = vmatpush1.msra.mxu0 0.0
    %3124 = vmatprep.subr.mxu0 0.0
    %3125 = vmatpush1.msra.mxu0 0.0
    %3126 = vmatprep.subr.mxu0 0.0
    %3127 = vmatpush1.msra.mxu0 0.0
    %3128 = vmatprep.subr.mxu0 0.0
    %3129 = vmatpush1.msra.mxu0 0.0
    %3130 = vmatprep.subr.mxu0 0.0
    %3131 = vmatpush1.msra.mxu0 0.0
    %3132 = vmatprep.subr.mxu0 0.0
    %3133 = vmatpush1.msra.mxu0 0.0
    %3134 = vmatprep.subr.mxu0 0.0
    %3135 = vmatpush1.msra.mxu0 0.0
    %3136 = vmatprep.subr.mxu0 0.0
    %3137 = vmatpush1.msra.mxu0 0.0
    %3138 = vmatprep.mubr.f32.mxu0 0.0
    %3139 = vmatmul.mubr.f32.gmra.mrb[0].mxu0 %v3072
    %v3140 = vpop.f32.mrb[0].mxu0
    %v3141 = vadd.f32 0.0, %v3140
    %v3142 = vpop.f32.mrb[0].mxu0
    %3143 = vdwg.mxu0
    %3144 = vrot.lane.b32.xlu0 %v2051, 112
    %v3145 = vpop.permute.xlu0 %3144
    %v3148 = vsel %vm337, %v2761, 0
    %3150 = vmatprep.subr.mxu0 0.0
    %3151 = vmatpush1.msra.mxu0 %v3145
    %3152 = vmatprep.subr.mxu0 0.0
    %3153 = vmatpush1.msra.mxu0 0.0
    %3154 = vmatprep.subr.mxu0 0.0
    %3155 = vmatpush1.msra.mxu0 0.0
    %3156 = vmatprep.subr.mxu0 0.0
    %3157 = vmatpush1.msra.mxu0 0.0
    %3158 = vmatprep.subr.mxu0 0.0
    %3159 = vmatpush1.msra.mxu0 0.0
    %3160 = vmatprep.subr.mxu0 0.0
    %3161 = vmatpush1.msra.mxu0 0.0
    %3162 = vmatprep.subr.mxu0 0.0
    %3163 = vmatpush1.msra.mxu0 0.0
    %3164 = vmatprep.subr.mxu0 0.0
    %3165 = vmatpush1.msra.mxu0 0.0
    %3166 = vmatprep.subr.mxu0 0.0
    %3167 = vmatpush1.msra.mxu0 0.0
    %3168 = vmatprep.subr.mxu0 0.0
    %3169 = vmatpush1.msra.mxu0 0.0
    %3170 = vmatprep.subr.mxu0 0.0
    %3171 = vmatpush1.msra.mxu0 0.0
    %3172 = vmatprep.subr.mxu0 0.0
    %3173 = vmatpush1.msra.mxu0 0.0
    %3174 = vmatprep.subr.mxu0 0.0
    %3175 = vmatpush1.msra.mxu0 0.0
    %3176 = vmatprep.subr.mxu0 0.0
    %3177 = vmatpush1.msra.mxu0 0.0
    %3178 = vmatprep.subr.mxu0 0.0
    %3179 = vmatpush1.msra.mxu0 0.0
    %3180 = vmatprep.subr.mxu0 0.0
    %3181 = vmatpush1.msra.mxu0 0.0
    %3182 = vmatprep.subr.mxu0 0.0
    %3183 = vmatpush1.msra.mxu0 0.0
    %3184 = vmatprep.subr.mxu0 0.0
    %3185 = vmatpush1.msra.mxu0 0.0
    %3186 = vmatprep.subr.mxu0 0.0
    %3187 = vmatpush1.msra.mxu0 0.0
    %3188 = vmatprep.subr.mxu0 0.0
    %3189 = vmatpush1.msra.mxu0 0.0
    %3190 = vmatprep.subr.mxu0 0.0
    %3191 = vmatpush1.msra.mxu0 0.0
    %3192 = vmatprep.subr.mxu0 0.0
    %3193 = vmatpush1.msra.mxu0 0.0
    %3194 = vmatprep.subr.mxu0 0.0
    %3195 = vmatpush1.msra.mxu0 0.0
    %3196 = vmatprep.subr.mxu0 0.0
    %3197 = vmatpush1.msra.mxu0 0.0
    %3198 = vmatprep.subr.mxu0 0.0
    %3199 = vmatpush1.msra.mxu0 0.0
    %3200 = vmatprep.subr.mxu0 0.0
    %3201 = vmatpush1.msra.mxu0 0.0
    %3202 = vmatprep.subr.mxu0 0.0
    %3203 = vmatpush1.msra.mxu0 0.0
    %3204 = vmatprep.subr.mxu0 0.0
    %3205 = vmatpush1.msra.mxu0 0.0
    %3206 = vmatprep.subr.mxu0 0.0
    %3207 = vmatpush1.msra.mxu0 0.0
    %3208 = vmatprep.subr.mxu0 0.0
    %3209 = vmatpush1.msra.mxu0 0.0
    %3210 = vmatprep.subr.mxu0 0.0
    %3211 = vmatpush1.msra.mxu0 0.0
    %3212 = vmatprep.subr.mxu0 0.0
    %3213 = vmatpush1.msra.mxu0 0.0
    %3214 = vmatprep.mubr.f32.mxu0 0.0
    %3215 = vmatmul.mubr.f32.gmra.mrb[0].mxu0 %v3148
    %v3216 = vpop.f32.mrb[0].mxu0
    %v3217 = vadd.f32 0.0, %v3216
    %v3218 = vpop.f32.mrb[0].mxu0
    %3219 = vdwg.mxu0
    %3220 = vrot.lane.b32.xlu0 %v2053, 112
    %v3221 = vpop.permute.xlu0 %3220
    %v3224 = vsel %vm337, %v2762, 0
    %3226 = vmatprep.subr.mxu0 0.0
    %3227 = vmatpush1.msra.mxu0 %v3221
    %3228 = vmatprep.subr.mxu0 0.0
    %3229 = vmatpush1.msra.mxu0 0.0
    %3230 = vmatprep.subr.mxu0 0.0
    %3231 = vmatpush1.msra.mxu0 0.0
    %3232 = vmatprep.subr.mxu0 0.0
    %3233 = vmatpush1.msra.mxu0 0.0
    %3234 = vmatprep.subr.mxu0 0.0
    %3235 = vmatpush1.msra.mxu0 0.0
    %3236 = vmatprep.subr.mxu0 0.0
    %3237 = vmatpush1.msra.mxu0 0.0
    %3238 = vmatprep.subr.mxu0 0.0
    %3239 = vmatpush1.msra.mxu0 0.0
    %3240 = vmatprep.subr.mxu0 0.0
    %3241 = vmatpush1.msra.mxu0 0.0
    %3242 = vmatprep.subr.mxu0 0.0
    %3243 = vmatpush1.msra.mxu0 0.0
    %3244 = vmatprep.subr.mxu0 0.0
    %3245 = vmatpush1.msra.mxu0 0.0
    %3246 = vmatprep.subr.mxu0 0.0
    %3247 = vmatpush1.msra.mxu0 0.0
    %3248 = vmatprep.subr.mxu0 0.0
    %3249 = vmatpush1.msra.mxu0 0.0
    %3250 = vmatprep.subr.mxu0 0.0
    %3251 = vmatpush1.msra.mxu0 0.0
    %3252 = vmatprep.subr.mxu0 0.0
    %3253 = vmatpush1.msra.mxu0 0.0
    %3254 = vmatprep.subr.mxu0 0.0
    %3255 = vmatpush1.msra.mxu0 0.0
    %3256 = vmatprep.subr.mxu0 0.0
    %3257 = vmatpush1.msra.mxu0 0.0
    %3258 = vmatprep.subr.mxu0 0.0
    %3259 = vmatpush1.msra.mxu0 0.0
    %3260 = vmatprep.subr.mxu0 0.0
    %3261 = vmatpush1.msra.mxu0 0.0
    %3262 = vmatprep.subr.mxu0 0.0
    %3263 = vmatpush1.msra.mxu0 0.0
    %3264 = vmatprep.subr.mxu0 0.0
    %3265 = vmatpush1.msra.mxu0 0.0
    %3266 = vmatprep.subr.mxu0 0.0
    %3267 = vmatpush1.msra.mxu0 0.0
    %3268 = vmatprep.subr.mxu0 0.0
    %3269 = vmatpush1.msra.mxu0 0.0
    %3270 = vmatprep.subr.mxu0 0.0
    %3271 = vmatpush1.msra.mxu0 0.0
    %3272 = vmatprep.subr.mxu0 0.0
    %3273 = vmatpush1.msra.mxu0 0.0
    %3274 = vmatprep.subr.mxu0 0.0
    %3275 = vmatpush1.msra.mxu0 0.0
    %3276 = vmatprep.subr.mxu0 0.0
    %3277 = vmatpush1.msra.mxu0 0.0
    %3278 = vmatprep.subr.mxu0 0.0
    %3279 = vmatpush1.msra.mxu0 0.0
    %3280 = vmatprep.subr.mxu0 0.0
    %3281 = vmatpush1.msra.mxu0 0.0
    %3282 = vmatprep.subr.mxu0 0.0
    %3283 = vmatpush1.msra.mxu0 0.0
    %3284 = vmatprep.subr.mxu0 0.0
    %3285 = vmatpush1.msra.mxu0 0.0
    %3286 = vmatprep.subr.mxu0 0.0
    %3287 = vmatpush1.msra.mxu0 0.0
    %3288 = vmatprep.subr.mxu0 0.0
    %3289 = vmatpush1.msra.mxu0 0.0
    %3290 = vmatprep.mubr.f32.mxu0 0.0
    %3291 = vmatmul.mubr.f32.gmra.mrb[0].mxu0 %v3224
    %v3292 = vpop.f32.mrb[0].mxu0
    %v3293 = vadd.f32 0.0, %v3292
    %v3294 = vpop.f32.mrb[0].mxu0
    %3295 = vdwg.mxu0
    %3296 = vrot.lane.b32.xlu0 %v2055, 112
    %v3297 = vpop.permute.xlu0 %3296
    %v3300 = vsel %vm337, %v2763, 0
    %3302 = vmatprep.subr.mxu0 0.0
    %3303 = vmatpush1.msra.mxu0 %v3297
    %3304 = vmatprep.subr.mxu0 0.0
    %3305 = vmatpush1.msra.mxu0 0.0
    %3306 = vmatprep.subr.mxu0 0.0
    %3307 = vmatpush1.msra.mxu0 0.0
    %3308 = vmatprep.subr.mxu0 0.0
    %3309 = vmatpush1.msra.mxu0 0.0
    %3310 = vmatprep.subr.mxu0 0.0
    %3311 = vmatpush1.msra.mxu0 0.0
    %3312 = vmatprep.subr.mxu0 0.0
    %3313 = vmatpush1.msra.mxu0 0.0
    %3314 = vmatprep.subr.mxu0 0.0
    %3315 = vmatpush1.msra.mxu0 0.0
    %3316 = vmatprep.subr.mxu0 0.0
    %3317 = vmatpush1.msra.mxu0 0.0
    %3318 = vmatprep.subr.mxu0 0.0
    %3319 = vmatpush1.msra.mxu0 0.0
    %3320 = vmatprep.subr.mxu0 0.0
    %3321 = vmatpush1.msra.mxu0 0.0
    %3322 = vmatprep.subr.mxu0 0.0
    %3323 = vmatpush1.msra.mxu0 0.0
    %3324 = vmatprep.subr.mxu0 0.0
    %3325 = vmatpush1.msra.mxu0 0.0
    %3326 = vmatprep.subr.mxu0 0.0
    %3327 = vmatpush1.msra.mxu0 0.0
    %3328 = vmatprep.subr.mxu0 0.0
    %3329 = vmatpush1.msra.mxu0 0.0
    %3330 = vmatprep.subr.mxu0 0.0
    %3331 = vmatpush1.msra.mxu0 0.0
    %3332 = vmatprep.subr.mxu0 0.0
    %3333 = vmatpush1.msra.mxu0 0.0
    %3334 = vmatprep.subr.mxu0 0.0
    %3335 = vmatpush1.msra.mxu0 0.0
    %3336 = vmatprep.subr.mxu0 0.0
    %3337 = vmatpush1.msra.mxu0 0.0
    %3338 = vmatprep.subr.mxu0 0.0
    %3339 = vmatpush1.msra.mxu0 0.0
    %3340 = vmatprep.subr.mxu0 0.0
    %3341 = vmatpush1.msra.mxu0 0.0
    %3342 = vmatprep.subr.mxu0 0.0
    %3343 = vmatpush1.msra.mxu0 0.0
    %3344 = vmatprep.subr.mxu0 0.0
    %3345 = vmatpush1.msra.mxu0 0.0
    %3346 = vmatprep.subr.mxu0 0.0
    %3347 = vmatpush1.msra.mxu0 0.0
    %3348 = vmatprep.subr.mxu0 0.0
    %3349 = vmatpush1.msra.mxu0 0.0
    %3350 = vmatprep.subr.mxu0 0.0
    %3351 = vmatpush1.msra.mxu0 0.0
    %3352 = vmatprep.subr.mxu0 0.0
    %3353 = vmatpush1.msra.mxu0 0.0
    %3354 = vmatprep.subr.mxu0 0.0
    %3355 = vmatpush1.msra.mxu0 0.0
    %3356 = vmatprep.subr.mxu0 0.0
    %3357 = vmatpush1.msra.mxu0 0.0
    %3358 = vmatprep.subr.mxu0 0.0
    %3359 = vmatpush1.msra.mxu0 0.0
    %3360 = vmatprep.subr.mxu0 0.0
    %3361 = vmatpush1.msra.mxu0 0.0
    %3362 = vmatprep.subr.mxu0 0.0
    %3363 = vmatpush1.msra.mxu0 0.0
    %3364 = vmatprep.subr.mxu0 0.0
    %3365 = vmatpush1.msra.mxu0 0.0
    %3366 = vmatprep.mubr.f32.mxu0 0.0
    %3367 = vmatmul.mubr.f32.gmra.mrb[0].mxu0 %v3300
    %v3368 = vpop.f32.mrb[0].mxu0
    %v3369 = vadd.f32 0.0, %v3368
    %v3370 = vpop.f32.mrb[0].mxu0
    %3371 = vdwg.mxu0
    %3374 = vrot.lane.b32.xlu0 %v2989, 8
    %v3375 = vpop.permute.xlu0 %3374
    %3376 = vrot.lane.b32.xlu0 %v3065, 8
    %v3377 = vpop.permute.xlu0 %3376
    %3382 = vrot.lane.b32.xlu0 %v3141, 16
    %v3383 = vpop.permute.xlu0 %3382
    %3384 = vrot.lane.b32.xlu0 %v3217, 16
    %v3385 = vpop.permute.xlu0 %3384
    %3390 = vrot.lane.b32.xlu0 %v3293, 24
    %v3391 = vpop.permute.xlu0 %3390
    %3392 = vrot.lane.b32.xlu0 %v3369, 24
    %v3393 = vpop.permute.xlu0 %3392
    %v3396 = vsel %vm337, %v2837, %v3375
    %v3397 = vsel %vm337, %v2913, %v3377
    %v3398 = vsel %vm1674, %v3396, %v3383
    %v3399 = vsel %vm1674, %v3397, %v3385
    %v3400 = vsel %vm1677, %v3398, %v3391
    %v3401 = vsel %vm1677, %v3399, %v3393
    %v3402 = vpack.c.bf16 %v3401, %v3400
    %v3403 = vld [vmem:[#allocation2 + $0xd0] sm:$0xf]
    %v3404 = vld [vmem:[#allocation2 + $0xd4] sm:$0xf]
    %v3405 = vld [vmem:[#allocation2 + $0xd8] sm:$0xf]
    %v3406 = vld [vmem:[#allocation2 + $0xdc] sm:$0xf]
    %v3411 = vunpack.c.l.b16 %v3403
    %v3412 = vunpack.c.l.b16 %v3404
    %v3413 = vunpack.c.l.b16 %v3405
    %v3414 = vunpack.c.l.b16 %v3406
    %v3415 = vpack.c.b16 %v3412, %v3411
    %v3416 = vpack.c.b16 %v3414, %v3413
    %v3420 = vsel %vm238, %v3402, 0
    %3422 = vmatprep.subr.bf16.mxu0 0
    %3423 = vmatpush1.bf16.msra.mxu0 %v3415
    %3424 = vmatprep.subr.bf16.mxu0 0
    %3425 = vmatpush1.bf16.msra.mxu0 %v3416
    %3426 = vmatprep.subr.bf16.mxu0 0
    %3427 = vmatpush1.bf16.msra.mxu0 0
    %3428 = vmatprep.subr.bf16.mxu0 0
    %3429 = vmatpush1.bf16.msra.mxu0 0
    %3430 = vmatprep.subr.bf16.mxu0 0
    %3431 = vmatpush1.bf16.msra.mxu0 0
    %3432 = vmatprep.subr.bf16.mxu0 0
    %3433 = vmatpush1.bf16.msra.mxu0 0
    %3434 = vmatprep.subr.bf16.mxu0 0
    %3435 = vmatpush1.bf16.msra.mxu0 0
    %3436 = vmatprep.subr.bf16.mxu0 0
    %3437 = vmatpush1.bf16.msra.mxu0 0
    %3438 = vmatprep.subr.bf16.mxu0 0
    %3439 = vmatpush1.bf16.msra.mxu0 0
    %3440 = vmatprep.subr.bf16.mxu0 0
    %3441 = vmatpush1.bf16.msra.mxu0 0
    %3442 = vmatprep.subr.bf16.mxu0 0
    %3443 = vmatpush1.bf16.msra.mxu0 0
    %3444 = vmatprep.subr.bf16.mxu0 0
    %3445 = vmatpush1.bf16.msra.mxu0 0
    %3446 = vmatprep.subr.bf16.mxu0 0
    %3447 = vmatpush1.bf16.msra.mxu0 0
    %3448 = vmatprep.subr.bf16.mxu0 0
    %3449 = vmatpush1.bf16.msra.mxu0 0
    %3450 = vmatprep.subr.bf16.mxu0 0
    %3451 = vmatpush1.bf16.msra.mxu0 0
    %3452 = vmatprep.subr.bf16.mxu0 0
    %3453 = vmatpush1.bf16.msra.mxu0 0
    %3454 = vmatprep.mubr.bf16.mxu0 0
    %3455 = vmatmul.mubr.bf16.gmra.mrb[0].mxu0 %v3420
    %v3456 = vpop.f32.mrb[0].mxu0
    %v3457 = vadd.f32 0.0, %v3456
    %v3458 = vpop.f32.mrb[0].mxu0
    %v3459 = vpop.f32.mrb[0].mxu0
    %v3460 = vadd.f32 0.0, %v3459
    %v3461 = vpop.f32.mrb[0].mxu0
    %3462 = vdwg.mxu0
    %v3463 = vadd.f32 %v182, %v3457
    %v3464 = vadd.f32 %v185, %v3460
    %v3465 = vmul.f32 %v3463, %v3463
    %v3466 = vmul.f32 %v3464, %v3464
    %v3467 = vsel %vm238, %v3465, 0.0
    %3468 = vadd.xlane.f32.xlu0 %v3467
    %v3469 = vpop.xlane.xlu0 %3468
    %v3470 = vsel %vm238, %v3466, 0.0
    %3471 = vadd.xlane.f32.xlu0 %v3470
    %v3472 = vpop.xlane.xlu0 %3471
    %v3473 = vmul.f32 %v3469, %v245
    %v3474 = vmul.f32 %v3472, %v245
    %v3475 = vadd.f32 %v3473, 1e-06
    %v3476 = vadd.f32 %v3474, 1e-06
    %v3477 = vrsqrt.pop %v3475
    %v3478 = vrsqrt.pop %v3476
    %v3479 = vmul.f32 %v3463, %v3477
    %v3480 = vmul.f32 %v3464, %v3478
    %v3481 = vlaneseq
    %v3482 = vshrl.u32 %v3481, 7
    %v3483 = vsub.s32 4, %v3482
    %v3484 = vrot.slane %v42, %v3483
    %v3485 = vmul.f32 %v3479, %v3484
    %v3486 = vmul.f32 %v3480, %v3484
    %v3487 = vpack.c.bf16 %v3486, %v3485
    %v3488 = vld [vmem:[#allocation2 + $0xe0] sm:$0xf]
    %v3489 = vld [vmem:[#allocation2 + $0xe4] sm:$0xf]
    %v3490 = vld [vmem:[#allocation2 + $0xe8] sm:$0xf]
    %v3491 = vld [vmem:[#allocation2 + $0xec] sm:$0xf]
    %v3496 = vunpack.c.l.b16 %v3488
    %v3497 = vunpack.c.l.b16 %v3489
    %v3498 = vunpack.c.l.b16 %v3490
    %v3499 = vunpack.c.l.b16 %v3491
    %v3500 = vpack.c.b16 %v3497, %v3496
    %v3501 = vpack.c.b16 %v3499, %v3498
    %v3505 = vsel %vm238, %v3487, 0
    %3507 = vmatprep.subr.bf16.mxu0 0
    %3508 = vmatpush1.bf16.msra.mxu0 %v3500
    %3509 = vmatprep.subr.bf16.mxu0 0
    %3510 = vmatpush1.bf16.msra.mxu0 %v3501
    %3511 = vmatprep.subr.bf16.mxu0 0
    %3512 = vmatpush1.bf16.msra.mxu0 0
    %3513 = vmatprep.subr.bf16.mxu0 0
    %3514 = vmatpush1.bf16.msra.mxu0 0
    %3515 = vmatprep.subr.bf16.mxu0 0
    %3516 = vmatpush1.bf16.msra.mxu0 0
    %3517 = vmatprep.subr.bf16.mxu0 0
    %3518 = vmatpush1.bf16.msra.mxu0 0
    %3519 = vmatprep.subr.bf16.mxu0 0
    %3520 = vmatpush1.bf16.msra.mxu0 0
    %3521 = vmatprep.subr.bf16.mxu0 0
    %3522 = vmatpush1.bf16.msra.mxu0 0
    %3523 = vmatprep.subr.bf16.mxu0 0
    %3524 = vmatpush1.bf16.msra.mxu0 0
    %3525 = vmatprep.subr.bf16.mxu0 0
    %3526 = vmatpush1.bf16.msra.mxu0 0
    %3527 = vmatprep.subr.bf16.mxu0 0
    %3528 = vmatpush1.bf16.msra.mxu0 0
    %3529 = vmatprep.subr.bf16.mxu0 0
    %3530 = vmatpush1.bf16.msra.mxu0 0
    %3531 = vmatprep.subr.bf16.mxu0 0
    %3532 = vmatpush1.bf16.msra.mxu0 0
    %3533 = vmatprep.subr.bf16.mxu0 0
    %3534 = vmatpush1.bf16.msra.mxu0 0
    %3535 = vmatprep.subr.bf16.mxu0 0
    %3536 = vmatpush1.bf16.msra.mxu0 0
    %3537 = vmatprep.subr.bf16.mxu0 0
    %3538 = vmatpush1.bf16.msra.mxu0 0
    %3539 = vmatprep.mubr.bf16.mxu0 0
    %3540 = vmatmul.mubr.bf16.gmra.mrb[0].mxu0 %v3505
    %v3541 = vpop.f32.mrb[0].mxu0
    %v3542 = vadd.f32 0.0, %v3541
    %v3543 = vpop.f32.mrb[0].mxu0
    %v3544 = vpop.f32.mrb[0].mxu0
    %v3545 = vadd.f32 0.0, %v3544
    %v3546 = vpop.f32.mrb[0].mxu0
    %3547 = vdwg.mxu0
    %v3548 = vld [vmem:[#allocation2 + $0xf0] sm:$0xf]
    %v3549 = vld [vmem:[#allocation2 + $0xf4] sm:$0xf]
    %v3550 = vld [vmem:[#allocation2 + $0xf8] sm:$0xf]
    %v3551 = vld [vmem:[#allocation2 + $0xfc] sm:$0xf]
    %v3556 = vunpack.c.l.b16 %v3548
    %v3557 = vunpack.c.l.b16 %v3549
    %v3558 = vunpack.c.l.b16 %v3550
    %v3559 = vunpack.c.l.b16 %v3551
    %v3560 = vpack.c.b16 %v3557, %v3556
    %v3561 = vpack.c.b16 %v3559, %v3558
    %v3565 = vsel %vm238, %v1958, 0
    %3567 = vmatprep.subr.bf16.mxu0 0
    %3568 = vmatpush1.bf16.msra.mxu0 %v3560
    %3569 = vmatprep.subr.bf16.mxu0 0
    %3570 = vmatpush1.bf16.msra.mxu0 %v3561
    %3571 = vmatprep.subr.bf16.mxu0 0
    %3572 = vmatpush1.bf16.msra.mxu0 0
    %3573 = vmatprep.subr.bf16.mxu0 0
    %3574 = vmatpush1.bf16.msra.mxu0 0
    %3575 = vmatprep.subr.bf16.mxu0 0
    %3576 = vmatpush1.bf16.msra.mxu0 0
    %3577 = vmatprep.subr.bf16.mxu0 0
    %3578 = vmatpush1.bf16.msra.mxu0 0
    %3579 = vmatprep.subr.bf16.mxu0 0
    %3580 = vmatpush1.bf16.msra.mxu0 0
    %3581 = vmatprep.subr.bf16.mxu0 0
    %3582 = vmatpush1.bf16.msra.mxu0 0
    %3583 = vmatprep.subr.bf16.mxu0 0
    %3584 = vmatpush1.bf16.msra.mxu0 0
    %3585 = vmatprep.subr.bf16.mxu0 0
    %3586 = vmatpush1.bf16.msra.mxu0 0
    %3587 = vmatprep.subr.bf16.mxu0 0
    %3588 = vmatpush1.bf16.msra.mxu0 0
    %3589 = vmatprep.subr.bf16.mxu0 0
    %3590 = vmatpush1.bf16.msra.mxu0 0
    %3591 = vmatprep.subr.bf16.mxu0 0
    %3592 = vmatpush1.bf16.msra.mxu0 0
    %3593 = vmatprep.subr.bf16.mxu0 0
    %3594 = vmatpush1.bf16.msra.mxu0 0
    %3595 = vmatprep.subr.bf16.mxu0 0
    %3596 = vmatpush1.bf16.msra.mxu0 0
    %3597 = vmatprep.subr.bf16.mxu0 0
    %3598 = vmatpush1.bf16.msra.mxu0 0
    %3599 = vmatprep.mubr.bf16.mxu0 0
    %3600 = vmatmul.mubr.bf16.gmra.mrb[0].mxu0 %v3565
    %v3601 = vpop.f32.mrb[0].mxu0
    %v3602 = vadd.f32 0.0, %v3601
    %v3603 = vpop.f32.mrb[0].mxu0
    %v3604 = vpop.f32.mrb[0].mxu0
    %v3605 = vadd.f32 0.0, %v3604
    %v3606 = vpop.f32.mrb[0].mxu0
    %3607 = vdwg.mxu0
    %3610 = vrot.lane.b32.xlu0 %v3542, 120
    %v3611 = vpop.permute.xlu0 %3610
    %3612 = vrot.lane.b32.xlu0 %v3545, 120
    %v3613 = vpop.permute.xlu0 %3612
    %3614 = vrot.lane.b32.xlu0 %v3542, 112
    %v3615 = vpop.permute.xlu0 %3614
    %3616 = vrot.lane.b32.xlu0 %v3545, 112
    %v3617 = vpop.permute.xlu0 %3616
    %3618 = vrot.lane.b32.xlu0 %v3542, 104
    %v3619 = vpop.permute.xlu0 %3618
    %3620 = vrot.lane.b32.xlu0 %v3545, 104
    %v3621 = vpop.permute.xlu0 %3620
    %3624 = vrot.lane.b32.xlu0 %v3602, 112
    %v3625 = vpop.permute.xlu0 %3624
    %3626 = vrot.lane.b32.xlu0 %v3605, 112
    %v3627 = vpop.permute.xlu0 %3626
    %3628 = vrot.lane.b32.xlu0 %v3602, 96
    %v3629 = vpop.permute.xlu0 %3628
    %3630 = vrot.lane.b32.xlu0 %v3605, 96
    %v3631 = vpop.permute.xlu0 %3630
    %3632 = vrot.lane.b32.xlu0 %v3602, 80
    %v3633 = vpop.permute.xlu0 %3632
    %3634 = vrot.lane.b32.xlu0 %v3605, 80
    %v3635 = vpop.permute.xlu0 %3634
    %v3636 = vsel %vm337, %v3542, 0
    %v3638 = vsel %vm337, %v3602, 0
    %3640 = vmatprep.subr.mxu0 0.0
    %3641 = vmatpush1.xpose.msra.mxu0 %v3638
    %3642 = vmatprep.subr.mxu0 0.0
    %3643 = vmatpush1.xpose.msra.mxu0 0.0
    %3644 = vmatprep.subr.mxu0 0.0
    %3645 = vmatpush1.xpose.msra.mxu0 0.0
    %3646 = vmatprep.subr.mxu0 0.0
    %3647 = vmatpush1.xpose.msra.mxu0 0.0
    %3648 = vmatprep.subr.mxu0 0.0
    %3649 = vmatpush1.xpose.msra.mxu0 0.0
    %3650 = vmatprep.subr.mxu0 0.0
    %3651 = vmatpush1.xpose.msra.mxu0 0.0
    %3652 = vmatprep.subr.mxu0 0.0
    %3653 = vmatpush1.xpose.msra.mxu0 0.0
    %3654 = vmatprep.subr.mxu0 0.0
    %3655 = vmatpush1.xpose.msra.mxu0 0.0
    %3656 = vmatprep.subr.mxu0 0.0
    %3657 = vmatpush1.xpose.msra.mxu0 0.0
    %3658 = vmatprep.subr.mxu0 0.0
    %3659 = vmatpush1.xpose.msra.mxu0 0.0
    %3660 = vmatprep.subr.mxu0 0.0
    %3661 = vmatpush1.xpose.msra.mxu0 0.0
    %3662 = vmatprep.subr.mxu0 0.0
    %3663 = vmatpush1.xpose.msra.mxu0 0.0
    %3664 = vmatprep.subr.mxu0 0.0
    %3665 = vmatpush1.xpose.msra.mxu0 0.0
    %3666 = vmatprep.subr.mxu0 0.0
    %3667 = vmatpush1.xpose.msra.mxu0 0.0
    %3668 = vmatprep.subr.mxu0 0.0
    %3669 = vmatpush1.xpose.msra.mxu0 0.0
    %3670 = vmatprep.subr.mxu0 0.0
    %3671 = vmatpush1.xpose.msra.mxu0 0.0
    %3672 = vmatprep.subr.mxu0 0.0
    %3673 = vmatpush1.xpose.msra.mxu0 0.0
    %3674 = vmatprep.subr.mxu0 0.0
    %3675 = vmatpush1.xpose.msra.mxu0 0.0
    %3676 = vmatprep.subr.mxu0 0.0
    %3677 = vmatpush1.xpose.msra.mxu0 0.0
    %3678 = vmatprep.subr.mxu0 0.0
    %3679 = vmatpush1.xpose.msra.mxu0 0.0
    %3680 = vmatprep.subr.mxu0 0.0
    %3681 = vmatpush1.xpose.msra.mxu0 0.0
    %3682 = vmatprep.subr.mxu0 0.0
    %3683 = vmatpush1.xpose.msra.mxu0 0.0
    %3684 = vmatprep.subr.mxu0 0.0
    %3685 = vmatpush1.xpose.msra.mxu0 0.0
    %3686 = vmatprep.subr.mxu0 0.0
    %3687 = vmatpush1.xpose.msra.mxu0 0.0
    %3688 = vmatprep.subr.mxu0 0.0
    %3689 = vmatpush1.xpose.msra.mxu0 0.0
    %3690 = vmatprep.subr.mxu0 0.0
    %3691 = vmatpush1.xpose.msra.mxu0 0.0
    %3692 = vmatprep.subr.mxu0 0.0
    %3693 = vmatpush1.xpose.msra.mxu0 0.0
    %3694 = vmatprep.subr.mxu0 0.0
    %3695 = vmatpush1.xpose.msra.mxu0 0.0
    %3696 = vmatprep.subr.mxu0 0.0
    %3697 = vmatpush1.xpose.msra.mxu0 0.0
    %3698 = vmatprep.subr.mxu0 0.0
    %3699 = vmatpush1.xpose.msra.mxu0 0.0
    %3700 = vmatprep.subr.mxu0 0.0
    %3701 = vmatpush1.xpose.msra.mxu0 0.0
    %3702 = vmatprep.subr.mxu0 0.0
    %3703 = vmatpush1.xpose.msra.mxu0 0.0
    %3704 = vmatprep.mubr.f32.mxu0 0.0
    %3705 = vmatmul.mubr.f32.gmra.mrb[0].mxu0 %v3636
    %v3706 = vpop.f32.mrb[0].mxu0
    %v3707 = vadd.f32 0.0, %v3706
    %v3708 = vpop.f32.mrb[0].mxu0
    %3709 = vdwg.mxu0
    %v3710 = vsel %vm337, %v3545, 0
    %v3712 = vsel %vm337, %v3605, 0
    %3714 = vmatprep.subr.mxu0 0.0
    %3715 = vmatpush1.xpose.msra.mxu0 %v3712
    %3716 = vmatprep.subr.mxu0 0.0
    %3717 = vmatpush1.xpose.msra.mxu0 0.0
    %3718 = vmatprep.subr.mxu0 0.0
    %3719 = vmatpush1.xpose.msra.mxu0 0.0
    %3720 = vmatprep.subr.mxu0 0.0
    %3721 = vmatpush1.xpose.msra.mxu0 0.0
    %3722 = vmatprep.subr.mxu0 0.0
    %3723 = vmatpush1.xpose.msra.mxu0 0.0
    %3724 = vmatprep.subr.mxu0 0.0
    %3725 = vmatpush1.xpose.msra.mxu0 0.0
    %3726 = vmatprep.subr.mxu0 0.0
    %3727 = vmatpush1.xpose.msra.mxu0 0.0
    %3728 = vmatprep.subr.mxu0 0.0
    %3729 = vmatpush1.xpose.msra.mxu0 0.0
    %3730 = vmatprep.subr.mxu0 0.0
    %3731 = vmatpush1.xpose.msra.mxu0 0.0
    %3732 = vmatprep.subr.mxu0 0.0
    %3733 = vmatpush1.xpose.msra.mxu0 0.0
    %3734 = vmatprep.subr.mxu0 0.0
    %3735 = vmatpush1.xpose.msra.mxu0 0.0
    %3736 = vmatprep.subr.mxu0 0.0
    %3737 = vmatpush1.xpose.msra.mxu0 0.0
    %3738 = vmatprep.subr.mxu0 0.0
    %3739 = vmatpush1.xpose.msra.mxu0 0.0
    %3740 = vmatprep.subr.mxu0 0.0
    %3741 = vmatpush1.xpose.msra.mxu0 0.0
    %3742 = vmatprep.subr.mxu0 0.0
    %3743 = vmatpush1.xpose.msra.mxu0 0.0
    %3744 = vmatprep.subr.mxu0 0.0
    %3745 = vmatpush1.xpose.msra.mxu0 0.0
    %3746 = vmatprep.subr.mxu0 0.0
    %3747 = vmatpush1.xpose.msra.mxu0 0.0
    %3748 = vmatprep.subr.mxu0 0.0
    %3749 = vmatpush1.xpose.msra.mxu0 0.0
    %3750 = vmatprep.subr.mxu0 0.0
    %3751 = vmatpush1.xpose.msra.mxu0 0.0
    %3752 = vmatprep.subr.mxu0 0.0
    %3753 = vmatpush1.xpose.msra.mxu0 0.0
    %3754 = vmatprep.subr.mxu0 0.0
    %3755 = vmatpush1.xpose.msra.mxu0 0.0
    %3756 = vmatprep.subr.mxu0 0.0
    %3757 = vmatpush1.xpose.msra.mxu0 0.0
    %3758 = vmatprep.subr.mxu0 0.0
    %3759 = vmatpush1.xpose.msra.mxu0 0.0
    %3760 = vmatprep.subr.mxu0 0.0
    %3761 = vmatpush1.xpose.msra.mxu0 0.0
    %3762 = vmatprep.subr.mxu0 0.0
    %3763 = vmatpush1.xpose.msra.mxu0 0.0
    %3764 = vmatprep.subr.mxu0 0.0
    %3765 = vmatpush1.xpose.msra.mxu0 0.0
    %3766 = vmatprep.subr.mxu0 0.0
    %3767 = vmatpush1.xpose.msra.mxu0 0.0
    %3768 = vmatprep.subr.mxu0 0.0
    %3769 = vmatpush1.xpose.msra.mxu0 0.0
    %3770 = vmatprep.subr.mxu0 0.0
    %3771 = vmatpush1.xpose.msra.mxu0 0.0
    %3772 = vmatprep.subr.mxu0 0.0
    %3773 = vmatpush1.xpose.msra.mxu0 0.0
    %3774 = vmatprep.subr.mxu0 0.0
    %3775 = vmatpush1.xpose.msra.mxu0 0.0
    %3776 = vmatprep.subr.mxu0 0.0
    %3777 = vmatpush1.xpose.msra.mxu0 0.0
    %3778 = vmatprep.mubr.f32.mxu0 0.0
    %3779 = vmatmul.mubr.f32.gmra.mrb[0].mxu0 %v3710
    %v3780 = vpop.f32.mrb[0].mxu0
    %v3781 = vadd.f32 0.0, %v3780
    %v3782 = vpop.f32.mrb[0].mxu0
    %3783 = vdwg.mxu0
    %v3784 = vsel %vm337, %v3611, 0
    %v3786 = vsel %vm337, %v3625, 0
    %3788 = vmatprep.subr.mxu0 0.0
    %3789 = vmatpush1.xpose.msra.mxu0 %v3786
    %3790 = vmatprep.subr.mxu0 0.0
    %3791 = vmatpush1.xpose.msra.mxu0 0.0
    %3792 = vmatprep.subr.mxu0 0.0
    %3793 = vmatpush1.xpose.msra.mxu0 0.0
    %3794 = vmatprep.subr.mxu0 0.0
    %3795 = vmatpush1.xpose.msra.mxu0 0.0
    %3796 = vmatprep.subr.mxu0 0.0
    %3797 = vmatpush1.xpose.msra.mxu0 0.0
    %3798 = vmatprep.subr.mxu0 0.0
    %3799 = vmatpush1.xpose.msra.mxu0 0.0
    %3800 = vmatprep.subr.mxu0 0.0
    %3801 = vmatpush1.xpose.msra.mxu0 0.0
    %3802 = vmatprep.subr.mxu0 0.0
    %3803 = vmatpush1.xpose.msra.mxu0 0.0
    %3804 = vmatprep.subr.mxu0 0.0
    %3805 = vmatpush1.xpose.msra.mxu0 0.0
    %3806 = vmatprep.subr.mxu0 0.0
    %3807 = vmatpush1.xpose.msra.mxu0 0.0
    %3808 = vmatprep.subr.mxu0 0.0
    %3809 = vmatpush1.xpose.msra.mxu0 0.0
    %3810 = vmatprep.subr.mxu0 0.0
    %3811 = vmatpush1.xpose.msra.mxu0 0.0
    %3812 = vmatprep.subr.mxu0 0.0
    %3813 = vmatpush1.xpose.msra.mxu0 0.0
    %3814 = vmatprep.subr.mxu0 0.0
    %3815 = vmatpush1.xpose.msra.mxu0 0.0
    %3816 = vmatprep.subr.mxu0 0.0
    %3817 = vmatpush1.xpose.msra.mxu0 0.0
    %3818 = vmatprep.subr.mxu0 0.0
    %3819 = vmatpush1.xpose.msra.mxu0 0.0
    %3820 = vmatprep.subr.mxu0 0.0
    %3821 = vmatpush1.xpose.msra.mxu0 0.0
    %3822 = vmatprep.subr.mxu0 0.0
    %3823 = vmatpush1.xpose.msra.mxu0 0.0
    %3824 = vmatprep.subr.mxu0 0.0
    %3825 = vmatpush1.xpose.msra.mxu0 0.0
    %3826 = vmatprep.subr.mxu0 0.0
    %3827 = vmatpush1.xpose.msra.mxu0 0.0
    %3828 = vmatprep.subr.mxu0 0.0
    %3829 = vmatpush1.xpose.msra.mxu0 0.0
    %3830 = vmatprep.subr.mxu0 0.0
    %3831 = vmatpush1.xpose.msra.mxu0 0.0
    %3832 = vmatprep.subr.mxu0 0.0
    %3833 = vmatpush1.xpose.msra.mxu0 0.0
    %3834 = vmatprep.subr.mxu0 0.0
    %3835 = vmatpush1.xpose.msra.mxu0 0.0
    %3836 = vmatprep.subr.mxu0 0.0
    %3837 = vmatpush1.xpose.msra.mxu0 0.0
    %3838 = vmatprep.subr.mxu0 0.0
    %3839 = vmatpush1.xpose.msra.mxu0 0.0
    %3840 = vmatprep.subr.mxu0 0.0
    %3841 = vmatpush1.xpose.msra.mxu0 0.0
    %3842 = vmatprep.subr.mxu0 0.0
    %3843 = vmatpush1.xpose.msra.mxu0 0.0
    %3844 = vmatprep.subr.mxu0 0.0
    %3845 = vmatpush1.xpose.msra.mxu0 0.0
    %3846 = vmatprep.subr.mxu0 0.0
    %3847 = vmatpush1.xpose.msra.mxu0 0.0
    %3848 = vmatprep.subr.mxu0 0.0
    %3849 = vmatpush1.xpose.msra.mxu0 0.0
    %3850 = vmatprep.subr.mxu0 0.0
    %3851 = vmatpush1.xpose.msra.mxu0 0.0
    %3852 = vmatprep.mubr.f32.mxu0 0.0
    %3853 = vmatmul.mubr.f32.gmra.mrb[0].mxu0 %v3784
    %v3854 = vpop.f32.mrb[0].mxu0
    %v3855 = vadd.f32 0.0, %v3854
    %v3856 = vpop.f32.mrb[0].mxu0
    %3857 = vdwg.mxu0
    %v3858 = vsel %vm337, %v3613, 0
    %v3860 = vsel %vm337, %v3627, 0
    %3862 = vmatprep.subr.mxu0 0.0
    %3863 = vmatpush1.xpose.msra.mxu0 %v3860
    %3864 = vmatprep.subr.mxu0 0.0
    %3865 = vmatpush1.xpose.msra.mxu0 0.0
    %3866 = vmatprep.subr.mxu0 0.0
    %3867 = vmatpush1.xpose.msra.mxu0 0.0
    %3868 = vmatprep.subr.mxu0 0.0
    %3869 = vmatpush1.xpose.msra.mxu0 0.0
    %3870 = vmatprep.subr.mxu0 0.0
    %3871 = vmatpush1.xpose.msra.mxu0 0.0
    %3872 = vmatprep.subr.mxu0 0.0
    %3873 = vmatpush1.xpose.msra.mxu0 0.0
    %3874 = vmatprep.subr.mxu0 0.0
    %3875 = vmatpush1.xpose.msra.mxu0 0.0
    %3876 = vmatprep.subr.mxu0 0.0
    %3877 = vmatpush1.xpose.msra.mxu0 0.0
    %3878 = vmatprep.subr.mxu0 0.0
    %3879 = vmatpush1.xpose.msra.mxu0 0.0
    %3880 = vmatprep.subr.mxu0 0.0
    %3881 = vmatpush1.xpose.msra.mxu0 0.0
    %3882 = vmatprep.subr.mxu0 0.0
    %3883 = vmatpush1.xpose.msra.mxu0 0.0
    %3884 = vmatprep.subr.mxu0 0.0
    %3885 = vmatpush1.xpose.msra.mxu0 0.0
    %3886 = vmatprep.subr.mxu0 0.0
    %3887 = vmatpush1.xpose.msra.mxu0 0.0
    %3888 = vmatprep.subr.mxu0 0.0
    %3889 = vmatpush1.xpose.msra.mxu0 0.0
    %3890 = vmatprep.subr.mxu0 0.0
    %3891 = vmatpush1.xpose.msra.mxu0 0.0
    %3892 = vmatprep.subr.mxu0 0.0
    %3893 = vmatpush1.xpose.msra.mxu0 0.0
    %3894 = vmatprep.subr.mxu0 0.0
    %3895 = vmatpush1.xpose.msra.mxu0 0.0
    %3896 = vmatprep.subr.mxu0 0.0
    %3897 = vmatpush1.xpose.msra.mxu0 0.0
    %3898 = vmatprep.subr.mxu0 0.0
    %3899 = vmatpush1.xpose.msra.mxu0 0.0
    %3900 = vmatprep.subr.mxu0 0.0
    %3901 = vmatpush1.xpose.msra.mxu0 0.0
    %3902 = vmatprep.subr.mxu0 0.0
    %3903 = vmatpush1.xpose.msra.mxu0 0.0
    %3904 = vmatprep.subr.mxu0 0.0
    %3905 = vmatpush1.xpose.msra.mxu0 0.0
    %3906 = vmatprep.subr.mxu0 0.0
    %3907 = vmatpush1.xpose.msra.mxu0 0.0
    %3908 = vmatprep.subr.mxu0 0.0
    %3909 = vmatpush1.xpose.msra.mxu0 0.0
    %3910 = vmatprep.subr.mxu0 0.0
    %3911 = vmatpush1.xpose.msra.mxu0 0.0
    %3912 = vmatprep.subr.mxu0 0.0
    %3913 = vmatpush1.xpose.msra.mxu0 0.0
    %3914 = vmatprep.subr.mxu0 0.0
    %3915 = vmatpush1.xpose.msra.mxu0 0.0
    %3916 = vmatprep.subr.mxu0 0.0
    %3917 = vmatpush1.xpose.msra.mxu0 0.0
    %3918 = vmatprep.subr.mxu0 0.0
    %3919 = vmatpush1.xpose.msra.mxu0 0.0
    %3920 = vmatprep.subr.mxu0 0.0
    %3921 = vmatpush1.xpose.msra.mxu0 0.0
    %3922 = vmatprep.subr.mxu0 0.0
    %3923 = vmatpush1.xpose.msra.mxu0 0.0
    %3924 = vmatprep.subr.mxu0 0.0
    %3925 = vmatpush1.xpose.msra.mxu0 0.0
    %3926 = vmatprep.mubr.f32.mxu0 0.0
    %3927 = vmatmul.mubr.f32.gmra.mrb[0].mxu0 %v3858
    %v3928 = vpop.f32.mrb[0].mxu0
    %v3929 = vadd.f32 0.0, %v3928
    %v3930 = vpop.f32.mrb[0].mxu0
    %3931 = vdwg.mxu0
    %v3932 = vsel %vm337, %v3615, 0
    %v3934 = vsel %vm337, %v3629, 0
    %3936 = vmatprep.subr.mxu0 0.0
    %3937 = vmatpush1.xpose.msra.mxu0 %v3934
    %3938 = vmatprep.subr.mxu0 0.0
    %3939 = vmatpush1.xpose.msra.mxu0 0.0
    %3940 = vmatprep.subr.mxu0 0.0
    %3941 = vmatpush1.xpose.msra.mxu0 0.0
    %3942 = vmatprep.subr.mxu0 0.0
    %3943 = vmatpush1.xpose.msra.mxu0 0.0
    %3944 = vmatprep.subr.mxu0 0.0
    %3945 = vmatpush1.xpose.msra.mxu0 0.0
    %3946 = vmatprep.subr.mxu0 0.0
    %3947 = vmatpush1.xpose.msra.mxu0 0.0
    %3948 = vmatprep.subr.mxu0 0.0
    %3949 = vmatpush1.xpose.msra.mxu0 0.0
    %3950 = vmatprep.subr.mxu0 0.0
    %3951 = vmatpush1.xpose.msra.mxu0 0.0
    %3952 = vmatprep.subr.mxu0 0.0
    %3953 = vmatpush1.xpose.msra.mxu0 0.0
    %3954 = vmatprep.subr.mxu0 0.0
    %3955 = vmatpush1.xpose.msra.mxu0 0.0
    %3956 = vmatprep.subr.mxu0 0.0
    %3957 = vmatpush1.xpose.msra.mxu0 0.0
    %3958 = vmatprep.subr.mxu0 0.0
    %3959 = vmatpush1.xpose.msra.mxu0 0.0
    %3960 = vmatprep.subr.mxu0 0.0
    %3961 = vmatpush1.xpose.msra.mxu0 0.0
    %3962 = vmatprep.subr.mxu0 0.0
    %3963 = vmatpush1.xpose.msra.mxu0 0.0
    %3964 = vmatprep.subr.mxu0 0.0
    %3965 = vmatpush1.xpose.msra.mxu0 0.0
    %3966 = vmatprep.subr.mxu0 0.0
    %3967 = vmatpush1.xpose.msra.mxu0 0.0
    %3968 = vmatprep.subr.mxu0 0.0
    %3969 = vmatpush1.xpose.msra.mxu0 0.0
    %3970 = vmatprep.subr.mxu0 0.0
    %3971 = vmatpush1.xpose.msra.mxu0 0.0
    %3972 = vmatprep.subr.mxu0 0.0
    %3973 = vmatpush1.xpose.msra.mxu0 0.0
    %3974 = vmatprep.subr.mxu0 0.0
    %3975 = vmatpush1.xpose.msra.mxu0 0.0
    %3976 = vmatprep.subr.mxu0 0.0
    %3977 = vmatpush1.xpose.msra.mxu0 0.0
    %3978 = vmatprep.subr.mxu0 0.0
    %3979 = vmatpush1.xpose.msra.mxu0 0.0
    %3980 = vmatprep.subr.mxu0 0.0
    %3981 = vmatpush1.xpose.msra.mxu0 0.0
    %3982 = vmatprep.subr.mxu0 0.0
    %3983 = vmatpush1.xpose.msra.mxu0 0.0
    %3984 = vmatprep.subr.mxu0 0.0
    %3985 = vmatpush1.xpose.msra.mxu0 0.0
    %3986 = vmatprep.subr.mxu0 0.0
    %3987 = vmatpush1.xpose.msra.mxu0 0.0
    %3988 = vmatprep.subr.mxu0 0.0
    %3989 = vmatpush1.xpose.msra.mxu0 0.0
    %3990 = vmatprep.subr.mxu0 0.0
    %3991 = vmatpush1.xpose.msra.mxu0 0.0
    %3992 = vmatprep.subr.mxu0 0.0
    %3993 = vmatpush1.xpose.msra.mxu0 0.0
    %3994 = vmatprep.subr.mxu0 0.0
    %3995 = vmatpush1.xpose.msra.mxu0 0.0
    %3996 = vmatprep.subr.mxu0 0.0
    %3997 = vmatpush1.xpose.msra.mxu0 0.0
    %3998 = vmatprep.subr.mxu0 0.0
    %3999 = vmatpush1.xpose.msra.mxu0 0.0
    %4000 = vmatprep.mubr.f32.mxu0 0.0
    %4001 = vmatmul.mubr.f32.gmra.mrb[0].mxu0 %v3932
    %v4002 = vpop.f32.mrb[0].mxu0
    %v4003 = vadd.f32 0.0, %v4002
    %v4004 = vpop.f32.mrb[0].mxu0
    %4005 = vdwg.mxu0
    %v4006 = vsel %vm337, %v3617, 0
    %v4008 = vsel %vm337, %v3631, 0
    %4010 = vmatprep.subr.mxu0 0.0
    %4011 = vmatpush1.xpose.msra.mxu0 %v4008
    %4012 = vmatprep.subr.mxu0 0.0
    %4013 = vmatpush1.xpose.msra.mxu0 0.0
    %4014 = vmatprep.subr.mxu0 0.0
    %4015 = vmatpush1.xpose.msra.mxu0 0.0
    %4016 = vmatprep.subr.mxu0 0.0
    %4017 = vmatpush1.xpose.msra.mxu0 0.0
    %4018 = vmatprep.subr.mxu0 0.0
    %4019 = vmatpush1.xpose.msra.mxu0 0.0
    %4020 = vmatprep.subr.mxu0 0.0
    %4021 = vmatpush1.xpose.msra.mxu0 0.0
    %4022 = vmatprep.subr.mxu0 0.0
    %4023 = vmatpush1.xpose.msra.mxu0 0.0
    %4024 = vmatprep.subr.mxu0 0.0
    %4025 = vmatpush1.xpose.msra.mxu0 0.0
    %4026 = vmatprep.subr.mxu0 0.0
    %4027 = vmatpush1.xpose.msra.mxu0 0.0
    %4028 = vmatprep.subr.mxu0 0.0
    %4029 = vmatpush1.xpose.msra.mxu0 0.0
    %4030 = vmatprep.subr.mxu0 0.0
    %4031 = vmatpush1.xpose.msra.mxu0 0.0
    %4032 = vmatprep.subr.mxu0 0.0
    %4033 = vmatpush1.xpose.msra.mxu0 0.0
    %4034 = vmatprep.subr.mxu0 0.0
    %4035 = vmatpush1.xpose.msra.mxu0 0.0
    %4036 = vmatprep.subr.mxu0 0.0
    %4037 = vmatpush1.xpose.msra.mxu0 0.0
    %4038 = vmatprep.subr.mxu0 0.0
    %4039 = vmatpush1.xpose.msra.mxu0 0.0
    %4040 = vmatprep.subr.mxu0 0.0
    %4041 = vmatpush1.xpose.msra.mxu0 0.0
    %4042 = vmatprep.subr.mxu0 0.0
    %4043 = vmatpush1.xpose.msra.mxu0 0.0
    %4044 = vmatprep.subr.mxu0 0.0
    %4045 = vmatpush1.xpose.msra.mxu0 0.0
    %4046 = vmatprep.subr.mxu0 0.0
    %4047 = vmatpush1.xpose.msra.mxu0 0.0
    %4048 = vmatprep.subr.mxu0 0.0
    %4049 = vmatpush1.xpose.msra.mxu0 0.0
    %4050 = vmatprep.subr.mxu0 0.0
    %4051 = vmatpush1.xpose.msra.mxu0 0.0
    %4052 = vmatprep.subr.mxu0 0.0
    %4053 = vmatpush1.xpose.msra.mxu0 0.0
    %4054 = vmatprep.subr.mxu0 0.0
    %4055 = vmatpush1.xpose.msra.mxu0 0.0
    %4056 = vmatprep.subr.mxu0 0.0
    %4057 = vmatpush1.xpose.msra.mxu0 0.0
    %4058 = vmatprep.subr.mxu0 0.0
    %4059 = vmatpush1.xpose.msra.mxu0 0.0
    %4060 = vmatprep.subr.mxu0 0.0
    %4061 = vmatpush1.xpose.msra.mxu0 0.0
    %4062 = vmatprep.subr.mxu0 0.0
    %4063 = vmatpush1.xpose.msra.mxu0 0.0
    %4064 = vmatprep.subr.mxu0 0.0
    %4065 = vmatpush1.xpose.msra.mxu0 0.0
    %4066 = vmatprep.subr.mxu0 0.0
    %4067 = vmatpush1.xpose.msra.mxu0 0.0
    %4068 = vmatprep.subr.mxu0 0.0
    %4069 = vmatpush1.xpose.msra.mxu0 0.0
    %4070 = vmatprep.subr.mxu0 0.0
    %4071 = vmatpush1.xpose.msra.mxu0 0.0
    %4072 = vmatprep.subr.mxu0 0.0
    %4073 = vmatpush1.xpose.msra.mxu0 0.0
    %4074 = vmatprep.mubr.f32.mxu0 0.0
    %4075 = vmatmul.mubr.f32.gmra.mrb[0].mxu0 %v4006
    %v4076 = vpop.f32.mrb[0].mxu0
    %v4077 = vadd.f32 0.0, %v4076
    %v4078 = vpop.f32.mrb[0].mxu0
    %4079 = vdwg.mxu0
    %v4080 = vsel %vm337, %v3619, 0
    %v4082 = vsel %vm337, %v3633, 0
    %4084 = vmatprep.subr.mxu0 0.0
    %4085 = vmatpush1.xpose.msra.mxu0 %v4082
    %4086 = vmatprep.subr.mxu0 0.0
    %4087 = vmatpush1.xpose.msra.mxu0 0.0
    %4088 = vmatprep.subr.mxu0 0.0
    %4089 = vmatpush1.xpose.msra.mxu0 0.0
    %4090 = vmatprep.subr.mxu0 0.0
    %4091 = vmatpush1.xpose.msra.mxu0 0.0
    %4092 = vmatprep.subr.mxu0 0.0
    %4093 = vmatpush1.xpose.msra.mxu0 0.0
    %4094 = vmatprep.subr.mxu0 0.0
    %4095 = vmatpush1.xpose.msra.mxu0 0.0
    %4096 = vmatprep.subr.mxu0 0.0
    %4097 = vmatpush1.xpose.msra.mxu0 0.0
    %4098 = vmatprep.subr.mxu0 0.0
    %4099 = vmatpush1.xpose.msra.mxu0 0.0
    %4100 = vmatprep.subr.mxu0 0.0
    %4101 = vmatpush1.xpose.msra.mxu0 0.0
    %4102 = vmatprep.subr.mxu0 0.0
    %4103 = vmatpush1.xpose.msra.mxu0 0.0
    %4104 = vmatprep.subr.mxu0 0.0
    %4105 = vmatpush1.xpose.msra.mxu0 0.0
    %4106 = vmatprep.subr.mxu0 0.0
    %4107 = vmatpush1.xpose.msra.mxu0 0.0
    %4108 = vmatprep.subr.mxu0 0.0
    %4109 = vmatpush1.xpose.msra.mxu0 0.0
    %4110 = vmatprep.subr.mxu0 0.0
    %4111 = vmatpush1.xpose.msra.mxu0 0.0
    %4112 = vmatprep.subr.mxu0 0.0
    %4113 = vmatpush1.xpose.msra.mxu0 0.0
    %4114 = vmatprep.subr.mxu0 0.0
    %4115 = vmatpush1.xpose.msra.mxu0 0.0
    %4116 = vmatprep.subr.mxu0 0.0
    %4117 = vmatpush1.xpose.msra.mxu0 0.0
    %4118 = vmatprep.subr.mxu0 0.0
    %4119 = vmatpush1.xpose.msra.mxu0 0.0
    %4120 = vmatprep.subr.mxu0 0.0
    %4121 = vmatpush1.xpose.msra.mxu0 0.0
    %4122 = vmatprep.subr.mxu0 0.0
    %4123 = vmatpush1.xpose.msra.mxu0 0.0
    %4124 = vmatprep.subr.mxu0 0.0
    %4125 = vmatpush1.xpose.msra.mxu0 0.0
    %4126 = vmatprep.subr.mxu0 0.0
    %4127 = vmatpush1.xpose.msra.mxu0 0.0
    %4128 = vmatprep.subr.mxu0 0.0
    %4129 = vmatpush1.xpose.msra.mxu0 0.0
    %4130 = vmatprep.subr.mxu0 0.0
    %4131 = vmatpush1.xpose.msra.mxu0 0.0
    %4132 = vmatprep.subr.mxu0 0.0
    %4133 = vmatpush1.xpose.msra.mxu0 0.0
    %4134 = vmatprep.subr.mxu0 0.0
    %4135 = vmatpush1.xpose.msra.mxu0 0.0
    %4136 = vmatprep.subr.mxu0 0.0
    %4137 = vmatpush1.xpose.msra.mxu0 0.0
    %4138 = vmatprep.subr.mxu0 0.0
    %4139 = vmatpush1.xpose.msra.mxu0 0.0
    %4140 = vmatprep.subr.mxu0 0.0
    %4141 = vmatpush1.xpose.msra.mxu0 0.0
    %4142 = vmatprep.subr.mxu0 0.0
    %4143 = vmatpush1.xpose.msra.mxu0 0.0
    %4144 = vmatprep.subr.mxu0 0.0
    %4145 = vmatpush1.xpose.msra.mxu0 0.0
    %4146 = vmatprep.subr.mxu0 0.0
    %4147 = vmatpush1.xpose.msra.mxu0 0.0
    %4148 = vmatprep.mubr.f32.mxu0 0.0
    %4149 = vmatmul.mubr.f32.gmra.mrb[0].mxu0 %v4080
    %v4150 = vpop.f32.mrb[0].mxu0
    %v4151 = vadd.f32 0.0, %v4150
    %v4152 = vpop.f32.mrb[0].mxu0
    %4153 = vdwg.mxu0
    %v4154 = vsel %vm337, %v3621, 0
    %v4156 = vsel %vm337, %v3635, 0
    %4158 = vmatprep.subr.mxu0 0.0
    %4159 = vmatpush1.xpose.msra.mxu0 %v4156
    %4160 = vmatprep.subr.mxu0 0.0
    %4161 = vmatpush1.xpose.msra.mxu0 0.0
    %4162 = vmatprep.subr.mxu0 0.0
    %4163 = vmatpush1.xpose.msra.mxu0 0.0
    %4164 = vmatprep.subr.mxu0 0.0
    %4165 = vmatpush1.xpose.msra.mxu0 0.0
    %4166 = vmatprep.subr.mxu0 0.0
    %4167 = vmatpush1.xpose.msra.mxu0 0.0
    %4168 = vmatprep.subr.mxu0 0.0
    %4169 = vmatpush1.xpose.msra.mxu0 0.0
    %4170 = vmatprep.subr.mxu0 0.0
    %4171 = vmatpush1.xpose.msra.mxu0 0.0
    %4172 = vmatprep.subr.mxu0 0.0
    %4173 = vmatpush1.xpose.msra.mxu0 0.0
    %4174 = vmatprep.subr.mxu0 0.0
    %4175 = vmatpush1.xpose.msra.mxu0 0.0
    %4176 = vmatprep.subr.mxu0 0.0
    %4177 = vmatpush1.xpose.msra.mxu0 0.0
    %4178 = vmatprep.subr.mxu0 0.0
    %4179 = vmatpush1.xpose.msra.mxu0 0.0
    %4180 = vmatprep.subr.mxu0 0.0
    %4181 = vmatpush1.xpose.msra.mxu0 0.0
    %4182 = vmatprep.subr.mxu0 0.0
    %4183 = vmatpush1.xpose.msra.mxu0 0.0
    %4184 = vmatprep.subr.mxu0 0.0
    %4185 = vmatpush1.xpose.msra.mxu0 0.0
    %4186 = vmatprep.subr.mxu0 0.0
    %4187 = vmatpush1.xpose.msra.mxu0 0.0
    %4188 = vmatprep.subr.mxu0 0.0
    %4189 = vmatpush1.xpose.msra.mxu0 0.0
    %4190 = vmatprep.subr.mxu0 0.0
    %4191 = vmatpush1.xpose.msra.mxu0 0.0
    %4192 = vmatprep.subr.mxu0 0.0
    %4193 = vmatpush1.xpose.msra.mxu0 0.0
    %4194 = vmatprep.subr.mxu0 0.0
    %4195 = vmatpush1.xpose.msra.mxu0 0.0
    %4196 = vmatprep.subr.mxu0 0.0
    %4197 = vmatpush1.xpose.msra.mxu0 0.0
    %4198 = vmatprep.subr.mxu0 0.0
    %4199 = vmatpush1.xpose.msra.mxu0 0.0
    %4200 = vmatprep.subr.mxu0 0.0
    %4201 = vmatpush1.xpose.msra.mxu0 0.0
    %4202 = vmatprep.subr.mxu0 0.0
    %4203 = vmatpush1.xpose.msra.mxu0 0.0
    %4204 = vmatprep.subr.mxu0 0.0
    %4205 = vmatpush1.xpose.msra.mxu0 0.0
    %4206 = vmatprep.subr.mxu0 0.0
    %4207 = vmatpush1.xpose.msra.mxu0 0.0
    %4208 = vmatprep.subr.mxu0 0.0
    %4209 = vmatpush1.xpose.msra.mxu0 0.0
    %4210 = vmatprep.subr.mxu0 0.0
    %4211 = vmatpush1.xpose.msra.mxu0 0.0
    %4212 = vmatprep.subr.mxu0 0.0
    %4213 = vmatpush1.xpose.msra.mxu0 0.0
    %4214 = vmatprep.subr.mxu0 0.0
    %4215 = vmatpush1.xpose.msra.mxu0 0.0
    %4216 = vmatprep.subr.mxu0 0.0
    %4217 = vmatpush1.xpose.msra.mxu0 0.0
    %4218 = vmatprep.subr.mxu0 0.0
    %4219 = vmatpush1.xpose.msra.mxu0 0.0
    %4220 = vmatprep.subr.mxu0 0.0
    %4221 = vmatpush1.xpose.msra.mxu0 0.0
    %4222 = vmatprep.mubr.f32.mxu0 0.0
    %4223 = vmatmul.mubr.f32.gmra.mrb[0].mxu0 %v4154
    %v4224 = vpop.f32.mrb[0].mxu0
    %v4225 = vadd.f32 0.0, %v4224
    %v4226 = vpop.f32.mrb[0].mxu0
    %4227 = vdwg.mxu0
    %v4228 = vadd.f32 %v3707, %v221
    %v4229 = vadd.f32 %v3781, %v225
    %v4230 = vadd.f32 %v3855, %v221
    %v4231 = vadd.f32 %v3929, %v225
    %v4232 = vadd.f32 %v4003, %v221
    %v4233 = vadd.f32 %v4077, %v225
    %v4234 = vadd.f32 %v4151, %v221
    %v4235 = vadd.f32 %v4225, %v225
    %v4236 = vsel %vm337, %v4228, -inf
    %4237 = vmax.xlane.f32.xlu0 %v4236
    %v4238 = vpop.xlane.xlu0 %4237
    %v4239 = vsel %vm337, %v4229, -inf
    %4240 = vmax.xlane.f32.xlu0 %v4239
    %v4241 = vpop.xlane.xlu0 %4240
    %v4242 = vsel %vm337, %v4230, -inf
    %4243 = vmax.xlane.f32.xlu0 %v4242
    %v4244 = vpop.xlane.xlu0 %4243
    %v4245 = vsel %vm337, %v4231, -inf
    %4246 = vmax.xlane.f32.xlu0 %v4245
    %v4247 = vpop.xlane.xlu0 %4246
    %v4248 = vsel %vm337, %v4232, -inf
    %4249 = vmax.xlane.f32.xlu0 %v4248
    %v4250 = vpop.xlane.xlu0 %4249
    %v4251 = vsel %vm337, %v4233, -inf
    %4252 = vmax.xlane.f32.xlu0 %v4251
    %v4253 = vpop.xlane.xlu0 %4252
    %v4254 = vsel %vm337, %v4234, -inf
    %4255 = vmax.xlane.f32.xlu0 %v4254
    %v4256 = vpop.xlane.xlu0 %4255
    %v4257 = vsel %vm337, %v4235, -inf
    %4258 = vmax.xlane.f32.xlu0 %v4257
    %v4259 = vpop.xlane.xlu0 %4258
    %v4260 = vsub.f32 %v4228, %v4238
    %v4261 = vsub.f32 %v4229, %v4241
    %v4262 = vsub.f32 %v4230, %v4244
    %v4263 = vsub.f32 %v4231, %v4247
    %v4264 = vsub.f32 %v4232, %v4250
    %v4265 = vsub.f32 %v4233, %v4253
    %v4266 = vsub.f32 %v4234, %v4256
    %v4267 = vsub.f32 %v4235, %v4259
    %v4268 = vmul.f32 %v4260, 1.442695
    %v4269 = vpow.pop %v4268
    %v4270 = vmul.f32 %v4261, 1.442695
    %v4271 = vpow.pop %v4270
    %v4272 = vmul.f32 %v4262, 1.442695
    %v4273 = vpow.pop %v4272
    %v4274 = vmul.f32 %v4263, 1.442695
    %v4275 = vpow.pop %v4274
    %v4276 = vmul.f32 %v4264, 1.442695
    %v4277 = vpow.pop %v4276
    %v4278 = vmul.f32 %v4265, 1.442695
    %v4279 = vpow.pop %v4278
    %v4280 = vmul.f32 %v4266, 1.442695
    %v4281 = vpow.pop %v4280
    %v4282 = vmul.f32 %v4267, 1.442695
    %v4283 = vpow.pop %v4282
    %v4284 = vsel %vm337, %v4269, 0.0
    %4285 = vadd.xlane.f32.xlu0 %v4284
    %v4286 = vpop.xlane.xlu0 %4285
    %v4287 = vsel %vm337, %v4271, 0.0
    %4288 = vadd.xlane.f32.xlu0 %v4287
    %v4289 = vpop.xlane.xlu0 %4288
    %v4290 = vsel %vm337, %v4273, 0.0
    %4291 = vadd.xlane.f32.xlu0 %v4290
    %v4292 = vpop.xlane.xlu0 %4291
    %v4293 = vsel %vm337, %v4275, 0.0
    %4294 = vadd.xlane.f32.xlu0 %v4293
    %v4295 = vpop.xlane.xlu0 %4294
    %v4296 = vsel %vm337, %v4277, 0.0
    %4297 = vadd.xlane.f32.xlu0 %v4296
    %v4298 = vpop.xlane.xlu0 %4297
    %v4299 = vsel %vm337, %v4279, 0.0
    %4300 = vadd.xlane.f32.xlu0 %v4299
    %v4301 = vpop.xlane.xlu0 %4300
    %v4302 = vsel %vm337, %v4281, 0.0
    %4303 = vadd.xlane.f32.xlu0 %v4302
    %v4304 = vpop.xlane.xlu0 %4303
    %v4305 = vsel %vm337, %v4283, 0.0
    %4306 = vadd.xlane.f32.xlu0 %v4305
    %v4307 = vpop.xlane.xlu0 %4306
    %v4308 = vrcp.pop %v4286
    %v4309 = vrcp.pop %v4289
    %v4310 = vrcp.pop %v4292
    %v4311 = vrcp.pop %v4295
    %v4312 = vrcp.pop %v4298
    %v4313 = vrcp.pop %v4301
    %v4314 = vrcp.pop %v4304
    %v4315 = vrcp.pop %v4307
    %v4316 = vmul.f32 %v4269, %v4308
    %v4317 = vmul.f32 %v4271, %v4309
    %v4318 = vmul.f32 %v4273, %v4310
    %v4319 = vmul.f32 %v4275, %v4311
    %v4320 = vmul.f32 %v4277, %v4312
    %v4321 = vmul.f32 %v4279, %v4313
    %v4322 = vmul.f32 %v4281, %v4314
    %v4323 = vmul.f32 %v4283, %v4315
    %4324 = vrot.lane.b32.xlu0 %v3602, 120
    %v4325 = vpop.permute.xlu0 %4324
    %v4328 = vsel %vm337, %v4316, 0
    %4330 = vmatprep.subr.mxu0 0.0
    %4331 = vmatpush1.msra.mxu0 %v4325
    %4332 = vmatprep.subr.mxu0 0.0
    %4333 = vmatpush1.msra.mxu0 0.0
    %4334 = vmatprep.subr.mxu0 0.0
    %4335 = vmatpush1.msra.mxu0 0.0
    %4336 = vmatprep.subr.mxu0 0.0
    %4337 = vmatpush1.msra.mxu0 0.0
    %4338 = vmatprep.subr.mxu0 0.0
    %4339 = vmatpush1.msra.mxu0 0.0
    %4340 = vmatprep.subr.mxu0 0.0
    %4341 = vmatpush1.msra.mxu0 0.0
    %4342 = vmatprep.subr.mxu0 0.0
    %4343 = vmatpush1.msra.mxu0 0.0
    %4344 = vmatprep.subr.mxu0 0.0
    %4345 = vmatpush1.msra.mxu0 0.0
    %4346 = vmatprep.subr.mxu0 0.0
    %4347 = vmatpush1.msra.mxu0 0.0
    %4348 = vmatprep.subr.mxu0 0.0
    %4349 = vmatpush1.msra.mxu0 0.0
    %4350 = vmatprep.subr.mxu0 0.0
    %4351 = vmatpush1.msra.mxu0 0.0
    %4352 = vmatprep.subr.mxu0 0.0
    %4353 = vmatpush1.msra.mxu0 0.0
    %4354 = vmatprep.subr.mxu0 0.0
    %4355 = vmatpush1.msra.mxu0 0.0
    %4356 = vmatprep.subr.mxu0 0.0
    %4357 = vmatpush1.msra.mxu0 0.0
    %4358 = vmatprep.subr.mxu0 0.0
    %4359 = vmatpush1.msra.mxu0 0.0
    %4360 = vmatprep.subr.mxu0 0.0
    %4361 = vmatpush1.msra.mxu0 0.0
    %4362 = vmatprep.subr.mxu0 0.0
    %4363 = vmatpush1.msra.mxu0 0.0
    %4364 = vmatprep.subr.mxu0 0.0
    %4365 = vmatpush1.msra.mxu0 0.0
    %4366 = vmatprep.subr.mxu0 0.0
    %4367 = vmatpush1.msra.mxu0 0.0
    %4368 = vmatprep.subr.mxu0 0.0
    %4369 = vmatpush1.msra.mxu0 0.0
    %4370 = vmatprep.subr.mxu0 0.0
    %4371 = vmatpush1.msra.mxu0 0.0
    %4372 = vmatprep.subr.mxu0 0.0
    %4373 = vmatpush1.msra.mxu0 0.0
    %4374 = vmatprep.subr.mxu0 0.0
    %4375 = vmatpush1.msra.mxu0 0.0
    %4376 = vmatprep.subr.mxu0 0.0
    %4377 = vmatpush1.msra.mxu0 0.0
    %4378 = vmatprep.subr.mxu0 0.0
    %4379 = vmatpush1.msra.mxu0 0.0
    %4380 = vmatprep.subr.mxu0 0.0
    %4381 = vmatpush1.msra.mxu0 0.0
    %4382 = vmatprep.subr.mxu0 0.0
    %4383 = vmatpush1.msra.mxu0 0.0
    %4384 = vmatprep.subr.mxu0 0.0
    %4385 = vmatpush1.msra.mxu0 0.0
    %4386 = vmatprep.subr.mxu0 0.0
    %4387 = vmatpush1.msra.mxu0 0.0
    %4388 = vmatprep.subr.mxu0 0.0
    %4389 = vmatpush1.msra.mxu0 0.0
    %4390 = vmatprep.subr.mxu0 0.0
    %4391 = vmatpush1.msra.mxu0 0.0
    %4392 = vmatprep.subr.mxu0 0.0
    %4393 = vmatpush1.msra.mxu0 0.0
    %4394 = vmatprep.mubr.f32.mxu0 0.0
    %4395 = vmatmul.mubr.f32.gmra.mrb[0].mxu0 %v4328
    %v4396 = vpop.f32.mrb[0].mxu0
    %v4397 = vadd.f32 0.0, %v4396
    %v4398 = vpop.f32.mrb[0].mxu0
    %4399 = vdwg.mxu0
    %4400 = vrot.lane.b32.xlu0 %v3605, 120
    %v4401 = vpop.permute.xlu0 %4400
    %v4404 = vsel %vm337, %v4317, 0
    %4406 = vmatprep.subr.mxu0 0.0
    %4407 = vmatpush1.msra.mxu0 %v4401
    %4408 = vmatprep.subr.mxu0 0.0
    %4409 = vmatpush1.msra.mxu0 0.0
    %4410 = vmatprep.subr.mxu0 0.0
    %4411 = vmatpush1.msra.mxu0 0.0
    %4412 = vmatprep.subr.mxu0 0.0
    %4413 = vmatpush1.msra.mxu0 0.0
    %4414 = vmatprep.subr.mxu0 0.0
    %4415 = vmatpush1.msra.mxu0 0.0
    %4416 = vmatprep.subr.mxu0 0.0
    %4417 = vmatpush1.msra.mxu0 0.0
    %4418 = vmatprep.subr.mxu0 0.0
    %4419 = vmatpush1.msra.mxu0 0.0
    %4420 = vmatprep.subr.mxu0 0.0
    %4421 = vmatpush1.msra.mxu0 0.0
    %4422 = vmatprep.subr.mxu0 0.0
    %4423 = vmatpush1.msra.mxu0 0.0
    %4424 = vmatprep.subr.mxu0 0.0
    %4425 = vmatpush1.msra.mxu0 0.0
    %4426 = vmatprep.subr.mxu0 0.0
    %4427 = vmatpush1.msra.mxu0 0.0
    %4428 = vmatprep.subr.mxu0 0.0
    %4429 = vmatpush1.msra.mxu0 0.0
    %4430 = vmatprep.subr.mxu0 0.0
    %4431 = vmatpush1.msra.mxu0 0.0
    %4432 = vmatprep.subr.mxu0 0.0
    %4433 = vmatpush1.msra.mxu0 0.0
    %4434 = vmatprep.subr.mxu0 0.0
    %4435 = vmatpush1.msra.mxu0 0.0
    %4436 = vmatprep.subr.mxu0 0.0
    %4437 = vmatpush1.msra.mxu0 0.0
    %4438 = vmatprep.subr.mxu0 0.0
    %4439 = vmatpush1.msra.mxu0 0.0
    %4440 = vmatprep.subr.mxu0 0.0
    %4441 = vmatpush1.msra.mxu0 0.0
    %4442 = vmatprep.subr.mxu0 0.0
    %4443 = vmatpush1.msra.mxu0 0.0
    %4444 = vmatprep.subr.mxu0 0.0
    %4445 = vmatpush1.msra.mxu0 0.0
    %4446 = vmatprep.subr.mxu0 0.0
    %4447 = vmatpush1.msra.mxu0 0.0
    %4448 = vmatprep.subr.mxu0 0.0
    %4449 = vmatpush1.msra.mxu0 0.0
    %4450 = vmatprep.subr.mxu0 0.0
    %4451 = vmatpush1.msra.mxu0 0.0
    %4452 = vmatprep.subr.mxu0 0.0
    %4453 = vmatpush1.msra.mxu0 0.0
    %4454 = vmatprep.subr.mxu0 0.0
    %4455 = vmatpush1.msra.mxu0 0.0
    %4456 = vmatprep.subr.mxu0 0.0
    %4457 = vmatpush1.msra.mxu0 0.0
    %4458 = vmatprep.subr.mxu0 0.0
    %4459 = vmatpush1.msra.mxu0 0.0
    %4460 = vmatprep.subr.mxu0 0.0
    %4461 = vmatpush1.msra.mxu0 0.0
    %4462 = vmatprep.subr.mxu0 0.0
    %4463 = vmatpush1.msra.mxu0 0.0
    %4464 = vmatprep.subr.mxu0 0.0
    %4465 = vmatpush1.msra.mxu0 0.0
    %4466 = vmatprep.subr.mxu0 0.0
    %4467 = vmatpush1.msra.mxu0 0.0
    %4468 = vmatprep.subr.mxu0 0.0
    %4469 = vmatpush1.msra.mxu0 0.0
    %4470 = vmatprep.mubr.f32.mxu0 0.0
    %4471 = vmatmul.mubr.f32.gmra.mrb[0].mxu0 %v4404
    %v4472 = vpop.f32.mrb[0].mxu0
    %v4473 = vadd.f32 0.0, %v4472
    %v4474 = vpop.f32.mrb[0].mxu0
    %4475 = vdwg.mxu0
    %4476 = vrot.lane.b32.xlu0 %v3625, 120
    %v4477 = vpop.permute.xlu0 %4476
    %v4480 = vsel %vm337, %v4318, 0
    %4482 = vmatprep.subr.mxu0 0.0
    %4483 = vmatpush1.msra.mxu0 %v4477
    %4484 = vmatprep.subr.mxu0 0.0
    %4485 = vmatpush1.msra.mxu0 0.0
    %4486 = vmatprep.subr.mxu0 0.0
    %4487 = vmatpush1.msra.mxu0 0.0
    %4488 = vmatprep.subr.mxu0 0.0
    %4489 = vmatpush1.msra.mxu0 0.0
    %4490 = vmatprep.subr.mxu0 0.0
    %4491 = vmatpush1.msra.mxu0 0.0
    %4492 = vmatprep.subr.mxu0 0.0
    %4493 = vmatpush1.msra.mxu0 0.0
    %4494 = vmatprep.subr.mxu0 0.0
    %4495 = vmatpush1.msra.mxu0 0.0
    %4496 = vmatprep.subr.mxu0 0.0
    %4497 = vmatpush1.msra.mxu0 0.0
    %4498 = vmatprep.subr.mxu0 0.0
    %4499 = vmatpush1.msra.mxu0 0.0
    %4500 = vmatprep.subr.mxu0 0.0
    %4501 = vmatpush1.msra.mxu0 0.0
    %4502 = vmatprep.subr.mxu0 0.0
    %4503 = vmatpush1.msra.mxu0 0.0
    %4504 = vmatprep.subr.mxu0 0.0
    %4505 = vmatpush1.msra.mxu0 0.0
    %4506 = vmatprep.subr.mxu0 0.0
    %4507 = vmatpush1.msra.mxu0 0.0
    %4508 = vmatprep.subr.mxu0 0.0
    %4509 = vmatpush1.msra.mxu0 0.0
    %4510 = vmatprep.subr.mxu0 0.0
    %4511 = vmatpush1.msra.mxu0 0.0
    %4512 = vmatprep.subr.mxu0 0.0
    %4513 = vmatpush1.msra.mxu0 0.0
    %4514 = vmatprep.subr.mxu0 0.0
    %4515 = vmatpush1.msra.mxu0 0.0
    %4516 = vmatprep.subr.mxu0 0.0
    %4517 = vmatpush1.msra.mxu0 0.0
    %4518 = vmatprep.subr.mxu0 0.0
    %4519 = vmatpush1.msra.mxu0 0.0
    %4520 = vmatprep.subr.mxu0 0.0
    %4521 = vmatpush1.msra.mxu0 0.0
    %4522 = vmatprep.subr.mxu0 0.0
    %4523 = vmatpush1.msra.mxu0 0.0
    %4524 = vmatprep.subr.mxu0 0.0
    %4525 = vmatpush1.msra.mxu0 0.0
    %4526 = vmatprep.subr.mxu0 0.0
    %4527 = vmatpush1.msra.mxu0 0.0
    %4528 = vmatprep.subr.mxu0 0.0
    %4529 = vmatpush1.msra.mxu0 0.0
    %4530 = vmatprep.subr.mxu0 0.0
    %4531 = vmatpush1.msra.mxu0 0.0
    %4532 = vmatprep.subr.mxu0 0.0
    %4533 = vmatpush1.msra.mxu0 0.0
    %4534 = vmatprep.subr.mxu0 0.0
    %4535 = vmatpush1.msra.mxu0 0.0
    %4536 = vmatprep.subr.mxu0 0.0
    %4537 = vmatpush1.msra.mxu0 0.0
    %4538 = vmatprep.subr.mxu0 0.0
    %4539 = vmatpush1.msra.mxu0 0.0
    %4540 = vmatprep.subr.mxu0 0.0
    %4541 = vmatpush1.msra.mxu0 0.0
    %4542 = vmatprep.subr.mxu0 0.0
    %4543 = vmatpush1.msra.mxu0 0.0
    %4544 = vmatprep.subr.mxu0 0.0
    %4545 = vmatpush1.msra.mxu0 0.0
    %4546 = vmatprep.mubr.f32.mxu0 0.0
    %4547 = vmatmul.mubr.f32.gmra.mrb[0].mxu0 %v4480
    %v4548 = vpop.f32.mrb[0].mxu0
    %v4549 = vadd.f32 0.0, %v4548
    %v4550 = vpop.f32.mrb[0].mxu0
    %4551 = vdwg.mxu0
    %4552 = vrot.lane.b32.xlu0 %v3627, 120
    %v4553 = vpop.permute.xlu0 %4552
    %v4556 = vsel %vm337, %v4319, 0
    %4558 = vmatprep.subr.mxu0 0.0
    %4559 = vmatpush1.msra.mxu0 %v4553
    %4560 = vmatprep.subr.mxu0 0.0
    %4561 = vmatpush1.msra.mxu0 0.0
    %4562 = vmatprep.subr.mxu0 0.0
    %4563 = vmatpush1.msra.mxu0 0.0
    %4564 = vmatprep.subr.mxu0 0.0
    %4565 = vmatpush1.msra.mxu0 0.0
    %4566 = vmatprep.subr.mxu0 0.0
    %4567 = vmatpush1.msra.mxu0 0.0
    %4568 = vmatprep.subr.mxu0 0.0
    %4569 = vmatpush1.msra.mxu0 0.0
    %4570 = vmatprep.subr.mxu0 0.0
    %4571 = vmatpush1.msra.mxu0 0.0
    %4572 = vmatprep.subr.mxu0 0.0
    %4573 = vmatpush1.msra.mxu0 0.0
    %4574 = vmatprep.subr.mxu0 0.0
    %4575 = vmatpush1.msra.mxu0 0.0
    %4576 = vmatprep.subr.mxu0 0.0
    %4577 = vmatpush1.msra.mxu0 0.0
    %4578 = vmatprep.subr.mxu0 0.0
    %4579 = vmatpush1.msra.mxu0 0.0
    %4580 = vmatprep.subr.mxu0 0.0
    %4581 = vmatpush1.msra.mxu0 0.0
    %4582 = vmatprep.subr.mxu0 0.0
    %4583 = vmatpush1.msra.mxu0 0.0
    %4584 = vmatprep.subr.mxu0 0.0
    %4585 = vmatpush1.msra.mxu0 0.0
    %4586 = vmatprep.subr.mxu0 0.0
    %4587 = vmatpush1.msra.mxu0 0.0
    %4588 = vmatprep.subr.mxu0 0.0
    %4589 = vmatpush1.msra.mxu0 0.0
    %4590 = vmatprep.subr.mxu0 0.0
    %4591 = vmatpush1.msra.mxu0 0.0
    %4592 = vmatprep.subr.mxu0 0.0
    %4593 = vmatpush1.msra.mxu0 0.0
    %4594 = vmatprep.subr.mxu0 0.0
    %4595 = vmatpush1.msra.mxu0 0.0
    %4596 = vmatprep.subr.mxu0 0.0
    %4597 = vmatpush1.msra.mxu0 0.0
    %4598 = vmatprep.subr.mxu0 0.0
    %4599 = vmatpush1.msra.mxu0 0.0
    %4600 = vmatprep.subr.mxu0 0.0
    %4601 = vmatpush1.msra.mxu0 0.0
    %4602 = vmatprep.subr.mxu0 0.0
    %4603 = vmatpush1.msra.mxu0 0.0
    %4604 = vmatprep.subr.mxu0 0.0
    %4605 = vmatpush1.msra.mxu0 0.0
    %4606 = vmatprep.subr.mxu0 0.0
    %4607 = vmatpush1.msra.mxu0 0.0
    %4608 = vmatprep.subr.mxu0 0.0
    %4609 = vmatpush1.msra.mxu0 0.0
    %4610 = vmatprep.subr.mxu0 0.0
    %4611 = vmatpush1.msra.mxu0 0.0
    %4612 = vmatprep.subr.mxu0 0.0
    %4613 = vmatpush1.msra.mxu0 0.0
    %4614 = vmatprep.subr.mxu0 0.0
    %4615 = vmatpush1.msra.mxu0 0.0
    %4616 = vmatprep.subr.mxu0 0.0
    %4617 = vmatpush1.msra.mxu0 0.0
    %4618 = vmatprep.subr.mxu0 0.0
    %4619 = vmatpush1.msra.mxu0 0.0
    %4620 = vmatprep.subr.mxu0 0.0
    %4621 = vmatpush1.msra.mxu0 0.0
    %4622 = vmatprep.mubr.f32.mxu0 0.0
    %4623 = vmatmul.mubr.f32.gmra.mrb[0].mxu0 %v4556
    %v4624 = vpop.f32.mrb[0].mxu0
    %v4625 = vadd.f32 0.0, %v4624
    %v4626 = vpop.f32.mrb[0].mxu0
    %4627 = vdwg.mxu0
    %4628 = vrot.lane.b32.xlu0 %v3629, 120
    %v4629 = vpop.permute.xlu0 %4628
    %v4632 = vsel %vm337, %v4320, 0
    %4634 = vmatprep.subr.mxu0 0.0
    %4635 = vmatpush1.msra.mxu0 %v4629
    %4636 = vmatprep.subr.mxu0 0.0
    %4637 = vmatpush1.msra.mxu0 0.0
    %4638 = vmatprep.subr.mxu0 0.0
    %4639 = vmatpush1.msra.mxu0 0.0
    %4640 = vmatprep.subr.mxu0 0.0
    %4641 = vmatpush1.msra.mxu0 0.0
    %4642 = vmatprep.subr.mxu0 0.0
    %4643 = vmatpush1.msra.mxu0 0.0
    %4644 = vmatprep.subr.mxu0 0.0
    %4645 = vmatpush1.msra.mxu0 0.0
    %4646 = vmatprep.subr.mxu0 0.0
    %4647 = vmatpush1.msra.mxu0 0.0
    %4648 = vmatprep.subr.mxu0 0.0
    %4649 = vmatpush1.msra.mxu0 0.0
    %4650 = vmatprep.subr.mxu0 0.0
    %4651 = vmatpush1.msra.mxu0 0.0
    %4652 = vmatprep.subr.mxu0 0.0
    %4653 = vmatpush1.msra.mxu0 0.0
    %4654 = vmatprep.subr.mxu0 0.0
    %4655 = vmatpush1.msra.mxu0 0.0
    %4656 = vmatprep.subr.mxu0 0.0
    %4657 = vmatpush1.msra.mxu0 0.0
    %4658 = vmatprep.subr.mxu0 0.0
    %4659 = vmatpush1.msra.mxu0 0.0
    %4660 = vmatprep.subr.mxu0 0.0
    %4661 = vmatpush1.msra.mxu0 0.0
    %4662 = vmatprep.subr.mxu0 0.0
    %4663 = vmatpush1.msra.mxu0 0.0
    %4664 = vmatprep.subr.mxu0 0.0
    %4665 = vmatpush1.msra.mxu0 0.0
    %4666 = vmatprep.subr.mxu0 0.0
    %4667 = vmatpush1.msra.mxu0 0.0
    %4668 = vmatprep.subr.mxu0 0.0
    %4669 = vmatpush1.msra.mxu0 0.0
    %4670 = vmatprep.subr.mxu0 0.0
    %4671 = vmatpush1.msra.mxu0 0.0
    %4672 = vmatprep.subr.mxu0 0.0
    %4673 = vmatpush1.msra.mxu0 0.0
    %4674 = vmatprep.subr.mxu0 0.0
    %4675 = vmatpush1.msra.mxu0 0.0
    %4676 = vmatprep.subr.mxu0 0.0
    %4677 = vmatpush1.msra.mxu0 0.0
    %4678 = vmatprep.subr.mxu0 0.0
    %4679 = vmatpush1.msra.mxu0 0.0
    %4680 = vmatprep.subr.mxu0 0.0
    %4681 = vmatpush1.msra.mxu0 0.0
    %4682 = vmatprep.subr.mxu0 0.0
    %4683 = vmatpush1.msra.mxu0 0.0
    %4684 = vmatprep.subr.mxu0 0.0
    %4685 = vmatpush1.msra.mxu0 0.0
    %4686 = vmatprep.subr.mxu0 0.0
    %4687 = vmatpush1.msra.mxu0 0.0
    %4688 = vmatprep.subr.mxu0 0.0
    %4689 = vmatpush1.msra.mxu0 0.0
    %4690 = vmatprep.subr.mxu0 0.0
    %4691 = vmatpush1.msra.mxu0 0.0
    %4692 = vmatprep.subr.mxu0 0.0
    %4693 = vmatpush1.msra.mxu0 0.0
    %4694 = vmatprep.subr.mxu0 0.0
    %4695 = vmatpush1.msra.mxu0 0.0
    %4696 = vmatprep.subr.mxu0 0.0
    %4697 = vmatpush1.msra.mxu0 0.0
    %4698 = vmatprep.mubr.f32.mxu0 0.0
    %4699 = vmatmul.mubr.f32.gmra.mrb[0].mxu0 %v4632
    %v4700 = vpop.f32.mrb[0].mxu0
    %v4701 = vadd.f32 0.0, %v4700
    %v4702 = vpop.f32.mrb[0].mxu0
    %4703 = vdwg.mxu0
    %4704 = vrot.lane.b32.xlu0 %v3631, 120
    %v4705 = vpop.permute.xlu0 %4704
    %v4708 = vsel %vm337, %v4321, 0
    %4710 = vmatprep.subr.mxu0 0.0
    %4711 = vmatpush1.msra.mxu0 %v4705
    %4712 = vmatprep.subr.mxu0 0.0
    %4713 = vmatpush1.msra.mxu0 0.0
    %4714 = vmatprep.subr.mxu0 0.0
    %4715 = vmatpush1.msra.mxu0 0.0
    %4716 = vmatprep.subr.mxu0 0.0
    %4717 = vmatpush1.msra.mxu0 0.0
    %4718 = vmatprep.subr.mxu0 0.0
    %4719 = vmatpush1.msra.mxu0 0.0
    %4720 = vmatprep.subr.mxu0 0.0
    %4721 = vmatpush1.msra.mxu0 0.0
    %4722 = vmatprep.subr.mxu0 0.0
    %4723 = vmatpush1.msra.mxu0 0.0
    %4724 = vmatprep.subr.mxu0 0.0
    %4725 = vmatpush1.msra.mxu0 0.0
    %4726 = vmatprep.subr.mxu0 0.0
    %4727 = vmatpush1.msra.mxu0 0.0
    %4728 = vmatprep.subr.mxu0 0.0
    %4729 = vmatpush1.msra.mxu0 0.0
    %4730 = vmatprep.subr.mxu0 0.0
    %4731 = vmatpush1.msra.mxu0 0.0
    %4732 = vmatprep.subr.mxu0 0.0
    %4733 = vmatpush1.msra.mxu0 0.0
    %4734 = vmatprep.subr.mxu0 0.0
    %4735 = vmatpush1.msra.mxu0 0.0
    %4736 = vmatprep.subr.mxu0 0.0
    %4737 = vmatpush1.msra.mxu0 0.0
    %4738 = vmatprep.subr.mxu0 0.0
    %4739 = vmatpush1.msra.mxu0 0.0
    %4740 = vmatprep.subr.mxu0 0.0
    %4741 = vmatpush1.msra.mxu0 0.0
    %4742 = vmatprep.subr.mxu0 0.0
    %4743 = vmatpush1.msra.mxu0 0.0
    %4744 = vmatprep.subr.mxu0 0.0
    %4745 = vmatpush1.msra.mxu0 0.0
    %4746 = vmatprep.subr.mxu0 0.0
    %4747 = vmatpush1.msra.mxu0 0.0
    %4748 = vmatprep.subr.mxu0 0.0
    %4749 = vmatpush1.msra.mxu0 0.0
    %4750 = vmatprep.subr.mxu0 0.0
    %4751 = vmatpush1.msra.mxu0 0.0
    %4752 = vmatprep.subr.mxu0 0.0
    %4753 = vmatpush1.msra.mxu0 0.0
    %4754 = vmatprep.subr.mxu0 0.0
    %4755 = vmatpush1.msra.mxu0 0.0
    %4756 = vmatprep.subr.mxu0 0.0
    %4757 = vmatpush1.msra.mxu0 0.0
    %4758 = vmatprep.subr.mxu0 0.0
    %4759 = vmatpush1.msra.mxu0 0.0
    %4760 = vmatprep.subr.mxu0 0.0
    %4761 = vmatpush1.msra.mxu0 0.0
    %4762 = vmatprep.subr.mxu0 0.0
    %4763 = vmatpush1.msra.mxu0 0.0
    %4764 = vmatprep.subr.mxu0 0.0
    %4765 = vmatpush1.msra.mxu0 0.0
    %4766 = vmatprep.subr.mxu0 0.0
    %4767 = vmatpush1.msra.mxu0 0.0
    %4768 = vmatprep.subr.mxu0 0.0
    %4769 = vmatpush1.msra.mxu0 0.0
    %4770 = vmatprep.subr.mxu0 0.0
    %4771 = vmatpush1.msra.mxu0 0.0
    %4772 = vmatprep.subr.mxu0 0.0
    %4773 = vmatpush1.msra.mxu0 0.0
    %4774 = vmatprep.mubr.f32.mxu0 0.0
    %4775 = vmatmul.mubr.f32.gmra.mrb[0].mxu0 %v4708
    %v4776 = vpop.f32.mrb[0].mxu0
    %v4777 = vadd.f32 0.0, %v4776
    %v4778 = vpop.f32.mrb[0].mxu0
    %4779 = vdwg.mxu0
    %4780 = vrot.lane.b32.xlu0 %v3633, 120
    %v4781 = vpop.permute.xlu0 %4780
    %v4784 = vsel %vm337, %v4322, 0
    %4786 = vmatprep.subr.mxu0 0.0
    %4787 = vmatpush1.msra.mxu0 %v4781
    %4788 = vmatprep.subr.mxu0 0.0
    %4789 = vmatpush1.msra.mxu0 0.0
    %4790 = vmatprep.subr.mxu0 0.0
    %4791 = vmatpush1.msra.mxu0 0.0
    %4792 = vmatprep.subr.mxu0 0.0
    %4793 = vmatpush1.msra.mxu0 0.0
    %4794 = vmatprep.subr.mxu0 0.0
    %4795 = vmatpush1.msra.mxu0 0.0
    %4796 = vmatprep.subr.mxu0 0.0
    %4797 = vmatpush1.msra.mxu0 0.0
    %4798 = vmatprep.subr.mxu0 0.0
    %4799 = vmatpush1.msra.mxu0 0.0
    %4800 = vmatprep.subr.mxu0 0.0
    %4801 = vmatpush1.msra.mxu0 0.0
    %4802 = vmatprep.subr.mxu0 0.0
    %4803 = vmatpush1.msra.mxu0 0.0
    %4804 = vmatprep.subr.mxu0 0.0
    %4805 = vmatpush1.msra.mxu0 0.0
    %4806 = vmatprep.subr.mxu0 0.0
    %4807 = vmatpush1.msra.mxu0 0.0
    %4808 = vmatprep.subr.mxu0 0.0
    %4809 = vmatpush1.msra.mxu0 0.0
    %4810 = vmatprep.subr.mxu0 0.0
    %4811 = vmatpush1.msra.mxu0 0.0
    %4812 = vmatprep.subr.mxu0 0.0
    %4813 = vmatpush1.msra.mxu0 0.0
    %4814 = vmatprep.subr.mxu0 0.0
    %4815 = vmatpush1.msra.mxu0 0.0
    %4816 = vmatprep.subr.mxu0 0.0
    %4817 = vmatpush1.msra.mxu0 0.0
    %4818 = vmatprep.subr.mxu0 0.0
    %4819 = vmatpush1.msra.mxu0 0.0
    %4820 = vmatprep.subr.mxu0 0.0
    %4821 = vmatpush1.msra.mxu0 0.0
    %4822 = vmatprep.subr.mxu0 0.0
    %4823 = vmatpush1.msra.mxu0 0.0
    %4824 = vmatprep.subr.mxu0 0.0
    %4825 = vmatpush1.msra.mxu0 0.0
    %4826 = vmatprep.subr.mxu0 0.0
    %4827 = vmatpush1.msra.mxu0 0.0
    %4828 = vmatprep.subr.mxu0 0.0
    %4829 = vmatpush1.msra.mxu0 0.0
    %4830 = vmatprep.subr.mxu0 0.0
    %4831 = vmatpush1.msra.mxu0 0.0
    %4832 = vmatprep.subr.mxu0 0.0
    %4833 = vmatpush1.msra.mxu0 0.0
    %4834 = vmatprep.subr.mxu0 0.0
    %4835 = vmatpush1.msra.mxu0 0.0
    %4836 = vmatprep.subr.mxu0 0.0
    %4837 = vmatpush1.msra.mxu0 0.0
    %4838 = vmatprep.subr.mxu0 0.0
    %4839 = vmatpush1.msra.mxu0 0.0
    %4840 = vmatprep.subr.mxu0 0.0
    %4841 = vmatpush1.msra.mxu0 0.0
    %4842 = vmatprep.subr.mxu0 0.0
    %4843 = vmatpush1.msra.mxu0 0.0
    %4844 = vmatprep.subr.mxu0 0.0
    %4845 = vmatpush1.msra.mxu0 0.0
    %4846 = vmatprep.subr.mxu0 0.0
    %4847 = vmatpush1.msra.mxu0 0.0
    %4848 = vmatprep.subr.mxu0 0.0
    %4849 = vmatpush1.msra.mxu0 0.0
    %4850 = vmatprep.mubr.f32.mxu0 0.0
    %4851 = vmatmul.mubr.f32.gmra.mrb[0].mxu0 %v4784
    %v4852 = vpop.f32.mrb[0].mxu0
    %v4853 = vadd.f32 0.0, %v4852
    %v4854 = vpop.f32.mrb[0].mxu0
    %4855 = vdwg.mxu0
    %4856 = vrot.lane.b32.xlu0 %v3635, 120
    %v4857 = vpop.permute.xlu0 %4856
    %v4860 = vsel %vm337, %v4323, 0
    %4862 = vmatprep.subr.mxu0 0.0
    %4863 = vmatpush1.msra.mxu0 %v4857
    %4864 = vmatprep.subr.mxu0 0.0
    %4865 = vmatpush1.msra.mxu0 0.0
    %4866 = vmatprep.subr.mxu0 0.0
    %4867 = vmatpush1.msra.mxu0 0.0
    %4868 = vmatprep.subr.mxu0 0.0
    %4869 = vmatpush1.msra.mxu0 0.0
    %4870 = vmatprep.subr.mxu0 0.0
    %4871 = vmatpush1.msra.mxu0 0.0
    %4872 = vmatprep.subr.mxu0 0.0
    %4873 = vmatpush1.msra.mxu0 0.0
    %4874 = vmatprep.subr.mxu0 0.0
    %4875 = vmatpush1.msra.mxu0 0.0
    %4876 = vmatprep.subr.mxu0 0.0
    %4877 = vmatpush1.msra.mxu0 0.0
    %4878 = vmatprep.subr.mxu0 0.0
    %4879 = vmatpush1.msra.mxu0 0.0
    %4880 = vmatprep.subr.mxu0 0.0
    %4881 = vmatpush1.msra.mxu0 0.0
    %4882 = vmatprep.subr.mxu0 0.0
    %4883 = vmatpush1.msra.mxu0 0.0
    %4884 = vmatprep.subr.mxu0 0.0
    %4885 = vmatpush1.msra.mxu0 0.0
    %4886 = vmatprep.subr.mxu0 0.0
    %4887 = vmatpush1.msra.mxu0 0.0
    %4888 = vmatprep.subr.mxu0 0.0
    %4889 = vmatpush1.msra.mxu0 0.0
    %4890 = vmatprep.subr.mxu0 0.0
    %4891 = vmatpush1.msra.mxu0 0.0
    %4892 = vmatprep.subr.mxu0 0.0
    %4893 = vmatpush1.msra.mxu0 0.0
    %4894 = vmatprep.subr.mxu0 0.0
    %4895 = vmatpush1.msra.mxu0 0.0
    %4896 = vmatprep.subr.mxu0 0.0
    %4897 = vmatpush1.msra.mxu0 0.0
    %4898 = vmatprep.subr.mxu0 0.0
    %4899 = vmatpush1.msra.mxu0 0.0
    %4900 = vmatprep.subr.mxu0 0.0
    %4901 = vmatpush1.msra.mxu0 0.0
    %4902 = vmatprep.subr.mxu0 0.0
    %4903 = vmatpush1.msra.mxu0 0.0
    %4904 = vmatprep.subr.mxu0 0.0
    %4905 = vmatpush1.msra.mxu0 0.0
    %4906 = vmatprep.subr.mxu0 0.0
    %4907 = vmatpush1.msra.mxu0 0.0
    %4908 = vmatprep.subr.mxu0 0.0
    %4909 = vmatpush1.msra.mxu0 0.0
    %4910 = vmatprep.subr.mxu0 0.0
    %4911 = vmatpush1.msra.mxu0 0.0
    %4912 = vmatprep.subr.mxu0 0.0
    %4913 = vmatpush1.msra.mxu0 0.0
    %4914 = vmatprep.subr.mxu0 0.0
    %4915 = vmatpush1.msra.mxu0 0.0
    %4916 = vmatprep.subr.mxu0 0.0
    %4917 = vmatpush1.msra.mxu0 0.0
    %4918 = vmatprep.subr.mxu0 0.0
    %4919 = vmatpush1.msra.mxu0 0.0
    %4920 = vmatprep.subr.mxu0 0.0
    %4921 = vmatpush1.msra.mxu0 0.0
    %4922 = vmatprep.subr.mxu0 0.0
    %4923 = vmatpush1.msra.mxu0 0.0
    %4924 = vmatprep.subr.mxu0 0.0
    %4925 = vmatpush1.msra.mxu0 0.0
    %4926 = vmatprep.mubr.f32.mxu0 0.0
    %4927 = vmatmul.mubr.f32.gmra.mrb[0].mxu0 %v4860
    %v4928 = vpop.f32.mrb[0].mxu0
    %v4929 = vadd.f32 0.0, %v4928
    %v4930 = vpop.f32.mrb[0].mxu0
    %4931 = vdwg.mxu0
    %4934 = vrot.lane.b32.xlu0 %v4549, 8
    %v4935 = vpop.permute.xlu0 %4934
    %4936 = vrot.lane.b32.xlu0 %v4625, 8
    %v4937 = vpop.permute.xlu0 %4936
    %4942 = vrot.lane.b32.xlu0 %v4701, 16
    %v4943 = vpop.permute.xlu0 %4942
    %4944 = vrot.lane.b32.xlu0 %v4777, 16
    %v4945 = vpop.permute.xlu0 %4944
    %4950 = vrot.lane.b32.xlu0 %v4853, 24
    %v4951 = vpop.permute.xlu0 %4950
    %4952 = vrot.lane.b32.xlu0 %v4929, 24
    %v4953 = vpop.permute.xlu0 %4952
    %v4956 = vsel %vm337, %v4397, %v4935
    %v4957 = vsel %vm337, %v4473, %v4937
    %v4958 = vsel %vm1674, %v4956, %v4943
    %v4959 = vsel %vm1674, %v4957, %v4945
    %v4960 = vsel %vm1677, %v4958, %v4951
    %v4961 = vsel %vm1677, %v4959, %v4953
    %v4962 = vpack.c.bf16 %v4961, %v4960
    %v4963 = vld [vmem:[#allocation2 + $0x100] sm:$0xf]
    %v4964 = vld [vmem:[#allocation2 + $0x104] sm:$0xf]
    %v4965 = vld [vmem:[#allocation2 + $0x108] sm:$0xf]
    %v4966 = vld [vmem:[#allocation2 + $0x10c] sm:$0xf]
    %v4971 = vunpack.c.l.b16 %v4963
    %v4972 = vunpack.c.l.b16 %v4964
    %v4973 = vunpack.c.l.b16 %v4965
    %v4974 = vunpack.c.l.b16 %v4966
    %v4975 = vpack.c.b16 %v4972, %v4971
    %v4976 = vpack.c.b16 %v4974, %v4973
    %v4980 = vsel %vm238, %v4962, 0
    %4982 = vmatprep.subr.bf16.mxu0 0
    %4983 = vmatpush1.bf16.msra.mxu0 %v4975
    %4984 = vmatprep.subr.bf16.mxu0 0
    %4985 = vmatpush1.bf16.msra.mxu0 %v4976
    %4986 = vmatprep.subr.bf16.mxu0 0
    %4987 = vmatpush1.bf16.msra.mxu0 0
    %4988 = vmatprep.subr.bf16.mxu0 0
    %4989 = vmatpush1.bf16.msra.mxu0 0
    %4990 = vmatprep.subr.bf16.mxu0 0
    %4991 = vmatpush1.bf16.msra.mxu0 0
    %4992 = vmatprep.subr.bf16.mxu0 0
    %4993 = vmatpush1.bf16.msra.mxu0 0
    %4994 = vmatprep.subr.bf16.mxu0 0
    %4995 = vmatpush1.bf16.msra.mxu0 0
    %4996 = vmatprep.subr.bf16.mxu0 0
    %4997 = vmatpush1.bf16.msra.mxu0 0
    %4998 = vmatprep.subr.bf16.mxu0 0
    %4999 = vmatpush1.bf16.msra.mxu0 0
    %5000 = vmatprep.subr.bf16.mxu0 0
    %5001 = vmatpush1.bf16.msra.mxu0 0
    %5002 = vmatprep.subr.bf16.mxu0 0
    %5003 = vmatpush1.bf16.msra.mxu0 0
    %5004 = vmatprep.subr.bf16.mxu0 0
    %5005 = vmatpush1.bf16.msra.mxu0 0
    %5006 = vmatprep.subr.bf16.mxu0 0
    %5007 = vmatpush1.bf16.msra.mxu0 0
    %5008 = vmatprep.subr.bf16.mxu0 0
    %5009 = vmatpush1.bf16.msra.mxu0 0
    %5010 = vmatprep.subr.bf16.mxu0 0
    %5011 = vmatpush1.bf16.msra.mxu0 0
    %5012 = vmatprep.subr.bf16.mxu0 0
    %5013 = vmatpush1.bf16.msra.mxu0 0
    %5014 = vmatprep.mubr.bf16.mxu0 0
    %5015 = vmatmul.mubr.bf16.gmra.mrb[0].mxu0 %v4980
    %v5016 = vpop.f32.mrb[0].mxu0
    %v5017 = vadd.f32 0.0, %v5016
    %v5018 = vpop.f32.mrb[0].mxu0
    %v5019 = vpop.f32.mrb[0].mxu0
    %v5020 = vadd.f32 0.0, %v5019
    %v5021 = vpop.f32.mrb[0].mxu0
    %5022 = vdwg.mxu0
    %v5023 = vadd.f32 %v3463, %v5017
    %v5024 = vadd.f32 %v3464, %v5020
    %v5025 = vmul.f32 %v5023, %v5023
    %v5026 = vmul.f32 %v5024, %v5024
    %v5027 = vsel %vm238, %v5025, 0.0
    %5028 = vadd.xlane.f32.xlu0 %v5027
    %v5029 = vpop.xlane.xlu0 %5028
    %v5030 = vsel %vm238, %v5026, 0.0
    %5031 = vadd.xlane.f32.xlu0 %v5030
    %v5032 = vpop.xlane.xlu0 %5031
    %v5033 = vmul.f32 %v5029, %v245
    %v5034 = vmul.f32 %v5032, %v245
    %v5035 = vadd.f32 %v5033, 1e-06
    %v5036 = vadd.f32 %v5034, 1e-06
    %v5037 = vrsqrt.pop %v5035
    %v5038 = vrsqrt.pop %v5036
    %v5039 = vmul.f32 %v5023, %v5037
    %v5040 = vmul.f32 %v5024, %v5038
    %v5041 = vlaneseq
    %v5042 = vshrl.u32 %v5041, 7
    %v5043 = vsub.s32 5, %v5042
    %v5044 = vrot.slane %v42, %v5043
    %v5045 = vmul.f32 %v5039, %v5044
    %v5046 = vmul.f32 %v5040, %v5044
    %v5047 = vpack.c.bf16 %v5046, %v5045
    %v5048 = vld [vmem:[#allocation2 + $0x110] sm:$0xf]
    %v5049 = vld [vmem:[#allocation2 + $0x114] sm:$0xf]
    %v5050 = vld [vmem:[#allocation2 + $0x118] sm:$0xf]
    %v5051 = vld [vmem:[#allocation2 + $0x11c] sm:$0xf]
    %v5056 = vunpack.c.l.b16 %v5048
    %v5057 = vunpack.c.l.b16 %v5049
    %v5058 = vunpack.c.l.b16 %v5050
    %v5059 = vunpack.c.l.b16 %v5051
    %v5060 = vpack.c.b16 %v5057, %v5056
    %v5061 = vpack.c.b16 %v5059, %v5058
    %v5065 = vsel %vm238, %v5047, 0
    %5067 = vmatprep.subr.bf16.mxu0 0
    %5068 = vmatpush1.bf16.msra.mxu0 %v5060
    %5069 = vmatprep.subr.bf16.mxu0 0
    %5070 = vmatpush1.bf16.msra.mxu0 %v5061
    %5071 = vmatprep.subr.bf16.mxu0 0
    %5072 = vmatpush1.bf16.msra.mxu0 0
    %5073 = vmatprep.subr.bf16.mxu0 0
    %5074 = vmatpush1.bf16.msra.mxu0 0
    %5075 = vmatprep.subr.bf16.mxu0 0
    %5076 = vmatpush1.bf16.msra.mxu0 0
    %5077 = vmatprep.subr.bf16.mxu0 0
    %5078 = vmatpush1.bf16.msra.mxu0 0
    %5079 = vmatprep.subr.bf16.mxu0 0
    %5080 = vmatpush1.bf16.msra.mxu0 0
    %5081 = vmatprep.subr.bf16.mxu0 0
    %5082 = vmatpush1.bf16.msra.mxu0 0
    %5083 = vmatprep.subr.bf16.mxu0 0
    %5084 = vmatpush1.bf16.msra.mxu0 0
    %5085 = vmatprep.subr.bf16.mxu0 0
    %5086 = vmatpush1.bf16.msra.mxu0 0
    %5087 = vmatprep.subr.bf16.mxu0 0
    %5088 = vmatpush1.bf16.msra.mxu0 0
    %5089 = vmatprep.subr.bf16.mxu0 0
    %5090 = vmatpush1.bf16.msra.mxu0 0
    %5091 = vmatprep.subr.bf16.mxu0 0
    %5092 = vmatpush1.bf16.msra.mxu0 0
    %5093 = vmatprep.subr.bf16.mxu0 0
    %5094 = vmatpush1.bf16.msra.mxu0 0
    %5095 = vmatprep.subr.bf16.mxu0 0
    %5096 = vmatpush1.bf16.msra.mxu0 0
    %5097 = vmatprep.subr.bf16.mxu0 0
    %5098 = vmatpush1.bf16.msra.mxu0 0
    %5099 = vmatprep.mubr.bf16.mxu0 0
    %5100 = vmatmul.mubr.bf16.gmra.mrb[0].mxu0 %v5065
    %v5101 = vpop.f32.mrb[0].mxu0
    %v5102 = vadd.f32 0.0, %v5101
    %v5103 = vpop.f32.mrb[0].mxu0
    %v5104 = vpop.f32.mrb[0].mxu0
    %v5105 = vadd.f32 0.0, %v5104
    %v5106 = vpop.f32.mrb[0].mxu0
    %5107 = vdwg.mxu0
    %v5108 = vmax.f32 %v5102, 0.0
    %v5109 = vmax.f32 %v5105, 0.0
    %v5110 = vpack.c.bf16 %v5109, %v5108
    %v5111 = vld [vmem:[#allocation2 + $0x120] sm:$0xf]
    %v5112 = vld [vmem:[#allocation2 + $0x124] sm:$0xf]
    %v5113 = vld [vmem:[#allocation2 + $0x128] sm:$0xf]
    %v5114 = vld [vmem:[#allocation2 + $0x12c] sm:$0xf]
    %v5115 = vld [vmem:[#allocation2 + $0x130] sm:$0xf]
    %v5116 = vld [vmem:[#allocation2 + $0x134] sm:$0xf]
    %v5117 = vld [vmem:[#allocation2 + $0x138] sm:$0xf]
    %v5118 = vld [vmem:[#allocation2 + $0x13c] sm:$0xf]
    %v5119 = vld [vmem:[#allocation2 + $0x140] sm:$0xf]
    %v5120 = vld [vmem:[#allocation2 + $0x144] sm:$0xf]
    %v5121 = vld [vmem:[#allocation2 + $0x148] sm:$0xf]
    %v5122 = vld [vmem:[#allocation2 + $0x14c] sm:$0xf]
    %v5123 = vld [vmem:[#allocation2 + $0x150] sm:$0xf]
    %v5124 = vld [vmem:[#allocation2 + $0x154] sm:$0xf]
    %v5125 = vld [vmem:[#allocation2 + $0x158] sm:$0xf]
    %v5126 = vld [vmem:[#allocation2 + $0x15c] sm:$0xf]
    %v5143 = vunpack.c.l.b16 %v5111
    %v5144 = vunpack.c.l.b16 %v5112
    %v5145 = vunpack.c.l.b16 %v5113
    %v5146 = vunpack.c.l.b16 %v5114
    %v5147 = vunpack.c.l.b16 %v5115
    %v5148 = vunpack.c.l.b16 %v5116
    %v5149 = vunpack.c.l.b16 %v5117
    %v5150 = vunpack.c.l.b16 %v5118
    %v5151 = vunpack.c.l.b16 %v5119
    %v5152 = vunpack.c.l.b16 %v5120
    %v5153 = vunpack.c.l.b16 %v5121
    %v5154 = vunpack.c.l.b16 %v5122
    %v5155 = vunpack.c.l.b16 %v5123
    %v5156 = vunpack.c.l.b16 %v5124
    %v5157 = vunpack.c.l.b16 %v5125
    %v5158 = vunpack.c.l.b16 %v5126
    %v5159 = vpack.c.b16 %v5144, %v5143
    %v5160 = vpack.c.b16 %v5146, %v5145
    %v5161 = vpack.c.b16 %v5148, %v5147
    %v5162 = vpack.c.b16 %v5150, %v5149
    %v5163 = vpack.c.b16 %v5152, %v5151
    %v5164 = vpack.c.b16 %v5154, %v5153
    %v5165 = vpack.c.b16 %v5156, %v5155
    %v5166 = vpack.c.b16 %v5158, %v5157
    %5175 = vmatprep.subr.bf16.mxu0 0
    %5176 = vmatpush1.bf16.msra.mxu0 %v5159
    %5177 = vmatprep.subr.bf16.mxu0 0
    %5178 = vmatpush1.bf16.msra.mxu0 %v5160
    %5179 = vmatprep.subr.bf16.mxu0 0
    %5180 = vmatpush1.bf16.msra.mxu0 %v5161
    %5181 = vmatprep.subr.bf16.mxu0 0
    %5182 = vmatpush1.bf16.msra.mxu0 %v5162
    %5183 = vmatprep.subr.bf16.mxu0 0
    %5184 = vmatpush1.bf16.msra.mxu0 %v5163
    %5185 = vmatprep.subr.bf16.mxu0 0
    %5186 = vmatpush1.bf16.msra.mxu0 %v5164
    %5187 = vmatprep.subr.bf16.mxu0 0
    %5188 = vmatpush1.bf16.msra.mxu0 %v5165
    %5189 = vmatprep.subr.bf16.mxu0 0
    %5190 = vmatpush1.bf16.msra.mxu0 %v5166
    %5191 = vmatprep.subr.bf16.mxu0 0
    %5192 = vmatpush1.bf16.msra.mxu0 0
    %5193 = vmatprep.subr.bf16.mxu0 0
    %5194 = vmatpush1.bf16.msra.mxu0 0
    %5195 = vmatprep.subr.bf16.mxu0 0
    %5196 = vmatpush1.bf16.msra.mxu0 0
    %5197 = vmatprep.subr.bf16.mxu0 0
    %5198 = vmatpush1.bf16.msra.mxu0 0
    %5199 = vmatprep.subr.bf16.mxu0 0
    %5200 = vmatpush1.bf16.msra.mxu0 0
    %5201 = vmatprep.subr.bf16.mxu0 0
    %5202 = vmatpush1.bf16.msra.mxu0 0
    %5203 = vmatprep.subr.bf16.mxu0 0
    %5204 = vmatpush1.bf16.msra.mxu0 0
    %5205 = vmatprep.subr.bf16.mxu0 0
    %5206 = vmatpush1.bf16.msra.mxu0 0
    %5207 = vmatprep.mubr.bf16.mxu0 0
    %5208 = vmatmul.mubr.bf16.gmra.mrb[0].mxu0 %v5110
    %v5209 = vpop.f32.mrb[0].mxu0
    %v5210 = vadd.f32 0.0, %v5209
    %v5211 = vpop.f32.mrb[0].mxu0
    %v5212 = vpop.f32.mrb[0].mxu0
    %v5213 = vadd.f32 0.0, %v5212
    %v5214 = vpop.f32.mrb[0].mxu0
    %5215 = vdwg.mxu0
    %v5216 = vadd.f32 %v5023, %v5210
    %v5217 = vadd.f32 %v5024, %v5213
    %v5218 = vmul.f32 %v5216, %v5216
    %v5219 = vmul.f32 %v5217, %v5217
    %v5220 = vsel %vm238, %v5218, 0.0
    %5221 = vadd.xlane.f32.xlu0 %v5220
    %v5222 = vpop.xlane.xlu0 %5221
    %v5223 = vsel %vm238, %v5219, 0.0
    %5224 = vadd.xlane.f32.xlu0 %v5223
    %v5225 = vpop.xlane.xlu0 %5224
    %v5226 = vmul.f32 %v5222, %v245
    %v5227 = vmul.f32 %v5225, %v245
    %v5228 = vadd.f32 %v5226, 1e-06
    %v5229 = vadd.f32 %v5227, 1e-06
    %v5230 = vrsqrt.pop %v5228
    %v5231 = vrsqrt.pop %v5229
    %v5232 = vmul.f32 %v5216, %v5230
    %v5233 = vmul.f32 %v5217, %v5231
    %v5234 = vlaneseq
    %v5235 = vshrl.u32 %v5234, 7
    %v5236 = vsub.s32 6, %v5235
    %v5237 = vrot.slane %v42, %v5236
    %v5238 = vmul.f32 %v5232, %v5237
    %v5239 = vmul.f32 %v5233, %v5237
    %v5240 = vpack.c.bf16 %v5239, %v5238
    %v5241 = vld [vmem:[#allocation2 + $0x40] sm:$0xf]
    %v5242 = vld [vmem:[#allocation2 + $0x44] sm:$0xf]
    %v5243 = vld [vmem:[#allocation2 + $0x48] sm:$0xf]
    %v5244 = vld [vmem:[#allocation2 + $0x4c] sm:$0xf]
    %v5249 = vunpack.c.l.b16 %v5241
    %v5250 = vunpack.c.l.b16 %v5242
    %v5251 = vunpack.c.l.b16 %v5243
    %v5252 = vunpack.c.l.b16 %v5244
    %v5253 = vpack.c.b16 %v5250, %v5249
    %v5254 = vpack.c.b16 %v5252, %v5251
    %v5258 = vsel %vm238, %v5240, 0
    %5260 = vmatprep.subr.bf16.mxu0 0
    %5261 = vmatpush1.bf16.msra.mxu0 %v5253
    %5262 = vmatprep.subr.bf16.mxu0 0
    %5263 = vmatpush1.bf16.msra.mxu0 %v5254
    %5264 = vmatprep.subr.bf16.mxu0 0
    %5265 = vmatpush1.bf16.msra.mxu0 0
    %5266 = vmatprep.subr.bf16.mxu0 0
    %5267 = vmatpush1.bf16.msra.mxu0 0
    %5268 = vmatprep.subr.bf16.mxu0 0
    %5269 = vmatpush1.bf16.msra.mxu0 0
    %5270 = vmatprep.subr.bf16.mxu0 0
    %5271 = vmatpush1.bf16.msra.mxu0 0
    %5272 = vmatprep.subr.bf16.mxu0 0
    %5273 = vmatpush1.bf16.msra.mxu0 0
    %5274 = vmatprep.subr.bf16.mxu0 0
    %5275 = vmatpush1.bf16.msra.mxu0 0
    %5276 = vmatprep.subr.bf16.mxu0 0
    %5277 = vmatpush1.bf16.msra.mxu0 0
    %5278 = vmatprep.subr.bf16.mxu0 0
    %5279 = vmatpush1.bf16.msra.mxu0 0
    %5280 = vmatprep.subr.bf16.mxu0 0
    %5281 = vmatpush1.bf16.msra.mxu0 0
    %5282 = vmatprep.subr.bf16.mxu0 0
    %5283 = vmatpush1.bf16.msra.mxu0 0
    %5284 = vmatprep.subr.bf16.mxu0 0
    %5285 = vmatpush1.bf16.msra.mxu0 0
    %5286 = vmatprep.subr.bf16.mxu0 0
    %5287 = vmatpush1.bf16.msra.mxu0 0
    %5288 = vmatprep.subr.bf16.mxu0 0
    %5289 = vmatpush1.bf16.msra.mxu0 0
    %5290 = vmatprep.subr.bf16.mxu0 0
    %5291 = vmatpush1.bf16.msra.mxu0 0
    %5292 = vmatprep.mubr.bf16.mxu0 0
    %5293 = vmatmul.mubr.bf16.gmra.mrb[0].mxu0 %v5258
    %v5294 = vpop.f32.mrb[0].mxu0
    %v5295 = vadd.f32 0.0, %v5294
    %v5296 = vpop.f32.mrb[0].mxu0
    %v5297 = vpop.f32.mrb[0].mxu0
    %v5298 = vadd.f32 0.0, %v5297
    %v5299 = vpop.f32.mrb[0].mxu0
    %5300 = vdwg.mxu0
    %5301 = vst [vmem:[#allocation5] sm:$0xff] %v5295
    %5302 = vst [vmem:[#allocation5 + $0x8] sm:$0xff] %v5298
    %v5303 = vld [vmem:[%s0 + $0x20] sm:$0xff]
    %v5304 = vld [vmem:[%s0 + $0x28] sm:$0xff]
    %5305 = vmax.xlane.f32.xlu0 %v5295
    %v5306 = vpop.xlane.xlu0 %5305
    %5307 = vmax.xlane.f32.xlu0 %v5298
    %v5308 = vpop.xlane.xlu0 %5307
    %v5309 = vsub.f32 %v5295, %v5306
    %v5310 = vsub.f32 %v5298, %v5308
    %v5311 = vmul.f32 %v5309, 1.442695
    %v5312 = vpow.pop %v5311
    %v5313 = vmul.f32 %v5310, 1.442695
    %v5314 = vpow.pop %v5313
    %5315 = vadd.xlane.f32.xlu0 %v5312
    %v5316 = vpop.xlane.xlu0 %5315
    %5317 = vadd.xlane.f32.xlu0 %v5314
    %v5318 = vpop.xlane.xlu0 %5317
    %v5319 = vlog2.pop %v5316
    %v5320 = vmul.f32 %v5319, 0.6931472
    %v5321 = vlog2.pop %v5318
    %v5322 = vmul.f32 %v5321, 0.6931472
    %v5323 = vadd.f32 %v5306, %v5320
    %v5324 = vadd.f32 %v5308, %v5322
    %5325 = vset.pattern.permute.xlu0 0
    %5326 = vperm.xlu0 %5325, %v5303
    %v5327 = vpop.permute.xlu0 %5326
    %5328 = vset.pattern.permute.xlu0 0
    %5329 = vperm.xlu0 %5328, %v5304
    %v5330 = vpop.permute.xlu0 %5329
    %vm5331 = vcmp.eq.s32.totalorder %v48, %v5327
    %vm5332 = vcmp.eq.s32.totalorder %v48, %v5330
    %v5333 = vsel %vm5331, 1, 0
    %v5334 = vsel %vm5332, 1, 0
    %v5335 = vcvt.s32.f32 %v5333
    %v5336 = vcvt.s32.f32 %v5334
    %v5337 = vmul.f32 %v5295, %v5335
    %v5338 = vmul.f32 %v5298, %v5336
    %5339 = vadd.xlane.f32.xlu0 %v5337
    %v5340 = vpop.xlane.xlu0 %5339
    %5341 = vadd.xlane.f32.xlu0 %v5338
    %v5342 = vpop.xlane.xlu0 %5341
    %vm5343 = vcmp.ne.s32.totalorder %v5303, 4294967196
    %vm5344 = vcmp.ne.s32.totalorder %v5304, 4294967196
    %v5345 = vsel %vm5343, 1, 0
    %v5346 = vsel %vm5344, 1, 0
    %v5347 = vcvt.s32.f32 %v5345
    %v5348 = vcvt.s32.f32 %v5346
    %v5349 = vsub.f32 %v5323, %v5340
    %v5350 = vsub.f32 %v5324, %v5342
    %v5351 = vmul.f32 %v5349, %v5347
    %v5352 = vmul.f32 %v5350, %v5348
    %vm5353 = vcmask 7168
    %v5354 = vsel %vm5353, %v5351, 0.0
    %v5355 = vsel %vm5353, %v5352, 0.0
    %v5356 = vadd.f32 %v5354, %v5355
    %5357 = vadd.xlane.f32.xlu0 %v5356
    %v5358 = vpop.xlane.xlu0 %5357
    %v5359 = vrot.slane %v5358, 4
    %v5360 = vadd.f32 %v5358, %v5359
    %v5361 = vrot.slane %v5360, 2
    %v5362 = vadd.f32 %v5360, %v5361
    %v5363 = vrot.slane %v5362, 1
    %v5364 = vadd.f32 %v5362, %v5363
    %s5365 = vtos %v5364
    %v5366 = vsel %vm5353, %v5347, 0.0
    %v5367 = vsel %vm5353, %v5348, 0.0
    %v5368 = vadd.f32 %v5366, %v5367
    %5369 = vadd.xlane.f32.xlu0 %v5368
    %v5370 = vpop.xlane.xlu0 %5369
    %v5371 = vrot.slane %v5370, 4
    %v5372 = vadd.f32 %v5370, %v5371
    %v5373 = vrot.slane %v5372, 2
    %v5374 = vadd.f32 %v5372, %v5373
    %v5375 = vrot.slane %v5374, 1
    %v5376 = vadd.f32 %v5374, %v5375
    %s5377 = vtos %v5376
    %s5378 = smax.f32 %s5377, 1.0
    %v5379 = vstv %s5378
    %v5380 = vrcp.pop %v5379
    %s5381 = vtos %v5380
    %s5382 = smul.f32 %s5365, %s5381
    %v5383 = vstv %s5382
    %vm5384 = vcmask 0
    %5385 = vst.msk [vmem:[#allocation6] sm:$0x1] %vm5384, %v5383
    // Predicated region
    $region30: #{triple2question_forward.1} parent=1 // pred_check
      _
    $region31: #{triple2question_forward.1} parent=1 // pred_check_branch
      %5387 = sbr.rel (0) target = $region33
    $region32: #{triple2question_forward.1} parent=1 // pred_region
      %s5389 = ssub.s32 256, 256
      %5390 = vsyncadd [#allocation4], %s5389
      %s5391 = sshll.u32 [#allocation5], 4
      %s5392 = int_to_ptr.vmem [resolvable:$true] %s5391
      %5397 = dma.vmem_to_hbm [thread:$0]  %s5392, 256, %s6, [#allocation4], 128, 128, 8
    $region33: #{triple2question_forward.1} parent=1 // pred_fallthru
      _
    // Predicated region
    $region34: #{triple2question_forward.1} parent=1 // pred_check
      _
    $region35: #{triple2question_forward.1} parent=1 // pred_check_branch
      %5399 = sbr.rel (0) target = $region37
    $region36: #{triple2question_forward.1} parent=1 // pred_region
      %s5401 = ssub.s32 16, 16
      %5402 = vsyncadd [#allocation7], %s5401
      %s5404 = sshll.u32 [#allocation6], 4
      %s5405 = int_to_ptr.vmem [resolvable:$true] %s5404
      %5407 = dma.vmem_to_hbm [thread:$0]  %s5405, 16, %s7, [#allocation7]
    $region37: #{triple2question_forward.1} parent=1 // pred_fallthru
      _
    // Predicated region
    $region38: #{triple2question_forward.1} parent=1 // pred_check
      _
    $region39: #{triple2question_forward.1} parent=1 // pred_check_branch
      %5409 = sbr.rel (0) target = $region41
    $region40: #{triple2question_forward.1} parent=1 // pred_region
      %5410 = dma.done [#allocation4], 256
    $region41: #{triple2question_forward.1} parent=1 // pred_fallthru
      _
    // Predicated region
    $region42: #{triple2question_forward.1} parent=1 // pred_check
      _
    $region43: #{triple2question_forward.1} parent=1 // pred_check_branch
      %5412 = sbr.rel (0) target = $region45
    $region44: #{triple2question_forward.1} parent=1 // pred_region
      %5413 = dma.done [#allocation7], 16
    $region45: #{triple2question_forward.1} parent=1 // pred_fallthru
      _
    %5414 = vsyncpa [#allocation3], 1
    %5415 = vsyncpa [#allocation4], 1
    %5416 = vsyncpa [#allocation7], 1

</llo_original>
